<compile_context>
chip_gen: v6e
topology: v6e:2x2x1
jax: 0.10.0
libtpu: 0.0.40
codegen_flags: <defaults>
</compile_context>

<pallas_src>
import jax
import jax.numpy as jnp
from jax import lax
from jax.experimental import pallas as pl
from jax.experimental.pallas import tpu as pltpu


def _layer_norm(x, gamma, beta, eps=1e-5):
    mu = jnp.mean(x, axis=-1, keepdims=True)
    var = jnp.mean((x - mu) ** 2, axis=-1, keepdims=True)
    return (x - mu) * lax.rsqrt(var + eps) * gamma + beta


def _mm(x, w):
    """bf16 MXU matmul with f32 accumulation (weights already bf16)."""
    return jnp.dot(x.astype(jnp.bfloat16), w, preferred_element_type=jnp.float32)


def _attend(s, v_bf, exp_dtype):
    """Lane-axis softmax(s) @ v with deferred normalization.

    s: (S, S) f32 scores (already scaled).  v_bf: (S, hd) bf16.
    Returns (S, hd) f32 = softmax(s, axis=-1) @ v.
    """
    m = jnp.max(s, axis=-1, keepdims=True)                       # (S, 1) f32
    e = jnp.exp((s - m).astype(exp_dtype))                       # (S, S)
    l = jnp.sum(e.astype(jnp.float32), axis=-1, keepdims=True)   # (S, 1) f32
    pv = jnp.dot(e.astype(jnp.bfloat16), v_bf,
                 preferred_element_type=jnp.float32)             # (S, hd) f32
    return pv * pl.reciprocal(l, approx=True)


def _make_kernel(num_heads, head_dim, model_dim, exp_dtype):
    # contract last dims of both operands: A (m,d) x B (n,d) -> A @ B^T, no .T
    dn_nt = (((1,), (1,)), ((), ()))
    bf16 = jnp.bfloat16

    def kernel(m1_ref, m2_ref,
               wqv1, bqv1, wkv2, bkv2,
               wo1, bo1, wo2, bo2,
               ln1_g, ln1_b, ln2_g, ln2_b,
               f1w1, f1b1, f1w2, f1b2,
               f2w1, f2b1, f2w2, f2b2,
               o1_ref, o2_ref,
               nv1_sc, nv2_sc):
        x1 = m1_ref[...]          # (S, D) f32
        x2 = m2_ref[...]          # (S, D) f32

        # Fused projections (1/sqrt(hd) already folded into the Q columns).
        qv1 = _mm(x1, wqv1[...]) + bqv1[...]      # (S, 2D) = [Q*scale | V1], f32
        kv2 = _mm(x2, wkv2[...]) + bkv2[...]      # (S, 2D) = [K       | V2], f32

        # One full-width bf16 cast per modality; per-head slices stay bf16.
        qv1_b = qv1.astype(bf16)
        kv2_b = kv2.astype(bf16)
        Q = qv1_b[:, :model_dim]
        V1 = qv1_b[:, model_dim:]
        K = kv2_b[:, :model_dim]
        V2 = kv2_b[:, model_dim:]

        # Per-head dual cross attention. num_heads is small & static here;
        # per-head outputs go straight into the bf16 VMEM scratch slabs.
        for h in range(num_heads):
            lo = h * head_dim
            hi = lo + head_dim
            Qh = Q[:, lo:hi]
            Kh = K[:, lo:hi]
            V1h = V1[:, lo:hi]
            V2h = V2[:, lo:hi]

            # One MXU score matmul per head; the reverse direction is its
            # transpose (XLU) instead of a second matmul.
            s_qk = lax.dot_general(Qh, Kh, dn_nt,
                                   preferred_element_type=jnp.float32)  # (Sq,Sk)

            # S1 = softmax_k(Q K^T * scale);  new_V2 = S1 @ V2
            nv2_sc[:, lo:hi] = _attend(s_qk, V2h, exp_dtype).astype(bf16)
            # S2 = softmax_q(K Q^T * scale) = softmax_q(s_qk^T);  new_V1 = S2 @ V1
            nv1_sc[:, lo:hi] = _attend(s_qk.T, V1h, exp_dtype).astype(bf16)

        # Output projections + residual (f32 residual path).
        out_V1 = _mm(nv1_sc[...], wo1[...]) + bo1[...] + x1
        out_V2 = _mm(nv2_sc[...], wo2[...]) + bo2[...] + x2

        # FFN branch 1 (dropout = identity in eval mode)
        h1 = _layer_norm(out_V1, ln1_g[...], ln1_b[...])
        h1 = jnp.maximum(_mm(h1, f1w1[...]) + f1b1[...], 0.0)
        h1 = _mm(h1, f1w2[...]) + f1b2[...]
        o1_ref[...] = (h1 + out_V1).astype(o1_ref.dtype)

        # FFN branch 2
        h2 = _layer_norm(out_V2, ln2_g[...], ln2_b[...])
        h2 = jnp.maximum(_mm(h2, f2w1[...]) + f2b1[...], 0.0)
        h2 = _mm(h2, f2w2[...]) + f2b2[...]
        o2_ref[...] = (h2 + out_V2).astype(o2_ref.dtype)

    return kernel


def prepare_weights(params, num_heads):
    """One-time host-side fusion + bf16 cast. Cache the result across calls."""
    bf16 = jnp.bfloat16
    model_dim = params["wq"].shape[0]
    head_dim = model_dim // num_heads
    scale = 1.0 / (head_dim ** 0.5)

    # Fold the attention scale into the Q projection (weight AND bias).
    wq_s = params["wq"] * scale
    bq_s = params["bq"] * scale

    wqv1 = jnp.concatenate([wq_s, params["wv1"]], axis=1).astype(bf16)  # (D, 2D)
    bqv1 = jnp.concatenate([bq_s, params["bv1"]], axis=1)               # (1, 2D) f32
    wkv2 = jnp.concatenate([params["wk"], params["wv2"]], axis=1).astype(bf16)
    bkv2 = jnp.concatenate([params["bk"], params["bv2"]], axis=1)

    return [
        wqv1, bqv1, wkv2, bkv2,
        params["wo1"].astype(bf16), params["bo1"],
        params["wo2"].astype(bf16), params["bo2"],
        params["ln1_g"], params["ln1_b"], params["ln2_g"], params["ln2_b"],
        params["f1w1"].astype(bf16), params["f1b1"],
        params["f1w2"].astype(bf16), params["f1b2"],
        params["f2w1"].astype(bf16), params["f2b1"],
        params["f2w2"].astype(bf16), params["f2b2"],
    ]


def _exp_dtype_for_device():
    """bf16 exp on v6e/v7x (bf16 EUP); f32 exp on v5e and older."""
    try:
        kind = jax.devices()[0].device_kind.lower()
    except Exception:
        return jnp.float32
    if any(tag in kind for tag in ("v2", "v3", "v4", "v5")):
        return jnp.float32
    return jnp.bfloat16


def multi_head_cross_attention(modal1, modal2, weight_args, *, num_heads):
    B, S, D = modal1.shape
    head_dim = D // num_heads

    def io_spec():
        # leading batch dim squeezed: kernel sees 2-D (S, D) refs
        return pl.BlockSpec((None, S, D), lambda b: (b, 0, 0))

    def full_spec(a):
        # whole (2-D) weight resident; constant index map -> DMA'd once
        return pl.BlockSpec(a.shape, lambda b: (0, 0))

    in_specs = [io_spec(), io_spec()] + [full_spec(a) for a in weight_args]
    out_specs = (io_spec(), io_spec())

    kernel = _make_kernel(num_heads, head_dim, D, _exp_dtype_for_device())

    out1, out2 = pl.pallas_call(
        kernel,
        out_shape=(
            jax.ShapeDtypeStruct((B, S, D), modal1.dtype),
            jax.ShapeDtypeStruct((B, S, D), modal2.dtype),
        ),
        grid=(B,),
        in_specs=in_specs,
        out_specs=out_specs,
        scratch_shapes=[
            pltpu.VMEM((S, D), jnp.bfloat16),   # new_V1 slab (feeds bf16 matmul)
            pltpu.VMEM((S, D), jnp.bfloat16),   # new_V2 slab
        ],
        compiler_params=pltpu.CompilerParams(
            dimension_semantics=("parallel",),
            # Plenty at these shapes; raise toward 64-96 MiB on v5e/v6e (and keep
            # <= ~48 MiB on v7x) when S grows and the flash-style tiling lands.
            vmem_limit_bytes=32 * 1024 * 1024,
        ),
    )(modal1, modal2, *weight_args)
    return out1, out2


def _init_params(key, model_dim, num_heads, hidden_dim):
    ks = jax.random.split(key, 20)
    k_it = iter(ks)

    def linear(kk, d_in, d_out):
        # Weight stored as (in, out) so kernel does x @ W + b (== PyTorch x @ W.T + b).
        w = jax.random.normal(kk, (d_in, d_out), jnp.float32) * 0.05
        b = jnp.zeros((1, d_out), jnp.float32)
        return w, b

    p = {}
    p["wq"], p["bq"] = linear(next(k_it), model_dim, model_dim)
    p["wk"], p["bk"] = linear(next(k_it), model_dim, model_dim)
    p["wv1"], p["bv1"] = linear(next(k_it), model_dim, model_dim)
    p["wv2"], p["bv2"] = linear(next(k_it), model_dim, model_dim)
    p["wo1"], p["bo1"] = linear(next(k_it), model_dim, model_dim)
    p["wo2"], p["bo2"] = linear(next(k_it), model_dim, model_dim)
    p["ln1_g"] = jnp.ones((1, model_dim), jnp.float32)
    p["ln1_b"] = jnp.zeros((1, model_dim), jnp.float32)
    p["ln2_g"] = jnp.ones((1, model_dim), jnp.float32)
    p["ln2_b"] = jnp.zeros((1, model_dim), jnp.float32)
    p["f1w1"], p["f1b1"] = linear(next(k_it), model_dim, hidden_dim)
    p["f1w2"], p["f1b2"] = linear(next(k_it), hidden_dim, model_dim)
    p["f2w1"], p["f2b1"] = linear(next(k_it), model_dim, hidden_dim)
    p["f2w2"], p["f2b2"] = linear(next(k_it), hidden_dim, model_dim)
    # alpha_*/beta_* parameters exist in the module but are unused on the taken
    # branch of forward() (if True:), so they are omitted here.
    return p


def _reference(modal1, modal2, p, num_heads):
    """Pure-JAX f32 reference mirroring the PyTorch forward (eval mode)."""
    B, S, D = modal1.shape
    hd = D // num_heads

    def lin(x, w, b):
        return x @ w + b

    def heads(x):
        return x.reshape(B, S, num_heads, hd).transpose(0, 2, 1, 3)

    Q = heads(lin(modal1, p["wq"], p["bq"]))
    K = heads(lin(modal2, p["wk"], p["bk"]))
    V1 = heads(lin(modal1, p["wv1"], p["bv1"]))
    V2 = heads(lin(modal2, p["wv2"], p["bv2"]))

    S1 = jax.nn.softmax(jnp.einsum("bhqd,bhkd->bhqk", Q, K) / hd ** 0.5, axis=-1)
    S2 = jax.nn.softmax(jnp.einsum("bhkd,bhqd->bhkq", K, Q) / hd ** 0.5, axis=-1)
    nV1 = jnp.einsum("bhkq,bhqd->bhkd", S2, V1).transpose(0, 2, 1, 3).reshape(B, S, D)
    nV2 = jnp.einsum("bhqk,bhkd->bhqd", S1, V2).transpose(0, 2, 1, 3).reshape(B, S, D)

    o1 = lin(nV1, p["wo1"], p["bo1"]) + modal1
    o2 = lin(nV2, p["wo2"], p["bo2"]) + modal2

    def ln_(x, g, b):
        mu = x.mean(-1, keepdims=True)
        var = ((x - mu) ** 2).mean(-1, keepdims=True)
        return (x - mu) / jnp.sqrt(var + 1e-5) * g + b

    h1 = ln_(o1, p["ln1_g"], p["ln1_b"])
    h1 = lin(jax.nn.relu(lin(h1, p["f1w1"], p["f1b1"])), p["f1w2"], p["f1b2"])
    h2 = ln_(o2, p["ln2_g"], p["ln2_b"])
    h2 = lin(jax.nn.relu(lin(h2, p["f2w1"], p["f2b1"])), p["f2w2"], p["f2b2"])
    return h1 + o1, h2 + o2


if __name__ == "__main__":
    # Lane-dense small shapes: D multiple of 128 so every block / store is unmasked.
    B, S, D = 2, 16, 128
    num_heads, hidden_dim = 4, 256

    key = jax.random.PRNGKey(0)
    k1, k2, kp = jax.random.split(key, 3)
    modal1 = jax.random.normal(k1, (B, S, D), jnp.float32)
    modal2 = jax.random.normal(k2, (B, S, D), jnp.float32)
    params = _init_params(kp, D, num_heads, hidden_dim)

    # Fuse / cast weights once (cache across calls in real use).
    fused_weights = prepare_weights(params, num_heads)

    out1, out2 = multi_head_cross_attention(modal1, modal2, fused_weights,
                                             num_heads=num_heads)
    out1 = jax.block_until_ready(out1)
    out2 = jax.block_until_ready(out2)

    ref1, ref2 = _reference(modal1, modal2, params, num_heads)
    # bf16 MXU inputs (f32 accumulation), bf16 exp on v6e/v7x -> loosened tolerance.
    assert jnp.allclose(out1, ref1, atol=3e-2, rtol=3e-2), float(jnp.max(jnp.abs(out1 - ref1)))
    assert jnp.allclose(out2, ref2, atol=3e-2, rtol=3e-2), float(jnp.max(jnp.abs(out2 - ref2)))
    print("KERNEL_OK")
</pallas_src>

<mosaic_0001>
module attributes {stable_mosaic.version = 11 : i64} {
  func.func @kernel(%arg0: i32, %arg1: memref<1x16x128xf32, #tpu.memory_space<vmem>>, %arg2: memref<1x16x128xf32, #tpu.memory_space<vmem>>, %arg3: memref<128x256xbf16, #tpu.memory_space<vmem>>, %arg4: memref<1x256xf32, #tpu.memory_space<vmem>>, %arg5: memref<128x256xbf16, #tpu.memory_space<vmem>>, %arg6: memref<1x256xf32, #tpu.memory_space<vmem>>, %arg7: memref<128x128xbf16, #tpu.memory_space<vmem>>, %arg8: memref<1x128xf32, #tpu.memory_space<vmem>>, %arg9: memref<128x128xbf16, #tpu.memory_space<vmem>>, %arg10: memref<1x128xf32, #tpu.memory_space<vmem>>, %arg11: memref<1x128xf32, #tpu.memory_space<vmem>>, %arg12: memref<1x128xf32, #tpu.memory_space<vmem>>, %arg13: memref<1x128xf32, #tpu.memory_space<vmem>>, %arg14: memref<1x128xf32, #tpu.memory_space<vmem>>, %arg15: memref<128x256xbf16, #tpu.memory_space<vmem>>, %arg16: memref<1x256xf32, #tpu.memory_space<vmem>>, %arg17: memref<256x128xbf16, #tpu.memory_space<vmem>>, %arg18: memref<1x128xf32, #tpu.memory_space<vmem>>, %arg19: memref<128x256xbf16, #tpu.memory_space<vmem>>, %arg20: memref<1x256xf32, #tpu.memory_space<vmem>>, %arg21: memref<256x128xbf16, #tpu.memory_space<vmem>>, %arg22: memref<1x128xf32, #tpu.memory_space<vmem>>, %arg23: memref<1x16x128xf32, #tpu.memory_space<vmem>>, %arg24: memref<1x16x128xf32, #tpu.memory_space<vmem>>, %arg25: memref<16x128xbf16, #tpu.memory_space<vmem>>, %arg26: memref<16x128xbf16, #tpu.memory_space<vmem>>) attributes {dimension_semantics = [#tpu.dimension_semantics<parallel>], iteration_bounds = array<i64: 2>, scalar_prefetch = 0 : i64, scratch_operands = 2 : i64, tpu.core_type = #tpu.core_type<tc>, window_params = [{transform_indices = @transform_0, window_bounds = array<i64: 1, 16, 128>}, {transform_indices = @transform_1, window_bounds = array<i64: 1, 16, 128>}, {pipeline_mode = #tpu.pipeline_mode<synchronous>, transform_indices = @transform_2, window_bounds = array<i64: 128, 256>}, {pipeline_mode = #tpu.pipeline_mode<synchronous>, transform_indices = @transform_3, window_bounds = array<i64: 1, 256>}, {pipeline_mode = #tpu.pipeline_mode<synchronous>, transform_indices = @transform_4, window_bounds = array<i64: 128, 256>}, {pipeline_mode = #tpu.pipeline_mode<synchronous>, transform_indices = @transform_5, window_bounds = array<i64: 1, 256>}, {pipeline_mode = #tpu.pipeline_mode<synchronous>, transform_indices = @transform_6, window_bounds = array<i64: 128, 128>}, {pipeline_mode = #tpu.pipeline_mode<synchronous>, transform_indices = @transform_7, window_bounds = array<i64: 1, 128>}, {pipeline_mode = #tpu.pipeline_mode<synchronous>, transform_indices = @transform_8, window_bounds = array<i64: 128, 128>}, {pipeline_mode = #tpu.pipeline_mode<synchronous>, transform_indices = @transform_9, window_bounds = array<i64: 1, 128>}, {pipeline_mode = #tpu.pipeline_mode<synchronous>, transform_indices = @transform_10, window_bounds = array<i64: 1, 128>}, {pipeline_mode = #tpu.pipeline_mode<synchronous>, transform_indices = @transform_11, window_bounds = array<i64: 1, 128>}, {pipeline_mode = #tpu.pipeline_mode<synchronous>, transform_indices = @transform_12, window_bounds = array<i64: 1, 128>}, {pipeline_mode = #tpu.pipeline_mode<synchronous>, transform_indices = @transform_13, window_bounds = array<i64: 1, 128>}, {pipeline_mode = #tpu.pipeline_mode<synchronous>, transform_indices = @transform_14, window_bounds = array<i64: 128, 256>}, {pipeline_mode = #tpu.pipeline_mode<synchronous>, transform_indices = @transform_15, window_bounds = array<i64: 1, 256>}, {pipeline_mode = #tpu.pipeline_mode<synchronous>, transform_indices = @transform_16, window_bounds = array<i64: 256, 128>}, {pipeline_mode = #tpu.pipeline_mode<synchronous>, transform_indices = @transform_17, window_bounds = array<i64: 1, 128>}, {pipeline_mode = #tpu.pipeline_mode<synchronous>, transform_indices = @transform_18, window_bounds = array<i64: 128, 256>}, {pipeline_mode = #tpu.pipeline_mode<synchronous>, transform_indices = @transform_19, window_bounds = array<i64: 1, 256>}, {pipeline_mode = #tpu.pipeline_mode<synchronous>, transform_indices = @transform_20, window_bounds = array<i64: 256, 128>}, {pipeline_mode = #tpu.pipeline_mode<synchronous>, transform_indices = @transform_21, window_bounds = array<i64: 1, 128>}, {transform_indices = @transform_22, window_bounds = array<i64: 1, 16, 128>}, {transform_indices = @transform_23, window_bounds = array<i64: 1, 16, 128>}]} {
    %c0 = arith.constant 0 : index
    %c0_0 = arith.constant 0 : index
    %c0_1 = arith.constant 0 : index
    %0 = vector.load %arg1[%c0, %c0_0, %c0_1] : memref<1x16x128xf32, #tpu.memory_space<vmem>>, vector<1x16x128xf32>
    %1 = vector.shape_cast %0 : vector<1x16x128xf32> to vector<16x128xf32>
    %c0_2 = arith.constant 0 : index
    %c0_3 = arith.constant 0 : index
    %c0_4 = arith.constant 0 : index
    %2 = vector.load %arg2[%c0_2, %c0_3, %c0_4] : memref<1x16x128xf32, #tpu.memory_space<vmem>>, vector<1x16x128xf32>
    %3 = vector.shape_cast %2 : vector<1x16x128xf32> to vector<16x128xf32>
    %c0_5 = arith.constant 0 : index
    %c0_6 = arith.constant 0 : index
    %4 = vector.load %arg3[%c0_5, %c0_6] : memref<128x256xbf16, #tpu.memory_space<vmem>>, vector<128x256xbf16>
    %5 = arith.truncf %1 : vector<16x128xf32> to vector<16x128xbf16>
    %cst = arith.constant dense<0.000000e+00> : vector<16x256xf32>
    %6 = tpu.matmul %5, %4, %cst {dimension_numbers = #tpu.dot_dimension_numbers<[1], [0], [0], [1], [0, 0, 1, 1], [], []>} : vector<16x128xbf16>, vector<128x256xbf16>, vector<16x256xf32> -> vector<16x256xf32>
    %c0_7 = arith.constant 0 : index
    %c0_8 = arith.constant 0 : index
    %7 = vector.load %arg4[%c0_7, %c0_8] : memref<1x256xf32, #tpu.memory_space<vmem>>, vector<1x256xf32>
    %8 = vector.broadcast %7 : vector<1x256xf32> to vector<16x256xf32>
    %9 = arith.addf %6, %8 : vector<16x256xf32>
    %c0_9 = arith.constant 0 : index
    %c0_10 = arith.constant 0 : index
    %10 = vector.load %arg5[%c0_9, %c0_10] : memref<128x256xbf16, #tpu.memory_space<vmem>>, vector<128x256xbf16>
    %11 = arith.truncf %3 : vector<16x128xf32> to vector<16x128xbf16>
    %cst_11 = arith.constant dense<0.000000e+00> : vector<16x256xf32>
    %12 = tpu.matmul %11, %10, %cst_11 {dimension_numbers = #tpu.dot_dimension_numbers<[1], [0], [0], [1], [0, 0, 1, 1], [], []>} : vector<16x128xbf16>, vector<128x256xbf16>, vector<16x256xf32> -> vector<16x256xf32>
    %c0_12 = arith.constant 0 : index
    %c0_13 = arith.constant 0 : index
    %13 = vector.load %arg6[%c0_12, %c0_13] : memref<1x256xf32, #tpu.memory_space<vmem>>, vector<1x256xf32>
    %14 = vector.broadcast %13 : vector<1x256xf32> to vector<16x256xf32>
    %15 = arith.addf %12, %14 : vector<16x256xf32>
    %16 = arith.truncf %9 : vector<16x256xf32> to vector<16x256xbf16>
    %17 = arith.truncf %15 : vector<16x256xf32> to vector<16x256xbf16>
    %18 = vector.extract_strided_slice %16 {offsets = [0, 0], sizes = [16, 128], strides = [1, 1]} : vector<16x256xbf16> to vector<16x128xbf16>
    %19 = vector.extract_strided_slice %16 {offsets = [0, 128], sizes = [16, 128], strides = [1, 1]} : vector<16x256xbf16> to vector<16x128xbf16>
    %20 = vector.extract_strided_slice %17 {offsets = [0, 0], sizes = [16, 128], strides = [1, 1]} : vector<16x256xbf16> to vector<16x128xbf16>
    %21 = vector.extract_strided_slice %17 {offsets = [0, 128], sizes = [16, 128], strides = [1, 1]} : vector<16x256xbf16> to vector<16x128xbf16>
    %22 = vector.extract_strided_slice %18 {offsets = [0, 0], sizes = [16, 32], strides = [1, 1]} : vector<16x128xbf16> to vector<16x32xbf16>
    %23 = vector.extract_strided_slice %20 {offsets = [0, 0], sizes = [16, 32], strides = [1, 1]} : vector<16x128xbf16> to vector<16x32xbf16>
    %24 = vector.extract_strided_slice %19 {offsets = [0, 0], sizes = [16, 32], strides = [1, 1]} : vector<16x128xbf16> to vector<16x32xbf16>
    %25 = vector.extract_strided_slice %21 {offsets = [0, 0], sizes = [16, 32], strides = [1, 1]} : vector<16x128xbf16> to vector<16x32xbf16>
    %cst_14 = arith.constant dense<0.000000e+00> : vector<16x16xf32>
    %26 = tpu.matmul %22, %23, %cst_14 {dimension_numbers = #tpu.dot_dimension_numbers<[1], [1], [0], [0], [0, 0, 1, 0], [], []>} : vector<16x32xbf16>, vector<16x32xbf16>, vector<16x16xf32> -> vector<16x16xf32>
    %cst_15 = arith.constant dense<0xFF800000> : vector<16xf32>
    %27 = vector.multi_reduction <maximumf>, %26, %cst_15 [1] : vector<16x16xf32> to vector<16xf32>
    %28 = vector.shape_cast %27 : vector<16xf32> to vector<16x1xf32>
    %29 = vector.broadcast %28 : vector<16x1xf32> to vector<16x16xf32>
    %30 = arith.subf %26, %29 : vector<16x16xf32>
    %31 = arith.truncf %30 : vector<16x16xf32> to vector<16x16xbf16>
    %32 = math.exp %31 : vector<16x16xbf16>
    %33 = arith.extf %32 : vector<16x16xbf16> to vector<16x16xf32>
    %cst_16 = arith.constant dense<0.000000e+00> : vector<16xf32>
    %34 = vector.multi_reduction <add>, %33, %cst_16 [1] : vector<16x16xf32> to vector<16xf32>
    %35 = vector.shape_cast %34 : vector<16xf32> to vector<16x1xf32>
    %cst_17 = arith.constant dense<0.000000e+00> : vector<16x32xf32>
    %36 = tpu.matmul %32, %25, %cst_17 {dimension_numbers = #tpu.dot_dimension_numbers<[1], [0], [0], [1], [0, 0, 1, 1], [], []>} : vector<16x16xbf16>, vector<16x32xbf16>, vector<16x32xf32> -> vector<16x32xf32>
    %37 = tpu.reciprocal %35 {approx = true} : vector<16x1xf32> -> vector<16x1xf32>
    %38 = vector.broadcast %37 : vector<16x1xf32> to vector<16x32xf32>
    %39 = arith.mulf %36, %38 : vector<16x32xf32>
    %40 = arith.truncf %39 : vector<16x32xf32> to vector<16x32xbf16>
    %c0_18 = arith.constant 0 : index
    %c0_19 = arith.constant 0 : index
    %41 = vector.load %arg26[%c0_18, %c0_19] : memref<16x128xbf16, #tpu.memory_space<vmem>>, vector<16x32xbf16>
    tpu.vector_store %arg26[%c0_18, %c0_19], %40 {strides = array<i32>} : memref<16x128xbf16, #tpu.memory_space<vmem>>, vector<16x32xbf16>,
    %42 = tpu.transpose %26, [1, 0] : vector<16x16xf32> -> vector<16x16xf32>
    %cst_20 = arith.constant dense<0xFF800000> : vector<16xf32>
    %43 = vector.multi_reduction <maximumf>, %42, %cst_20 [1] : vector<16x16xf32> to vector<16xf32>
    %44 = vector.shape_cast %43 : vector<16xf32> to vector<16x1xf32>
    %45 = vector.broadcast %44 : vector<16x1xf32> to vector<16x16xf32>
    %46 = arith.subf %42, %45 : vector<16x16xf32>
    %47 = arith.truncf %46 : vector<16x16xf32> to vector<16x16xbf16>
    %48 = math.exp %47 : vector<16x16xbf16>
    %49 = arith.extf %48 : vector<16x16xbf16> to vector<16x16xf32>
    %cst_21 = arith.constant dense<0.000000e+00> : vector<16xf32>
    %50 = vector.multi_reduction <add>, %49, %cst_21 [1] : vector<16x16xf32> to vector<16xf32>
    %51 = vector.shape_cast %50 : vector<16xf32> to vector<16x1xf32>
    %cst_22 = arith.constant dense<0.000000e+00> : vector<16x32xf32>
    %52 = tpu.matmul %48, %24, %cst_22 {dimension_numbers = #tpu.dot_dimension_numbers<[1], [0], [0], [1], [0, 0, 1, 1], [], []>} : vector<16x16xbf16>, vector<16x32xbf16>, vector<16x32xf32> -> vector<16x32xf32>
    %53 = tpu.reciprocal %51 {approx = true} : vector<16x1xf32> -> vector<16x1xf32>
    %54 = vector.broadcast %53 : vector<16x1xf32> to vector<16x32xf32>
    %55 = arith.mulf %52, %54 : vector<16x32xf32>
    %56 = arith.truncf %55 : vector<16x32xf32> to vector<16x32xbf16>
    %c0_23 = arith.constant 0 : index
    %c0_24 = arith.constant 0 : index
    %57 = vector.load %arg25[%c0_23, %c0_24] : memref<16x128xbf16, #tpu.memory_space<vmem>>, vector<16x32xbf16>
    tpu.vector_store %arg25[%c0_23, %c0_24], %56 {strides = array<i32>} : memref<16x128xbf16, #tpu.memory_space<vmem>>, vector<16x32xbf16>,
    %58 = vector.extract_strided_slice %18 {offsets = [0, 32], sizes = [16, 32], strides = [1, 1]} : vector<16x128xbf16> to vector<16x32xbf16>
    %59 = vector.extract_strided_slice %20 {offsets = [0, 32], sizes = [16, 32], strides = [1, 1]} : vector<16x128xbf16> to vector<16x32xbf16>
    %60 = vector.extract_strided_slice %19 {offsets = [0, 32], sizes = [16, 32], strides = [1, 1]} : vector<16x128xbf16> to vector<16x32xbf16>
    %61 = vector.extract_strided_slice %21 {offsets = [0, 32], sizes = [16, 32], strides = [1, 1]} : vector<16x128xbf16> to vector<16x32xbf16>
    %cst_25 = arith.constant dense<0.000000e+00> : vector<16x16xf32>
    %62 = tpu.matmul %58, %59, %cst_25 {dimension_numbers = #tpu.dot_dimension_numbers<[1], [1], [0], [0], [0, 0, 1, 0], [], []>} : vector<16x32xbf16>, vector<16x32xbf16>, vector<16x16xf32> -> vector<16x16xf32>
    %cst_26 = arith.constant dense<0xFF800000> : vector<16xf32>
    %63 = vector.multi_reduction <maximumf>, %62, %cst_26 [1] : vector<16x16xf32> to vector<16xf32>
    %64 = vector.shape_cast %63 : vector<16xf32> to vector<16x1xf32>
    %65 = vector.broadcast %64 : vector<16x1xf32> to vector<16x16xf32>
    %66 = arith.subf %62, %65 : vector<16x16xf32>
    %67 = arith.truncf %66 : vector<16x16xf32> to vector<16x16xbf16>
    %68 = math.exp %67 : vector<16x16xbf16>
    %69 = arith.extf %68 : vector<16x16xbf16> to vector<16x16xf32>
    %cst_27 = arith.constant dense<0.000000e+00> : vector<16xf32>
    %70 = vector.multi_reduction <add>, %69, %cst_27 [1] : vector<16x16xf32> to vector<16xf32>
    %71 = vector.shape_cast %70 : vector<16xf32> to vector<16x1xf32>
    %cst_28 = arith.constant dense<0.000000e+00> : vector<16x32xf32>
    %72 = tpu.matmul %68, %61, %cst_28 {dimension_numbers = #tpu.dot_dimension_numbers<[1], [0], [0], [1], [0, 0, 1, 1], [], []>} : vector<16x16xbf16>, vector<16x32xbf16>, vector<16x32xf32> -> vector<16x32xf32>
    %73 = tpu.reciprocal %71 {approx = true} : vector<16x1xf32> -> vector<16x1xf32>
    %74 = vector.broadcast %73 : vector<16x1xf32> to vector<16x32xf32>
    %75 = arith.mulf %72, %74 : vector<16x32xf32>
    %76 = arith.truncf %75 : vector<16x32xf32> to vector<16x32xbf16>
    %c0_29 = arith.constant 0 : index
    %c32 = arith.constant 32 : index
    %77 = vector.load %arg26[%c0_29, %c32] : memref<16x128xbf16, #tpu.memory_space<vmem>>, vector<16x32xbf16>
    tpu.vector_store %arg26[%c0_29, %c32], %76 {strides = array<i32>} : memref<16x128xbf16, #tpu.memory_space<vmem>>, vector<16x32xbf16>,
    %78 = tpu.transpose %62, [1, 0] : vector<16x16xf32> -> vector<16x16xf32>
    %cst_30 = arith.constant dense<0xFF800000> : vector<16xf32>
    %79 = vector.multi_reduction <maximumf>, %78, %cst_30 [1] : vector<16x16xf32> to vector<16xf32>
    %80 = vector.shape_cast %79 : vector<16xf32> to vector<16x1xf32>
    %81 = vector.broadcast %80 : vector<16x1xf32> to vector<16x16xf32>
    %82 = arith.subf %78, %81 : vector<16x16xf32>
    %83 = arith.truncf %82 : vector<16x16xf32> to vector<16x16xbf16>
    %84 = math.exp %83 : vector<16x16xbf16>
    %85 = arith.extf %84 : vector<16x16xbf16> to vector<16x16xf32>
    %cst_31 = arith.constant dense<0.000000e+00> : vector<16xf32>
    %86 = vector.multi_reduction <add>, %85, %cst_31 [1] : vector<16x16xf32> to vector<16xf32>
    %87 = vector.shape_cast %86 : vector<16xf32> to vector<16x1xf32>
    %cst_32 = arith.constant dense<0.000000e+00> : vector<16x32xf32>
    %88 = tpu.matmul %84, %60, %cst_32 {dimension_numbers = #tpu.dot_dimension_numbers<[1], [0], [0], [1], [0, 0, 1, 1], [], []>} : vector<16x16xbf16>, vector<16x32xbf16>, vector<16x32xf32> -> vector<16x32xf32>
    %89 = tpu.reciprocal %87 {approx = true} : vector<16x1xf32> -> vector<16x1xf32>
    %90 = vector.broadcast %89 : vector<16x1xf32> to vector<16x32xf32>
    %91 = arith.mulf %88, %90 : vector<16x32xf32>
    %92 = arith.truncf %91 : vector<16x32xf32> to vector<16x32xbf16>
    %c0_33 = arith.constant 0 : index
    %c32_34 = arith.constant 32 : index
    %93 = vector.load %arg25[%c0_33, %c32_34] : memref<16x128xbf16, #tpu.memory_space<vmem>>, vector<16x32xbf16>
    tpu.vector_store %arg25[%c0_33, %c32_34], %92 {strides = array<i32>} : memref<16x128xbf16, #tpu.memory_space<vmem>>, vector<16x32xbf16>,
    %94 = vector.extract_strided_slice %18 {offsets = [0, 64], sizes = [16, 32], strides = [1, 1]} : vector<16x128xbf16> to vector<16x32xbf16>
    %95 = vector.extract_strided_slice %20 {offsets = [0, 64], sizes = [16, 32], strides = [1, 1]} : vector<16x128xbf16> to vector<16x32xbf16>
    %96 = vector.extract_strided_slice %19 {offsets = [0, 64], sizes = [16, 32], strides = [1, 1]} : vector<16x128xbf16> to vector<16x32xbf16>
    %97 = vector.extract_strided_slice %21 {offsets = [0, 64], sizes = [16, 32], strides = [1, 1]} : vector<16x128xbf16> to vector<16x32xbf16>
    %cst_35 = arith.constant dense<0.000000e+00> : vector<16x16xf32>
    %98 = tpu.matmul %94, %95, %cst_35 {dimension_numbers = #tpu.dot_dimension_numbers<[1], [1], [0], [0], [0, 0, 1, 0], [], []>} : vector<16x32xbf16>, vector<16x32xbf16>, vector<16x16xf32> -> vector<16x16xf32>
    %cst_36 = arith.constant dense<0xFF800000> : vector<16xf32>
    %99 = vector.multi_reduction <maximumf>, %98, %cst_36 [1] : vector<16x16xf32> to vector<16xf32>
    %100 = vector.shape_cast %99 : vector<16xf32> to vector<16x1xf32>
    %101 = vector.broadcast %100 : vector<16x1xf32> to vector<16x16xf32>
    %102 = arith.subf %98, %101 : vector<16x16xf32>
    %103 = arith.truncf %102 : vector<16x16xf32> to vector<16x16xbf16>
    %104 = math.exp %103 : vector<16x16xbf16>
    %105 = arith.extf %104 : vector<16x16xbf16> to vector<16x16xf32>
    %cst_37 = arith.constant dense<0.000000e+00> : vector<16xf32>
    %106 = vector.multi_reduction <add>, %105, %cst_37 [1] : vector<16x16xf32> to vector<16xf32>
    %107 = vector.shape_cast %106 : vector<16xf32> to vector<16x1xf32>
    %cst_38 = arith.constant dense<0.000000e+00> : vector<16x32xf32>
    %108 = tpu.matmul %104, %97, %cst_38 {dimension_numbers = #tpu.dot_dimension_numbers<[1], [0], [0], [1], [0, 0, 1, 1], [], []>} : vector<16x16xbf16>, vector<16x32xbf16>, vector<16x32xf32> -> vector<16x32xf32>
    %109 = tpu.reciprocal %107 {approx = true} : vector<16x1xf32> -> vector<16x1xf32>
    %110 = vector.broadcast %109 : vector<16x1xf32> to vector<16x32xf32>
    %111 = arith.mulf %108, %110 : vector<16x32xf32>
    %112 = arith.truncf %111 : vector<16x32xf32> to vector<16x32xbf16>
    %c0_39 = arith.constant 0 : index
    %c64 = arith.constant 64 : index
    %113 = vector.load %arg26[%c0_39, %c64] : memref<16x128xbf16, #tpu.memory_space<vmem>>, vector<16x32xbf16>
    tpu.vector_store %arg26[%c0_39, %c64], %112 {strides = array<i32>} : memref<16x128xbf16, #tpu.memory_space<vmem>>, vector<16x32xbf16>,
    %114 = tpu.transpose %98, [1, 0] : vector<16x16xf32> -> vector<16x16xf32>
    %cst_40 = arith.constant dense<0xFF800000> : vector<16xf32>
    %115 = vector.multi_reduction <maximumf>, %114, %cst_40 [1] : vector<16x16xf32> to vector<16xf32>
    %116 = vector.shape_cast %115 : vector<16xf32> to vector<16x1xf32>
    %117 = vector.broadcast %116 : vector<16x1xf32> to vector<16x16xf32>
    %118 = arith.subf %114, %117 : vector<16x16xf32>
    %119 = arith.truncf %118 : vector<16x16xf32> to vector<16x16xbf16>
    %120 = math.exp %119 : vector<16x16xbf16>
    %121 = arith.extf %120 : vector<16x16xbf16> to vector<16x16xf32>
    %cst_41 = arith.constant dense<0.000000e+00> : vector<16xf32>
    %122 = vector.multi_reduction <add>, %121, %cst_41 [1] : vector<16x16xf32> to vector<16xf32>
    %123 = vector.shape_cast %122 : vector<16xf32> to vector<16x1xf32>
    %cst_42 = arith.constant dense<0.000000e+00> : vector<16x32xf32>
    %124 = tpu.matmul %120, %96, %cst_42 {dimension_numbers = #tpu.dot_dimension_numbers<[1], [0], [0], [1], [0, 0, 1, 1], [], []>} : vector<16x16xbf16>, vector<16x32xbf16>, vector<16x32xf32> -> vector<16x32xf32>
    %125 = tpu.reciprocal %123 {approx = true} : vector<16x1xf32> -> vector<16x1xf32>
    %126 = vector.broadcast %125 : vector<16x1xf32> to vector<16x32xf32>
    %127 = arith.mulf %124, %126 : vector<16x32xf32>
    %128 = arith.truncf %127 : vector<16x32xf32> to vector<16x32xbf16>
    %c0_43 = arith.constant 0 : index
    %c64_44 = arith.constant 64 : index
    %129 = vector.load %arg25[%c0_43, %c64_44] : memref<16x128xbf16, #tpu.memory_space<vmem>>, vector<16x32xbf16>
    tpu.vector_store %arg25[%c0_43, %c64_44], %128 {strides = array<i32>} : memref<16x128xbf16, #tpu.memory_space<vmem>>, vector<16x32xbf16>,
    %130 = vector.extract_strided_slice %18 {offsets = [0, 96], sizes = [16, 32], strides = [1, 1]} : vector<16x128xbf16> to vector<16x32xbf16>
    %131 = vector.extract_strided_slice %20 {offsets = [0, 96], sizes = [16, 32], strides = [1, 1]} : vector<16x128xbf16> to vector<16x32xbf16>
    %132 = vector.extract_strided_slice %19 {offsets = [0, 96], sizes = [16, 32], strides = [1, 1]} : vector<16x128xbf16> to vector<16x32xbf16>
    %133 = vector.extract_strided_slice %21 {offsets = [0, 96], sizes = [16, 32], strides = [1, 1]} : vector<16x128xbf16> to vector<16x32xbf16>
    %cst_45 = arith.constant dense<0.000000e+00> : vector<16x16xf32>
    %134 = tpu.matmul %130, %131, %cst_45 {dimension_numbers = #tpu.dot_dimension_numbers<[1], [1], [0], [0], [0, 0, 1, 0], [], []>} : vector<16x32xbf16>, vector<16x32xbf16>, vector<16x16xf32> -> vector<16x16xf32>
    %cst_46 = arith.constant dense<0xFF800000> : vector<16xf32>
    %135 = vector.multi_reduction <maximumf>, %134, %cst_46 [1] : vector<16x16xf32> to vector<16xf32>
    %136 = vector.shape_cast %135 : vector<16xf32> to vector<16x1xf32>
    %137 = vector.broadcast %136 : vector<16x1xf32> to vector<16x16xf32>
    %138 = arith.subf %134, %137 : vector<16x16xf32>
    %139 = arith.truncf %138 : vector<16x16xf32> to vector<16x16xbf16>
    %140 = math.exp %139 : vector<16x16xbf16>
    %141 = arith.extf %140 : vector<16x16xbf16> to vector<16x16xf32>
    %cst_47 = arith.constant dense<0.000000e+00> : vector<16xf32>
    %142 = vector.multi_reduction <add>, %141, %cst_47 [1] : vector<16x16xf32> to vector<16xf32>
    %143 = vector.shape_cast %142 : vector<16xf32> to vector<16x1xf32>
    %cst_48 = arith.constant dense<0.000000e+00> : vector<16x32xf32>
    %144 = tpu.matmul %140, %133, %cst_48 {dimension_numbers = #tpu.dot_dimension_numbers<[1], [0], [0], [1], [0, 0, 1, 1], [], []>} : vector<16x16xbf16>, vector<16x32xbf16>, vector<16x32xf32> -> vector<16x32xf32>
    %145 = tpu.reciprocal %143 {approx = true} : vector<16x1xf32> -> vector<16x1xf32>
    %146 = vector.broadcast %145 : vector<16x1xf32> to vector<16x32xf32>
    %147 = arith.mulf %144, %146 : vector<16x32xf32>
    %148 = arith.truncf %147 : vector<16x32xf32> to vector<16x32xbf16>
    %c0_49 = arith.constant 0 : index
    %c96 = arith.constant 96 : index
    %149 = vector.load %arg26[%c0_49, %c96] : memref<16x128xbf16, #tpu.memory_space<vmem>>, vector<16x32xbf16>
    tpu.vector_store %arg26[%c0_49, %c96], %148 {strides = array<i32>} : memref<16x128xbf16, #tpu.memory_space<vmem>>, vector<16x32xbf16>,
    %150 = tpu.transpose %134, [1, 0] : vector<16x16xf32> -> vector<16x16xf32>
    %cst_50 = arith.constant dense<0xFF800000> : vector<16xf32>
    %151 = vector.multi_reduction <maximumf>, %150, %cst_50 [1] : vector<16x16xf32> to vector<16xf32>
    %152 = vector.shape_cast %151 : vector<16xf32> to vector<16x1xf32>
    %153 = vector.broadcast %152 : vector<16x1xf32> to vector<16x16xf32>
    %154 = arith.subf %150, %153 : vector<16x16xf32>
    %155 = arith.truncf %154 : vector<16x16xf32> to vector<16x16xbf16>
    %156 = math.exp %155 : vector<16x16xbf16>
    %157 = arith.extf %156 : vector<16x16xbf16> to vector<16x16xf32>
    %cst_51 = arith.constant dense<0.000000e+00> : vector<16xf32>
    %158 = vector.multi_reduction <add>, %157, %cst_51 [1] : vector<16x16xf32> to vector<16xf32>
    %159 = vector.shape_cast %158 : vector<16xf32> to vector<16x1xf32>
    %cst_52 = arith.constant dense<0.000000e+00> : vector<16x32xf32>
    %160 = tpu.matmul %156, %132, %cst_52 {dimension_numbers = #tpu.dot_dimension_numbers<[1], [0], [0], [1], [0, 0, 1, 1], [], []>} : vector<16x16xbf16>, vector<16x32xbf16>, vector<16x32xf32> -> vector<16x32xf32>
    %161 = tpu.reciprocal %159 {approx = true} : vector<16x1xf32> -> vector<16x1xf32>
    %162 = vector.broadcast %161 : vector<16x1xf32> to vector<16x32xf32>
    %163 = arith.mulf %160, %162 : vector<16x32xf32>
    %164 = arith.truncf %163 : vector<16x32xf32> to vector<16x32xbf16>
    %c0_53 = arith.constant 0 : index
    %c96_54 = arith.constant 96 : index
    %165 = vector.load %arg25[%c0_53, %c96_54] : memref<16x128xbf16, #tpu.memory_space<vmem>>, vector<16x32xbf16>
    tpu.vector_store %arg25[%c0_53, %c96_54], %164 {strides = array<i32>} : memref<16x128xbf16, #tpu.memory_space<vmem>>, vector<16x32xbf16>,
    %c0_55 = arith.constant 0 : index
    %c0_56 = arith.constant 0 : index
    %166 = vector.load %arg25[%c0_55, %c0_56] : memref<16x128xbf16, #tpu.memory_space<vmem>>, vector<16x128xbf16>
    %c0_57 = arith.constant 0 : index
    %c0_58 = arith.constant 0 : index
    %167 = vector.load %arg7[%c0_57, %c0_58] : memref<128x128xbf16, #tpu.memory_space<vmem>>, vector<128x128xbf16>
    %cst_59 = arith.constant dense<0.000000e+00> : vector<16x128xf32>
    %168 = tpu.matmul %166, %167, %cst_59 {dimension_numbers = #tpu.dot_dimension_numbers<[1], [0], [0], [1], [0, 0, 1, 1], [], []>} : vector<16x128xbf16>, vector<128x128xbf16>, vector<16x128xf32> -> vector<16x128xf32>
    %c0_60 = arith.constant 0 : index
    %c0_61 = arith.constant 0 : index
    %169 = vector.load %arg8[%c0_60, %c0_61] : memref<1x128xf32, #tpu.memory_space<vmem>>, vector<1x128xf32>
    %170 = vector.broadcast %169 : vector<1x128xf32> to vector<16x128xf32>
    %171 = arith.addf %168, %170 : vector<16x128xf32>
    %172 = arith.addf %171, %1 : vector<16x128xf32>
    %c0_62 = arith.constant 0 : index
    %c0_63 = arith.constant 0 : index
    %173 = vector.load %arg26[%c0_62, %c0_63] : memref<16x128xbf16, #tpu.memory_space<vmem>>, vector<16x128xbf16>
    %c0_64 = arith.constant 0 : index
    %c0_65 = arith.constant 0 : index
    %174 = vector.load %arg9[%c0_64, %c0_65] : memref<128x128xbf16, #tpu.memory_space<vmem>>, vector<128x128xbf16>
    %cst_66 = arith.constant dense<0.000000e+00> : vector<16x128xf32>
    %175 = tpu.matmul %173, %174, %cst_66 {dimension_numbers = #tpu.dot_dimension_numbers<[1], [0], [0], [1], [0, 0, 1, 1], [], []>} : vector<16x128xbf16>, vector<128x128xbf16>, vector<16x128xf32> -> vector<16x128xf32>
    %c0_67 = arith.constant 0 : index
    %c0_68 = arith.constant 0 : index
    %176 = vector.load %arg10[%c0_67, %c0_68] : memref<1x128xf32, #tpu.memory_space<vmem>>, vector<1x128xf32>
    %177 = vector.broadcast %176 : vector<1x128xf32> to vector<16x128xf32>
    %178 = arith.addf %175, %177 : vector<16x128xf32>
    %179 = arith.addf %178, %3 : vector<16x128xf32>
    %c0_69 = arith.constant 0 : index
    %c0_70 = arith.constant 0 : index
    %180 = vector.load %arg11[%c0_69, %c0_70] : memref<1x128xf32, #tpu.memory_space<vmem>>, vector<1x128xf32>
    %c0_71 = arith.constant 0 : index
    %c0_72 = arith.constant 0 : index
    %181 = vector.load %arg12[%c0_71, %c0_72] : memref<1x128xf32, #tpu.memory_space<vmem>>, vector<1x128xf32>
    %cst_73 = arith.constant dense<0.000000e+00> : vector<16xf32>
    %182 = vector.multi_reduction <add>, %172, %cst_73 [1] : vector<16x128xf32> to vector<16xf32>
    %183 = vector.shape_cast %182 : vector<16xf32> to vector<16x1xf32>
    %cst_74 = arith.constant 1.280000e+02 : f32
    %184 = vector.broadcast %cst_74 : f32 to vector<16x1xf32>
    %185 = arith.divf %183, %184 : vector<16x1xf32>
    %186 = vector.broadcast %185 : vector<16x1xf32> to vector<16x128xf32>
    %187 = arith.subf %172, %186 : vector<16x128xf32>
    %188 = arith.mulf %187, %187 : vector<16x128xf32>
    %cst_75 = arith.constant dense<0.000000e+00> : vector<16xf32>
    %189 = vector.multi_reduction <add>, %188, %cst_75 [1] : vector<16x128xf32> to vector<16xf32>
    %190 = vector.shape_cast %189 : vector<16xf32> to vector<16x1xf32>
    %cst_76 = arith.constant 1.280000e+02 : f32
    %191 = vector.broadcast %cst_76 : f32 to vector<16x1xf32>
    %192 = arith.divf %190, %191 : vector<16x1xf32>
    %193 = vector.broadcast %185 : vector<16x1xf32> to vector<16x128xf32>
    %194 = arith.subf %172, %193 : vector<16x128xf32>
    %cst_77 = arith.constant 9.99999974E-6 : f32
    %195 = vector.broadcast %cst_77 : f32 to vector<16x1xf32>
    %196 = arith.addf %192, %195 : vector<16x1xf32>
    %197 = math.rsqrt %196 : vector<16x1xf32>
    %198 = vector.broadcast %197 : vector<16x1xf32> to vector<16x128xf32>
    %199 = arith.mulf %194, %198 : vector<16x128xf32>
    %200 = vector.broadcast %180 : vector<1x128xf32> to vector<16x128xf32>
    %201 = arith.mulf %199, %200 : vector<16x128xf32>
    %202 = vector.broadcast %181 : vector<1x128xf32> to vector<16x128xf32>
    %203 = arith.addf %201, %202 : vector<16x128xf32>
    %c0_78 = arith.constant 0 : index
    %c0_79 = arith.constant 0 : index
    %204 = vector.load %arg15[%c0_78, %c0_79] : memref<128x256xbf16, #tpu.memory_space<vmem>>, vector<128x256xbf16>
    %205 = arith.truncf %203 : vector<16x128xf32> to vector<16x128xbf16>
    %cst_80 = arith.constant dense<0.000000e+00> : vector<16x256xf32>
    %206 = tpu.matmul %205, %204, %cst_80 {dimension_numbers = #tpu.dot_dimension_numbers<[1], [0], [0], [1], [0, 0, 1, 1], [], []>} : vector<16x128xbf16>, vector<128x256xbf16>, vector<16x256xf32> -> vector<16x256xf32>
    %c0_81 = arith.constant 0 : index
    %c0_82 = arith.constant 0 : index
    %207 = vector.load %arg16[%c0_81, %c0_82] : memref<1x256xf32, #tpu.memory_space<vmem>>, vector<1x256xf32>
    %208 = vector.broadcast %207 : vector<1x256xf32> to vector<16x256xf32>
    %209 = arith.addf %206, %208 : vector<16x256xf32>
    %cst_83 = arith.constant 0.000000e+00 : f32
    %210 = vector.broadcast %cst_83 : f32 to vector<16x256xf32>
    %211 = arith.maximumf %209, %210 : vector<16x256xf32>
    %c0_84 = arith.constant 0 : index
    %c0_85 = arith.constant 0 : index
    %212 = vector.load %arg17[%c0_84, %c0_85] : memref<256x128xbf16, #tpu.memory_space<vmem>>, vector<256x128xbf16>
    %213 = arith.truncf %211 : vector<16x256xf32> to vector<16x256xbf16>
    %cst_86 = arith.constant dense<0.000000e+00> : vector<16x128xf32>
    %214 = tpu.matmul %213, %212, %cst_86 {dimension_numbers = #tpu.dot_dimension_numbers<[1], [0], [0], [1], [0, 0, 1, 1], [], []>} : vector<16x256xbf16>, vector<256x128xbf16>, vector<16x128xf32> -> vector<16x128xf32>
    %c0_87 = arith.constant 0 : index
    %c0_88 = arith.constant 0 : index
    %215 = vector.load %arg18[%c0_87, %c0_88] : memref<1x128xf32, #tpu.memory_space<vmem>>, vector<1x128xf32>
    %216 = vector.broadcast %215 : vector<1x128xf32> to vector<16x128xf32>
    %217 = arith.addf %214, %216 : vector<16x128xf32>
    %218 = arith.addf %217, %172 : vector<16x128xf32>
    %c0_89 = arith.constant 0 : index
    %c0_90 = arith.constant 0 : index
    %c0_91 = arith.constant 0 : index
    %219 = vector.load %arg23[%c0_89, %c0_90, %c0_91] : memref<1x16x128xf32, #tpu.memory_space<vmem>>, vector<1x16x128xf32>
    %220 = vector.shape_cast %219 : vector<1x16x128xf32> to vector<16x128xf32>
    %221 = vector.shape_cast %218 : vector<16x128xf32> to vector<1x16x128xf32>
    tpu.vector_store %arg23[%c0_89, %c0_90, %c0_91], %221 {strides = array<i32>} : memref<1x16x128xf32, #tpu.memory_space<vmem>>, vector<1x16x128xf32>,
    %c0_92 = arith.constant 0 : index
    %c0_93 = arith.constant 0 : index
    %222 = vector.load %arg13[%c0_92, %c0_93] : memref<1x128xf32, #tpu.memory_space<vmem>>, vector<1x128xf32>
    %c0_94 = arith.constant 0 : index
    %c0_95 = arith.constant 0 : index
    %223 = vector.load %arg14[%c0_94, %c0_95] : memref<1x128xf32, #tpu.memory_space<vmem>>, vector<1x128xf32>
    %cst_96 = arith.constant dense<0.000000e+00> : vector<16xf32>
    %224 = vector.multi_reduction <add>, %179, %cst_96 [1] : vector<16x128xf32> to vector<16xf32>
    %225 = vector.shape_cast %224 : vector<16xf32> to vector<16x1xf32>
    %cst_97 = arith.constant 1.280000e+02 : f32
    %226 = vector.broadcast %cst_97 : f32 to vector<16x1xf32>
    %227 = arith.divf %225, %226 : vector<16x1xf32>
    %228 = vector.broadcast %227 : vector<16x1xf32> to vector<16x128xf32>
    %229 = arith.subf %179, %228 : vector<16x128xf32>
    %230 = arith.mulf %229, %229 : vector<16x128xf32>
    %cst_98 = arith.constant dense<0.000000e+00> : vector<16xf32>
    %231 = vector.multi_reduction <add>, %230, %cst_98 [1] : vector<16x128xf32> to vector<16xf32>
    %232 = vector.shape_cast %231 : vector<16xf32> to vector<16x1xf32>
    %cst_99 = arith.constant 1.280000e+02 : f32
    %233 = vector.broadcast %cst_99 : f32 to vector<16x1xf32>
    %234 = arith.divf %232, %233 : vector<16x1xf32>
    %235 = vector.broadcast %227 : vector<16x1xf32> to vector<16x128xf32>
    %236 = arith.subf %179, %235 : vector<16x128xf32>
    %cst_100 = arith.constant 9.99999974E-6 : f32
    %237 = vector.broadcast %cst_100 : f32 to vector<16x1xf32>
    %238 = arith.addf %234, %237 : vector<16x1xf32>
    %239 = math.rsqrt %238 : vector<16x1xf32>
    %240 = vector.broadcast %239 : vector<16x1xf32> to vector<16x128xf32>
    %241 = arith.mulf %236, %240 : vector<16x128xf32>
    %242 = vector.broadcast %222 : vector<1x128xf32> to vector<16x128xf32>
    %243 = arith.mulf %241, %242 : vector<16x128xf32>
    %244 = vector.broadcast %223 : vector<1x128xf32> to vector<16x128xf32>
    %245 = arith.addf %243, %244 : vector<16x128xf32>
    %c0_101 = arith.constant 0 : index
    %c0_102 = arith.constant 0 : index
    %246 = vector.load %arg19[%c0_101, %c0_102] : memref<128x256xbf16, #tpu.memory_space<vmem>>, vector<128x256xbf16>
    %247 = arith.truncf %245 : vector<16x128xf32> to vector<16x128xbf16>
    %cst_103 = arith.constant dense<0.000000e+00> : vector<16x256xf32>
    %248 = tpu.matmul %247, %246, %cst_103 {dimension_numbers = #tpu.dot_dimension_numbers<[1], [0], [0], [1], [0, 0, 1, 1], [], []>} : vector<16x128xbf16>, vector<128x256xbf16>, vector<16x256xf32> -> vector<16x256xf32>
    %c0_104 = arith.constant 0 : index
    %c0_105 = arith.constant 0 : index
    %249 = vector.load %arg20[%c0_104, %c0_105] : memref<1x256xf32, #tpu.memory_space<vmem>>, vector<1x256xf32>
    %250 = vector.broadcast %249 : vector<1x256xf32> to vector<16x256xf32>
    %251 = arith.addf %248, %250 : vector<16x256xf32>
    %cst_106 = arith.constant 0.000000e+00 : f32
    %252 = vector.broadcast %cst_106 : f32 to vector<16x256xf32>
    %253 = arith.maximumf %251, %252 : vector<16x256xf32>
    %c0_107 = arith.constant 0 : index
    %c0_108 = arith.constant 0 : index
    %254 = vector.load %arg21[%c0_107, %c0_108] : memref<256x128xbf16, #tpu.memory_space<vmem>>, vector<256x128xbf16>
    %255 = arith.truncf %253 : vector<16x256xf32> to vector<16x256xbf16>
    %cst_109 = arith.constant dense<0.000000e+00> : vector<16x128xf32>
    %256 = tpu.matmul %255, %254, %cst_109 {dimension_numbers = #tpu.dot_dimension_numbers<[1], [0], [0], [1], [0, 0, 1, 1], [], []>} : vector<16x256xbf16>, vector<256x128xbf16>, vector<16x128xf32> -> vector<16x128xf32>
    %c0_110 = arith.constant 0 : index
    %c0_111 = arith.constant 0 : index
    %257 = vector.load %arg22[%c0_110, %c0_111] : memref<1x128xf32, #tpu.memory_space<vmem>>, vector<1x128xf32>
    %258 = vector.broadcast %257 : vector<1x128xf32> to vector<16x128xf32>
    %259 = arith.addf %256, %258 : vector<16x128xf32>
    %260 = arith.addf %259, %179 : vector<16x128xf32>
    %c0_112 = arith.constant 0 : index
    %c0_113 = arith.constant 0 : index
    %c0_114 = arith.constant 0 : index
    %261 = vector.load %arg24[%c0_112, %c0_113, %c0_114] : memref<1x16x128xf32, #tpu.memory_space<vmem>>, vector<1x16x128xf32>
    %262 = vector.shape_cast %261 : vector<1x16x128xf32> to vector<16x128xf32>
    %263 = vector.shape_cast %260 : vector<16x128xf32> to vector<1x16x128xf32>
    tpu.vector_store %arg24[%c0_112, %c0_113, %c0_114], %263 {strides = array<i32>} : memref<1x16x128xf32, #tpu.memory_space<vmem>>, vector<1x16x128xf32>,
    return
  }
  func.func @transform_0(%arg0: i32) -> (i32, i32, i32) {
    %c0_i32 = arith.constant 0 : i32
    %c0_i32_0 = arith.constant 0 : i32
    %c0_i32_1 = arith.constant 0 : i32
    return %arg0, %c0_i32, %c0_i32_0 : i32, i32, i32
  }
  func.func @transform_1(%arg0: i32) -> (i32, i32, i32) {
    %c0_i32 = arith.constant 0 : i32
    %c0_i32_0 = arith.constant 0 : i32
    %c0_i32_1 = arith.constant 0 : i32
    return %arg0, %c0_i32, %c0_i32_0 : i32, i32, i32
  }
  func.func @transform_2(%arg0: i32) -> (i32, i32) {
    %c0_i32 = arith.constant 0 : i32
    %c0_i32_0 = arith.constant 0 : i32
    %c0_i32_1 = arith.constant 0 : i32
    return %c0_i32, %c0_i32_0 : i32, i32
  }
  func.func @transform_3(%arg0: i32) -> (i32, i32) {
    %c0_i32 = arith.constant 0 : i32
    %c0_i32_0 = arith.constant 0 : i32
    %c0_i32_1 = arith.constant 0 : i32
    return %c0_i32, %c0_i32_0 : i32, i32
  }
  func.func @transform_4(%arg0: i32) -> (i32, i32) {
    %c0_i32 = arith.constant 0 : i32
    %c0_i32_0 = arith.constant 0 : i32
    %c0_i32_1 = arith.constant 0 : i32
    return %c0_i32, %c0_i32_0 : i32, i32
  }
  func.func @transform_5(%arg0: i32) -> (i32, i32) {
    %c0_i32 = arith.constant 0 : i32
    %c0_i32_0 = arith.constant 0 : i32
    %c0_i32_1 = arith.constant 0 : i32
    return %c0_i32, %c0_i32_0 : i32, i32
  }
  func.func @transform_6(%arg0: i32) -> (i32, i32) {
    %c0_i32 = arith.constant 0 : i32
    %c0_i32_0 = arith.constant 0 : i32
    %c0_i32_1 = arith.constant 0 : i32
    return %c0_i32, %c0_i32_0 : i32, i32
  }
  func.func @transform_7(%arg0: i32) -> (i32, i32) {
    %c0_i32 = arith.constant 0 : i32
    %c0_i32_0 = arith.constant 0 : i32
    %c0_i32_1 = arith.constant 0 : i32
    return %c0_i32, %c0_i32_0 : i32, i32
  }
  func.func @transform_8(%arg0: i32) -> (i32, i32) {
    %c0_i32 = arith.constant 0 : i32
    %c0_i32_0 = arith.constant 0 : i32
    %c0_i32_1 = arith.constant 0 : i32
    return %c0_i32, %c0_i32_0 : i32, i32
  }
  func.func @transform_9(%arg0: i32) -> (i32, i32) {
    %c0_i32 = arith.constant 0 : i32
    %c0_i32_0 = arith.constant 0 : i32
    %c0_i32_1 = arith.constant 0 : i32
    return %c0_i32, %c0_i32_0 : i32, i32
  }
  func.func @transform_10(%arg0: i32) -> (i32, i32) {
    %c0_i32 = arith.constant 0 : i32
    %c0_i32_0 = arith.constant 0 : i32
    %c0_i32_1 = arith.constant 0 : i32
    return %c0_i32, %c0_i32_0 : i32, i32
  }
  func.func @transform_11(%arg0: i32) -> (i32, i32) {
    %c0_i32 = arith.constant 0 : i32
    %c0_i32_0 = arith.constant 0 : i32
    %c0_i32_1 = arith.constant 0 : i32
    return %c0_i32, %c0_i32_0 : i32, i32
  }
  func.func @transform_12(%arg0: i32) -> (i32, i32) {
    %c0_i32 = arith.constant 0 : i32
    %c0_i32_0 = arith.constant 0 : i32
    %c0_i32_1 = arith.constant 0 : i32
    return %c0_i32, %c0_i32_0 : i32, i32
  }
  func.func @transform_13(%arg0: i32) -> (i32, i32) {
    %c0_i32 = arith.constant 0 : i32
    %c0_i32_0 = arith.constant 0 : i32
    %c0_i32_1 = arith.constant 0 : i32
    return %c0_i32, %c0_i32_0 : i32, i32
  }
  func.func @transform_14(%arg0: i32) -> (i32, i32) {
    %c0_i32 = arith.constant 0 : i32
    %c0_i32_0 = arith.constant 0 : i32
    %c0_i32_1 = arith.constant 0 : i32
    return %c0_i32, %c0_i32_0 : i32, i32
  }
  func.func @transform_15(%arg0: i32) -> (i32, i32) {
    %c0_i32 = arith.constant 0 : i32
    %c0_i32_0 = arith.constant 0 : i32
    %c0_i32_1 = arith.constant 0 : i32
    return %c0_i32, %c0_i32_0 : i32, i32
  }
  func.func @transform_16(%arg0: i32) -> (i32, i32) {
    %c0_i32 = arith.constant 0 : i32
    %c0_i32_0 = arith.constant 0 : i32
    %c0_i32_1 = arith.constant 0 : i32
    return %c0_i32, %c0_i32_0 : i32, i32
  }
  func.func @transform_17(%arg0: i32) -> (i32, i32) {
    %c0_i32 = arith.constant 0 : i32
    %c0_i32_0 = arith.constant 0 : i32
    %c0_i32_1 = arith.constant 0 : i32
    return %c0_i32, %c0_i32_0 : i32, i32
  }
  func.func @transform_18(%arg0: i32) -> (i32, i32) {
    %c0_i32 = arith.constant 0 : i32
    %c0_i32_0 = arith.constant 0 : i32
    %c0_i32_1 = arith.constant 0 : i32
    return %c0_i32, %c0_i32_0 : i32, i32
  }
  func.func @transform_19(%arg0: i32) -> (i32, i32) {
    %c0_i32 = arith.constant 0 : i32
    %c0_i32_0 = arith.constant 0 : i32
    %c0_i32_1 = arith.constant 0 : i32
    return %c0_i32, %c0_i32_0 : i32, i32
  }
  func.func @transform_20(%arg0: i32) -> (i32, i32) {
    %c0_i32 = arith.constant 0 : i32
    %c0_i32_0 = arith.constant 0 : i32
    %c0_i32_1 = arith.constant 0 : i32
    return %c0_i32, %c0_i32_0 : i32, i32
  }
  func.func @transform_21(%arg0: i32) -> (i32, i32) {
    %c0_i32 = arith.constant 0 : i32
    %c0_i32_0 = arith.constant 0 : i32
    %c0_i32_1 = arith.constant 0 : i32
    return %c0_i32, %c0_i32_0 : i32, i32
  }
  func.func @transform_22(%arg0: i32) -> (i32, i32, i32) {
    %c0_i32 = arith.constant 0 : i32
    %c0_i32_0 = arith.constant 0 : i32
    %c0_i32_1 = arith.constant 0 : i32
    return %arg0, %c0_i32, %c0_i32_0 : i32, i32, i32
  }
  func.func @transform_23(%arg0: i32) -> (i32, i32, i32) {
    %c0_i32 = arith.constant 0 : i32
    %c0_i32_0 = arith.constant 0 : i32
    %c0_i32_1 = arith.constant 0 : i32
    return %arg0, %c0_i32, %c0_i32_0 : i32, i32, i32
  }
}

</mosaic_0001>

<llo_original>
// kernel: tpu_custom_call.1
$region0: #{tpu_custom_call.1}
  #allocation0 [shape = 'u32[]', space=smem, size = 0x4, offset = 0x4, fixed_abs, tag = 'smem constant byte address 0x4 - core index']
  #allocation1 [shape = 'u32[144,128]{1,0:T(1,128)}', space=vmem, size = 0x12000, scoped, tag = 'internal scratch']
  #allocation2 [shape = 'bf16[16,128]{1,0:T(8,128)(2,1)}', space=vmem, size = 0x1000, scoped, tag = 'scratch operand']
  #allocation3 [shape = 'bf16[16,128]{1,0:T(8,128)(2,1)}', space=vmem, size = 0x1000, scoped, tag = 'scratch operand']
  %s0 = inlined_call_operand.hbm [shape: f32[2,16,128], index: 0, kind: input, shape index: {}]
  %s1 = inlined_call_operand.hbm [shape: f32[2,16,128], index: 1, kind: input, shape index: {}]
  %s2 = inlined_call_operand.hbm [shape: bf16[128,256], index: 2, kind: input, shape index: {}]
  %s3 = inlined_call_operand.vmem [shape: f32[1,256], index: 3, kind: input, shape index: {}]
  %s4 = inlined_call_operand.hbm [shape: bf16[128,256], index: 4, kind: input, shape index: {}]
  %s5 = inlined_call_operand.vmem [shape: f32[1,256], index: 5, kind: input, shape index: {}]
  %s6 = inlined_call_operand.hbm [shape: bf16[128,128], index: 6, kind: input, shape index: {}]
  %s7 = inlined_call_operand.vmem [shape: f32[1,128], index: 7, kind: input, shape index: {}]
  %s8 = inlined_call_operand.hbm [shape: bf16[128,128], index: 8, kind: input, shape index: {}]
  %s9 = inlined_call_operand.vmem [shape: f32[1,128], index: 9, kind: input, shape index: {}]
  %s10 = inlined_call_operand.vmem [shape: f32[1,128], index: 10, kind: input, shape index: {}]
  %s11 = inlined_call_operand.vmem [shape: f32[1,128], index: 11, kind: input, shape index: {}]
  %s12 = inlined_call_operand.vmem [shape: f32[1,128], index: 12, kind: input, shape index: {}]
  %s13 = inlined_call_operand.vmem [shape: f32[1,128], index: 13, kind: input, shape index: {}]
  %s14 = inlined_call_operand.hbm [shape: bf16[128,256], index: 14, kind: input, shape index: {}]
  %s15 = inlined_call_operand.vmem [shape: f32[1,256], index: 15, kind: input, shape index: {}]
  %s16 = inlined_call_operand.hbm [shape: bf16[256,128], index: 16, kind: input, shape index: {}]
  %s17 = inlined_call_operand.vmem [shape: f32[1,128], index: 17, kind: input, shape index: {}]
  %s18 = inlined_call_operand.hbm [shape: bf16[128,256], index: 18, kind: input, shape index: {}]
  %s19 = inlined_call_operand.vmem [shape: f32[1,256], index: 19, kind: input, shape index: {}]
  %s20 = inlined_call_operand.hbm [shape: bf16[256,128], index: 20, kind: input, shape index: {}]
  %s21 = inlined_call_operand.vmem [shape: f32[1,128], index: 21, kind: input, shape index: {}]
  %s22 = inlined_call_operand.hbm [shape: f32[2,16,128], index: 22, kind: output, shape index: {0}]
  %s23 = inlined_call_operand.hbm [shape: f32[2,16,128], index: 23, kind: output, shape index: {1}]
  %24 = xla_tuple %s22, %s23
  %s25 = sld [smem:[#allocation0]]
  $region169: #{tpu_custom_call.1} parent=0
    _
  %s27 = ssub.s32 1, %s25
  %s28 = scalar_select 0, %s27, %s25
  $region1: #{tpu_custom_call.1} parent=0
    #allocation4 [shape = 'u8[16384]{0}', space=vmem, size = 0x4000, scoped, tag = 'input window, operand 0']
    #allocation5 [shape = 's32[2]{0}', space=sflag, size = 0x8, scoped, tag = 'scoped memory for tpu_custom_call.1']
    #allocation6 [shape = 's32[2]{0}', space=sflag, size = 0x8, scoped, tag = 'scoped memory for tpu_custom_call.1']
    #allocation7 [shape = 'u8[16384]{0}', space=vmem, size = 0x4000, scoped, tag = 'input window, operand 1']
    #allocation8 [shape = 's32[2]{0}', space=sflag, size = 0x8, scoped, tag = 'scoped memory for tpu_custom_call.1']
    #allocation9 [shape = 'u8[65536]{0}', space=vmem, size = 0x10000, scoped, tag = 'input window, operand 2, single buffered']
    #allocation10 [shape = 'u8[65536]{0}', space=vmem, size = 0x10000, scoped, tag = 'input window, operand 4, single buffered']
    #allocation11 [shape = 's32[1]{0}', space=sflag, size = 0x4, scoped, tag = 'scoped memory for tpu_custom_call.1']
    #allocation12 [shape = 'u8[32768]{0}', space=vmem, size = 0x8000, scoped, tag = 'input window, operand 6, single buffered']
    #allocation13 [shape = 'u8[32768]{0}', space=vmem, size = 0x8000, scoped, tag = 'input window, operand 8, single buffered']
    #allocation14 [shape = 's32[1]{0}', space=sflag, size = 0x4, scoped, tag = 'scoped memory for tpu_custom_call.1']
    #allocation15 [shape = 'u8[65536]{0}', space=vmem, size = 0x10000, scoped, tag = 'input window, operand 14, single buffered']
    #allocation16 [shape = 'u8[65536]{0}', space=vmem, size = 0x10000, scoped, tag = 'input window, operand 16, single buffered']
    #allocation17 [shape = 's32[1]{0}', space=sflag, size = 0x4, scoped, tag = 'scoped memory for tpu_custom_call.1']
    #allocation18 [shape = 'u8[65536]{0}', space=vmem, size = 0x10000, scoped, tag = 'input window, operand 18, single buffered']
    #allocation19 [shape = 'u8[65536]{0}', space=vmem, size = 0x10000, scoped, tag = 'input window, operand 20, single buffered']
    #allocation20 [shape = 's32[1]{0}', space=sflag, size = 0x4, scoped, tag = 'scoped memory for tpu_custom_call.1']
    #allocation21 [shape = 'u8[16384]{0}', space=vmem, size = 0x4000, scoped, tag = 'output window, operand 0']
    #allocation22 [shape = 'u8[16384]{0}', space=vmem, size = 0x4000, scoped, tag = 'output window, operand 1']
    #allocation23 [shape = 's32[2]{0}', space=sflag, size = 0x8, scoped, tag = 'scoped memory for tpu_custom_call.1']
    %29 = vsyncpa [#allocation5], 0
    %s30 = scalar_lea.sflag [#allocation5], 1
    %31 = vsyncpa %s30, 0
    %32 = vsyncpa [#allocation8], 0
    %s33 = scalar_lea.sflag [#allocation8], 1
    %34 = vsyncpa %s33, 0
    %35 = vsyncpa [#allocation11], 0
    %36 = vsyncpa [#allocation14], 0
    %37 = vsyncpa [#allocation17], 0
    %38 = vsyncpa [#allocation20], 0
    %39 = vsyncpa [#allocation6], 0
    %s40 = scalar_lea.sflag [#allocation6], 1
    %41 = vsyncpa %s40, 0
    %42 = vsyncpa [#allocation23], 0
    %s43 = scalar_lea.sflag [#allocation23], 1
    %44 = vsyncpa %s43, 0
    loop: start=0, step=1, limit=4
    $region2: #{tpu_custom_call.1} parent=1 // loop_pre_header
      _
    $region3: #{tpu_custom_call.1} parent=1 // loop_header
      %s46 = sphi 0, %s50
      %p47 = scmp.ge.s32.totalorder %s46, 4
      %s56 = sphi 0, %s58
      %s59 = sphi 0, %s56
      %s60 = sphi 0, %s59
      %s76 = sphi 0, %s60
      %s82 = sphi 0, %s84
      %s85 = sphi 0, %s82
      %s86 = sphi 0, %s85
      %s102 = sphi 0, %s86
      %s106 = sphi 0, %s106
      %s108 = sphi 0, %s106
      %s109 = sphi 0, %s108
      %s123 = sphi 0, %s109
      %s127 = sphi 0, %s127
      %s129 = sphi 0, %s127
      %s130 = sphi 0, %s129
      %s144 = sphi 0, %s130
      %s148 = sphi 0, %s148
      %s150 = sphi 0, %s148
      %s151 = sphi 0, %s150
      %s165 = sphi 0, %s151
      %s169 = sphi 0, %s169
      %s171 = sphi 0, %s169
      %s172 = sphi 0, %s171
      %s186 = sphi 0, %s172
      %s190 = sphi 0, %s190
      %s192 = sphi 0, %s190
      %s193 = sphi 0, %s192
      %s207 = sphi 0, %s193
      %s211 = sphi 0, %s211
      %s213 = sphi 0, %s211
      %s214 = sphi 0, %s213
      %s228 = sphi 0, %s214
      %s232 = sphi 0, %s232
      %s234 = sphi 0, %s232
      %s235 = sphi 0, %s234
      %s249 = sphi 0, %s235
      %s253 = sphi 0, %s253
      %s255 = sphi 0, %s253
      %s256 = sphi 0, %s255
      %s270 = sphi 0, %s256
      %s274 = sphi 0, %s274
      %s276 = sphi 0, %s274
      %s277 = sphi 0, %s276
      %s291 = sphi 0, %s277
      %s295 = sphi 0, %s295
      %s297 = sphi 0, %s295
      %s298 = sphi 0, %s297
      %s312 = sphi 0, %s298
      %s316 = sphi 0, %s316
      %s318 = sphi 0, %s316
      %s319 = sphi 0, %s318
      %s333 = sphi 0, %s319
      %s337 = sphi 0, %s337
      %s339 = sphi 0, %s337
      %s340 = sphi 0, %s339
      %s354 = sphi 0, %s340
      %s358 = sphi 0, %s358
      %s360 = sphi 0, %s358
      %s361 = sphi 0, %s360
      %s375 = sphi 0, %s361
      %s379 = sphi 0, %s379
      %s381 = sphi 0, %s379
      %s382 = sphi 0, %s381
      %s396 = sphi 0, %s382
      %s400 = sphi 0, %s400
      %s402 = sphi 0, %s400
      %s403 = sphi 0, %s402
      %s417 = sphi 0, %s403
      %s421 = sphi 0, %s421
      %s423 = sphi 0, %s421
      %s424 = sphi 0, %s423
      %s438 = sphi 0, %s424
      %s442 = sphi 0, %s442
      %s444 = sphi 0, %s442
      %s445 = sphi 0, %s444
      %s459 = sphi 0, %s445
      %s463 = sphi 0, %s463
      %s465 = sphi 0, %s463
      %s466 = sphi 0, %s465
      %s480 = sphi 0, %s466
      %s484 = sphi 0, %s484
      %s486 = sphi 0, %s484
      %s487 = sphi 0, %s486
      %s501 = sphi 0, %s487
      %s505 = sphi 0, %s505
      %s507 = sphi 0, %s505
      %s508 = sphi 0, %s507
      %s522 = sphi 0, %s508
      %s528 = sphi 0, %s530
      %s531 = sphi 0, %s528
      %s532 = sphi 0, %s531
      %s548 = sphi 0, %s532
      %s554 = sphi 0, %s556
      %s557 = sphi 0, %s554
      %s558 = sphi 0, %s557
      %s574 = sphi 0, %s558
    $region4: #{tpu_custom_call.1} parent=1 // loop_header_branch
      %49 = sbr.rel (%p47) target = $region8
    $region5: #{tpu_custom_call.1} parent=1 // loop_body
      %s51 = ssub.s32 %s46, 1
      %s52 = ssub.s32 %s46, 2
      %s53 = sadd.s32 %s46, 1
      %s54 = ssub.s32 %s46, %s53
      %p55 = scmp.eq.s32.totalorder %s54, 0
      %s57 = sadd.s32 %s56, 1
      %s58 = scalar_select %p55, %s56, %s57
      %p61 = pneg %p55
      %p62 = scmp.eq.s32.totalorder %s46, 1
      %p63 = por %p61, %p62
      %p64 = scmp.ne.s32.totalorder %s56, %s59
      %p65 = scmp.eq.s32.totalorder %s46, 0
      %p66 = por %p64, %p65
      %p67 = scmp.ne.s32.totalorder %s56, %s59
      %p68 = scmp.eq.s32.totalorder %s51, 1
      %p69 = por %p67, %p68
      %p70 = scmp.ne.s32.totalorder %s59, %s60
      %p71 = scmp.eq.s32.totalorder %s51, 0
      %p72 = por %p70, %p71
      %p73 = scmp.ne.s32.totalorder %s59, %s60
      %p74 = scmp.eq.s32.totalorder %s52, 1
      %p75 = por %p73, %p74
      %p77 = scmp.ne.s32.totalorder %s60, %s76
      %p78 = scmp.eq.s32.totalorder %s52, 0
      %p79 = por %p77, %p78
      %s80 = ssub.s32 %s46, %s53
      %p81 = scmp.eq.s32.totalorder %s80, 0
      %s83 = sadd.s32 %s82, 1
      %s84 = scalar_select %p81, %s82, %s83
      %p87 = pneg %p81
      %p88 = scmp.eq.s32.totalorder %s46, 1
      %p89 = por %p87, %p88
      %p90 = scmp.ne.s32.totalorder %s82, %s85
      %p91 = scmp.eq.s32.totalorder %s46, 0
      %p92 = por %p90, %p91
      %p93 = scmp.ne.s32.totalorder %s82, %s85
      %p94 = scmp.eq.s32.totalorder %s51, 1
      %p95 = por %p93, %p94
      %p96 = scmp.ne.s32.totalorder %s85, %s86
      %p97 = scmp.eq.s32.totalorder %s51, 0
      %p98 = por %p96, %p97
      %p99 = scmp.ne.s32.totalorder %s85, %s86
      %p100 = scmp.eq.s32.totalorder %s52, 1
      %p101 = por %p99, %p100
      %p103 = scmp.ne.s32.totalorder %s86, %s102
      %p104 = scmp.eq.s32.totalorder %s52, 0
      %p105 = por %p103, %p104
      %s107 = sadd.s32 %s106, 1
      %p110 = scmp.eq.s32.totalorder %s46, 1
      %p111 = scmp.ne.s32.totalorder %s106, %s108
      %p112 = scmp.eq.s32.totalorder %s46, 0
      %p113 = por %p111, %p112
      %p114 = scmp.ne.s32.totalorder %s106, %s108
      %p115 = scmp.eq.s32.totalorder %s51, 1
      %p116 = por %p114, %p115
      %p117 = scmp.ne.s32.totalorder %s108, %s109
      %p118 = scmp.eq.s32.totalorder %s51, 0
      %p119 = por %p117, %p118
      %p120 = scmp.ne.s32.totalorder %s108, %s109
      %p121 = scmp.eq.s32.totalorder %s52, 1
      %p122 = por %p120, %p121
      %p124 = scmp.ne.s32.totalorder %s109, %s123
      %p125 = scmp.eq.s32.totalorder %s52, 0
      %p126 = por %p124, %p125
      %s128 = sadd.s32 %s127, 1
      %p131 = scmp.eq.s32.totalorder %s46, 1
      %p132 = scmp.ne.s32.totalorder %s127, %s129
      %p133 = scmp.eq.s32.totalorder %s46, 0
      %p134 = por %p132, %p133
      %p135 = scmp.ne.s32.totalorder %s127, %s129
      %p136 = scmp.eq.s32.totalorder %s51, 1
      %p137 = por %p135, %p136
      %p138 = scmp.ne.s32.totalorder %s129, %s130
      %p139 = scmp.eq.s32.totalorder %s51, 0
      %p140 = por %p138, %p139
      %p141 = scmp.ne.s32.totalorder %s129, %s130
      %p142 = scmp.eq.s32.totalorder %s52, 1
      %p143 = por %p141, %p142
      %p145 = scmp.ne.s32.totalorder %s130, %s144
      %p146 = scmp.eq.s32.totalorder %s52, 0
      %p147 = por %p145, %p146
      %s149 = sadd.s32 %s148, 1
      %p152 = scmp.eq.s32.totalorder %s46, 1
      %p153 = scmp.ne.s32.totalorder %s148, %s150
      %p154 = scmp.eq.s32.totalorder %s46, 0
      %p155 = por %p153, %p154
      %p156 = scmp.ne.s32.totalorder %s148, %s150
      %p157 = scmp.eq.s32.totalorder %s51, 1
      %p158 = por %p156, %p157
      %p159 = scmp.ne.s32.totalorder %s150, %s151
      %p160 = scmp.eq.s32.totalorder %s51, 0
      %p161 = por %p159, %p160
      %p162 = scmp.ne.s32.totalorder %s150, %s151
      %p163 = scmp.eq.s32.totalorder %s52, 1
      %p164 = por %p162, %p163
      %p166 = scmp.ne.s32.totalorder %s151, %s165
      %p167 = scmp.eq.s32.totalorder %s52, 0
      %p168 = por %p166, %p167
      %s170 = sadd.s32 %s169, 1
      %p173 = scmp.eq.s32.totalorder %s46, 1
      %p174 = scmp.ne.s32.totalorder %s169, %s171
      %p175 = scmp.eq.s32.totalorder %s46, 0
      %p176 = por %p174, %p175
      %p177 = scmp.ne.s32.totalorder %s169, %s171
      %p178 = scmp.eq.s32.totalorder %s51, 1
      %p179 = por %p177, %p178
      %p180 = scmp.ne.s32.totalorder %s171, %s172
      %p181 = scmp.eq.s32.totalorder %s51, 0
      %p182 = por %p180, %p181
      %p183 = scmp.ne.s32.totalorder %s171, %s172
      %p184 = scmp.eq.s32.totalorder %s52, 1
      %p185 = por %p183, %p184
      %p187 = scmp.ne.s32.totalorder %s172, %s186
      %p188 = scmp.eq.s32.totalorder %s52, 0
      %p189 = por %p187, %p188
      %s191 = sadd.s32 %s190, 1
      %p194 = scmp.eq.s32.totalorder %s46, 1
      %p195 = scmp.ne.s32.totalorder %s190, %s192
      %p196 = scmp.eq.s32.totalorder %s46, 0
      %p197 = por %p195, %p196
      %p198 = scmp.ne.s32.totalorder %s190, %s192
      %p199 = scmp.eq.s32.totalorder %s51, 1
      %p200 = por %p198, %p199
      %p201 = scmp.ne.s32.totalorder %s192, %s193
      %p202 = scmp.eq.s32.totalorder %s51, 0
      %p203 = por %p201, %p202
      %p204 = scmp.ne.s32.totalorder %s192, %s193
      %p205 = scmp.eq.s32.totalorder %s52, 1
      %p206 = por %p204, %p205
      %p208 = scmp.ne.s32.totalorder %s193, %s207
      %p209 = scmp.eq.s32.totalorder %s52, 0
      %p210 = por %p208, %p209
      %s212 = sadd.s32 %s211, 1
      %p215 = scmp.eq.s32.totalorder %s46, 1
      %p216 = scmp.ne.s32.totalorder %s211, %s213
      %p217 = scmp.eq.s32.totalorder %s46, 0
      %p218 = por %p216, %p217
      %p219 = scmp.ne.s32.totalorder %s211, %s213
      %p220 = scmp.eq.s32.totalorder %s51, 1
      %p221 = por %p219, %p220
      %p222 = scmp.ne.s32.totalorder %s213, %s214
      %p223 = scmp.eq.s32.totalorder %s51, 0
      %p224 = por %p222, %p223
      %p225 = scmp.ne.s32.totalorder %s213, %s214
      %p226 = scmp.eq.s32.totalorder %s52, 1
      %p227 = por %p225, %p226
      %p229 = scmp.ne.s32.totalorder %s214, %s228
      %p230 = scmp.eq.s32.totalorder %s52, 0
      %p231 = por %p229, %p230
      %s233 = sadd.s32 %s232, 1
      %p236 = scmp.eq.s32.totalorder %s46, 1
      %p237 = scmp.ne.s32.totalorder %s232, %s234
      %p238 = scmp.eq.s32.totalorder %s46, 0
      %p239 = por %p237, %p238
      %p240 = scmp.ne.s32.totalorder %s232, %s234
      %p241 = scmp.eq.s32.totalorder %s51, 1
      %p242 = por %p240, %p241
      %p243 = scmp.ne.s32.totalorder %s234, %s235
      %p244 = scmp.eq.s32.totalorder %s51, 0
      %p245 = por %p243, %p244
      %p246 = scmp.ne.s32.totalorder %s234, %s235
      %p247 = scmp.eq.s32.totalorder %s52, 1
      %p248 = por %p246, %p247
      %p250 = scmp.ne.s32.totalorder %s235, %s249
      %p251 = scmp.eq.s32.totalorder %s52, 0
      %p252 = por %p250, %p251
      %s254 = sadd.s32 %s253, 1
      %p257 = scmp.eq.s32.totalorder %s46, 1
      %p258 = scmp.ne.s32.totalorder %s253, %s255
      %p259 = scmp.eq.s32.totalorder %s46, 0
      %p260 = por %p258, %p259
      %p261 = scmp.ne.s32.totalorder %s253, %s255
      %p262 = scmp.eq.s32.totalorder %s51, 1
      %p263 = por %p261, %p262
      %p264 = scmp.ne.s32.totalorder %s255, %s256
      %p265 = scmp.eq.s32.totalorder %s51, 0
      %p266 = por %p264, %p265
      %p267 = scmp.ne.s32.totalorder %s255, %s256
      %p268 = scmp.eq.s32.totalorder %s52, 1
      %p269 = por %p267, %p268
      %p271 = scmp.ne.s32.totalorder %s256, %s270
      %p272 = scmp.eq.s32.totalorder %s52, 0
      %p273 = por %p271, %p272
      %s275 = sadd.s32 %s274, 1
      %p278 = scmp.eq.s32.totalorder %s46, 1
      %p279 = scmp.ne.s32.totalorder %s274, %s276
      %p280 = scmp.eq.s32.totalorder %s46, 0
      %p281 = por %p279, %p280
      %p282 = scmp.ne.s32.totalorder %s274, %s276
      %p283 = scmp.eq.s32.totalorder %s51, 1
      %p284 = por %p282, %p283
      %p285 = scmp.ne.s32.totalorder %s276, %s277
      %p286 = scmp.eq.s32.totalorder %s51, 0
      %p287 = por %p285, %p286
      %p288 = scmp.ne.s32.totalorder %s276, %s277
      %p289 = scmp.eq.s32.totalorder %s52, 1
      %p290 = por %p288, %p289
      %p292 = scmp.ne.s32.totalorder %s277, %s291
      %p293 = scmp.eq.s32.totalorder %s52, 0
      %p294 = por %p292, %p293
      %s296 = sadd.s32 %s295, 1
      %p299 = scmp.eq.s32.totalorder %s46, 1
      %p300 = scmp.ne.s32.totalorder %s295, %s297
      %p301 = scmp.eq.s32.totalorder %s46, 0
      %p302 = por %p300, %p301
      %p303 = scmp.ne.s32.totalorder %s295, %s297
      %p304 = scmp.eq.s32.totalorder %s51, 1
      %p305 = por %p303, %p304
      %p306 = scmp.ne.s32.totalorder %s297, %s298
      %p307 = scmp.eq.s32.totalorder %s51, 0
      %p308 = por %p306, %p307
      %p309 = scmp.ne.s32.totalorder %s297, %s298
      %p310 = scmp.eq.s32.totalorder %s52, 1
      %p311 = por %p309, %p310
      %p313 = scmp.ne.s32.totalorder %s298, %s312
      %p314 = scmp.eq.s32.totalorder %s52, 0
      %p315 = por %p313, %p314
      %s317 = sadd.s32 %s316, 1
      %p320 = scmp.eq.s32.totalorder %s46, 1
      %p321 = scmp.ne.s32.totalorder %s316, %s318
      %p322 = scmp.eq.s32.totalorder %s46, 0
      %p323 = por %p321, %p322
      %p324 = scmp.ne.s32.totalorder %s316, %s318
      %p325 = scmp.eq.s32.totalorder %s51, 1
      %p326 = por %p324, %p325
      %p327 = scmp.ne.s32.totalorder %s318, %s319
      %p328 = scmp.eq.s32.totalorder %s51, 0
      %p329 = por %p327, %p328
      %p330 = scmp.ne.s32.totalorder %s318, %s319
      %p331 = scmp.eq.s32.totalorder %s52, 1
      %p332 = por %p330, %p331
      %p334 = scmp.ne.s32.totalorder %s319, %s333
      %p335 = scmp.eq.s32.totalorder %s52, 0
      %p336 = por %p334, %p335
      %s338 = sadd.s32 %s337, 1
      %p341 = scmp.eq.s32.totalorder %s46, 1
      %p342 = scmp.ne.s32.totalorder %s337, %s339
      %p343 = scmp.eq.s32.totalorder %s46, 0
      %p344 = por %p342, %p343
      %p345 = scmp.ne.s32.totalorder %s337, %s339
      %p346 = scmp.eq.s32.totalorder %s51, 1
      %p347 = por %p345, %p346
      %p348 = scmp.ne.s32.totalorder %s339, %s340
      %p349 = scmp.eq.s32.totalorder %s51, 0
      %p350 = por %p348, %p349
      %p351 = scmp.ne.s32.totalorder %s339, %s340
      %p352 = scmp.eq.s32.totalorder %s52, 1
      %p353 = por %p351, %p352
      %p355 = scmp.ne.s32.totalorder %s340, %s354
      %p356 = scmp.eq.s32.totalorder %s52, 0
      %p357 = por %p355, %p356
      %s359 = sadd.s32 %s358, 1
      %p362 = scmp.eq.s32.totalorder %s46, 1
      %p363 = scmp.ne.s32.totalorder %s358, %s360
      %p364 = scmp.eq.s32.totalorder %s46, 0
      %p365 = por %p363, %p364
      %p366 = scmp.ne.s32.totalorder %s358, %s360
      %p367 = scmp.eq.s32.totalorder %s51, 1
      %p368 = por %p366, %p367
      %p369 = scmp.ne.s32.totalorder %s360, %s361
      %p370 = scmp.eq.s32.totalorder %s51, 0
      %p371 = por %p369, %p370
      %p372 = scmp.ne.s32.totalorder %s360, %s361
      %p373 = scmp.eq.s32.totalorder %s52, 1
      %p374 = por %p372, %p373
      %p376 = scmp.ne.s32.totalorder %s361, %s375
      %p377 = scmp.eq.s32.totalorder %s52, 0
      %p378 = por %p376, %p377
      %s380 = sadd.s32 %s379, 1
      %p383 = scmp.eq.s32.totalorder %s46, 1
      %p384 = scmp.ne.s32.totalorder %s379, %s381
      %p385 = scmp.eq.s32.totalorder %s46, 0
      %p386 = por %p384, %p385
      %p387 = scmp.ne.s32.totalorder %s379, %s381
      %p388 = scmp.eq.s32.totalorder %s51, 1
      %p389 = por %p387, %p388
      %p390 = scmp.ne.s32.totalorder %s381, %s382
      %p391 = scmp.eq.s32.totalorder %s51, 0
      %p392 = por %p390, %p391
      %p393 = scmp.ne.s32.totalorder %s381, %s382
      %p394 = scmp.eq.s32.totalorder %s52, 1
      %p395 = por %p393, %p394
      %p397 = scmp.ne.s32.totalorder %s382, %s396
      %p398 = scmp.eq.s32.totalorder %s52, 0
      %p399 = por %p397, %p398
      %s401 = sadd.s32 %s400, 1
      %p404 = scmp.eq.s32.totalorder %s46, 1
      %p405 = scmp.ne.s32.totalorder %s400, %s402
      %p406 = scmp.eq.s32.totalorder %s46, 0
      %p407 = por %p405, %p406
      %p408 = scmp.ne.s32.totalorder %s400, %s402
      %p409 = scmp.eq.s32.totalorder %s51, 1
      %p410 = por %p408, %p409
      %p411 = scmp.ne.s32.totalorder %s402, %s403
      %p412 = scmp.eq.s32.totalorder %s51, 0
      %p413 = por %p411, %p412
      %p414 = scmp.ne.s32.totalorder %s402, %s403
      %p415 = scmp.eq.s32.totalorder %s52, 1
      %p416 = por %p414, %p415
      %p418 = scmp.ne.s32.totalorder %s403, %s417
      %p419 = scmp.eq.s32.totalorder %s52, 0
      %p420 = por %p418, %p419
      %s422 = sadd.s32 %s421, 1
      %p425 = scmp.eq.s32.totalorder %s46, 1
      %p426 = scmp.ne.s32.totalorder %s421, %s423
      %p427 = scmp.eq.s32.totalorder %s46, 0
      %p428 = por %p426, %p427
      %p429 = scmp.ne.s32.totalorder %s421, %s423
      %p430 = scmp.eq.s32.totalorder %s51, 1
      %p431 = por %p429, %p430
      %p432 = scmp.ne.s32.totalorder %s423, %s424
      %p433 = scmp.eq.s32.totalorder %s51, 0
      %p434 = por %p432, %p433
      %p435 = scmp.ne.s32.totalorder %s423, %s424
      %p436 = scmp.eq.s32.totalorder %s52, 1
      %p437 = por %p435, %p436
      %p439 = scmp.ne.s32.totalorder %s424, %s438
      %p440 = scmp.eq.s32.totalorder %s52, 0
      %p441 = por %p439, %p440
      %s443 = sadd.s32 %s442, 1
      %p446 = scmp.eq.s32.totalorder %s46, 1
      %p447 = scmp.ne.s32.totalorder %s442, %s444
      %p448 = scmp.eq.s32.totalorder %s46, 0
      %p449 = por %p447, %p448
      %p450 = scmp.ne.s32.totalorder %s442, %s444
      %p451 = scmp.eq.s32.totalorder %s51, 1
      %p452 = por %p450, %p451
      %p453 = scmp.ne.s32.totalorder %s444, %s445
      %p454 = scmp.eq.s32.totalorder %s51, 0
      %p455 = por %p453, %p454
      %p456 = scmp.ne.s32.totalorder %s444, %s445
      %p457 = scmp.eq.s32.totalorder %s52, 1
      %p458 = por %p456, %p457
      %p460 = scmp.ne.s32.totalorder %s445, %s459
      %p461 = scmp.eq.s32.totalorder %s52, 0
      %p462 = por %p460, %p461
      %s464 = sadd.s32 %s463, 1
      %p467 = scmp.eq.s32.totalorder %s46, 1
      %p468 = scmp.ne.s32.totalorder %s463, %s465
      %p469 = scmp.eq.s32.totalorder %s46, 0
      %p470 = por %p468, %p469
      %p471 = scmp.ne.s32.totalorder %s463, %s465
      %p472 = scmp.eq.s32.totalorder %s51, 1
      %p473 = por %p471, %p472
      %p474 = scmp.ne.s32.totalorder %s465, %s466
      %p475 = scmp.eq.s32.totalorder %s51, 0
      %p476 = por %p474, %p475
      %p477 = scmp.ne.s32.totalorder %s465, %s466
      %p478 = scmp.eq.s32.totalorder %s52, 1
      %p479 = por %p477, %p478
      %p481 = scmp.ne.s32.totalorder %s466, %s480
      %p482 = scmp.eq.s32.totalorder %s52, 0
      %p483 = por %p481, %p482
      %s485 = sadd.s32 %s484, 1
      %p488 = scmp.eq.s32.totalorder %s46, 1
      %p489 = scmp.ne.s32.totalorder %s484, %s486
      %p490 = scmp.eq.s32.totalorder %s46, 0
      %p491 = por %p489, %p490
      %p492 = scmp.ne.s32.totalorder %s484, %s486
      %p493 = scmp.eq.s32.totalorder %s51, 1
      %p494 = por %p492, %p493
      %p495 = scmp.ne.s32.totalorder %s486, %s487
      %p496 = scmp.eq.s32.totalorder %s51, 0
      %p497 = por %p495, %p496
      %p498 = scmp.ne.s32.totalorder %s486, %s487
      %p499 = scmp.eq.s32.totalorder %s52, 1
      %p500 = por %p498, %p499
      %p502 = scmp.ne.s32.totalorder %s487, %s501
      %p503 = scmp.eq.s32.totalorder %s52, 0
      %p504 = por %p502, %p503
      %s506 = sadd.s32 %s505, 1
      %p509 = scmp.eq.s32.totalorder %s46, 1
      %p510 = scmp.ne.s32.totalorder %s505, %s507
      %p511 = scmp.eq.s32.totalorder %s46, 0
      %p512 = por %p510, %p511
      %p513 = scmp.ne.s32.totalorder %s505, %s507
      %p514 = scmp.eq.s32.totalorder %s51, 1
      %p515 = por %p513, %p514
      %p516 = scmp.ne.s32.totalorder %s507, %s508
      %p517 = scmp.eq.s32.totalorder %s51, 0
      %p518 = por %p516, %p517
      %p519 = scmp.ne.s32.totalorder %s507, %s508
      %p520 = scmp.eq.s32.totalorder %s52, 1
      %p521 = por %p519, %p520
      %p523 = scmp.ne.s32.totalorder %s508, %s522
      %p524 = scmp.eq.s32.totalorder %s52, 0
      %p525 = por %p523, %p524
      %s526 = ssub.s32 %s46, %s53
      %p527 = scmp.eq.s32.totalorder %s526, 0
      %s529 = sadd.s32 %s528, 1
      %s530 = scalar_select %p527, %s528, %s529
      %p533 = pneg %p527
      %p534 = scmp.eq.s32.totalorder %s46, 1
      %p535 = por %p533, %p534
      %p536 = scmp.ne.s32.totalorder %s528, %s531
      %p537 = scmp.eq.s32.totalorder %s46, 0
      %p538 = por %p536, %p537
      %p539 = scmp.ne.s32.totalorder %s528, %s531
      %p540 = scmp.eq.s32.totalorder %s51, 1
      %p541 = por %p539, %p540
      %p542 = scmp.ne.s32.totalorder %s531, %s532
      %p543 = scmp.eq.s32.totalorder %s51, 0
      %p544 = por %p542, %p543
      %p545 = scmp.ne.s32.totalorder %s531, %s532
      %p546 = scmp.eq.s32.totalorder %s52, 1
      %p547 = por %p545, %p546
      %p549 = scmp.ne.s32.totalorder %s532, %s548
      %p550 = scmp.eq.s32.totalorder %s52, 0
      %p551 = por %p549, %p550
      %s552 = ssub.s32 %s46, %s53
      %p553 = scmp.eq.s32.totalorder %s552, 0
      %s555 = sadd.s32 %s554, 1
      %s556 = scalar_select %p553, %s554, %s555
      %p559 = pneg %p553
      %p560 = scmp.eq.s32.totalorder %s46, 1
      %p561 = por %p559, %p560
      %p562 = scmp.ne.s32.totalorder %s554, %s557
      %p563 = scmp.eq.s32.totalorder %s46, 0
      %p564 = por %p562, %p563
      %p565 = scmp.ne.s32.totalorder %s554, %s557
      %p566 = scmp.eq.s32.totalorder %s51, 1
      %p567 = por %p565, %p566
      %p568 = scmp.ne.s32.totalorder %s557, %s558
      %p569 = scmp.eq.s32.totalorder %s51, 0
      %p570 = por %p568, %p569
      %p571 = scmp.ne.s32.totalorder %s557, %s558
      %p572 = scmp.eq.s32.totalorder %s52, 1
      %p573 = por %p571, %p572
      %p575 = scmp.ne.s32.totalorder %s558, %s574
      %p576 = scmp.eq.s32.totalorder %s52, 0
      %p577 = por %p575, %p576
      %p578 = scmp.le.s32.totalorder 1, %s46
      %p579 = scmp.lt.s32.totalorder %s46, 3
      %p580 = pnand %p578, %p579
      %p581 = pneg %p580
      // Predicated region
      $region9: #{tpu_custom_call.1} parent=5 // pred_check
        _
      $region10: #{tpu_custom_call.1} parent=5 // pred_check_branch
        %583 = sbr.rel (%p580) target = $region12
      $region11: #{tpu_custom_call.1} parent=5 // pred_region
        %s584 = ssub.s32 %s46, 1
        // Predicated region
        $region13: #{tpu_custom_call.1} parent=11 // pred_check
          %p585 = pneg %p119
        $region14: #{tpu_custom_call.1} parent=11 // pred_check_branch
          %587 = sbr.rel (%p585) target = $region16
        $region15: #{tpu_custom_call.1} parent=11 // pred_region
          %s589 = ssub.s32 2048, 2048
          %590 = vsyncadd [#allocation8], %s589
          %s591 = sshll.u32 [#allocation9], 4
          %s592 = int_to_ptr.vmem [resolvable:$true] %s591
          %597 = dma.hbm_to_vmem [thread:$0]  %s2, 2048, %s592, [#allocation8], 128, 128, 8
        $region16: #{tpu_custom_call.1} parent=11 // pred_fallthru
          _
        // Predicated region
        $region17: #{tpu_custom_call.1} parent=11 // pred_check
          %p598 = pneg %p140
        $region18: #{tpu_custom_call.1} parent=11 // pred_check_branch
          %600 = sbr.rel (%p598) target = $region20
        $region19: #{tpu_custom_call.1} parent=11 // pred_region
          _
        $region20: #{tpu_custom_call.1} parent=11 // pred_fallthru
          _
        // Predicated region
        $region21: #{tpu_custom_call.1} parent=11 // pred_check
          %p601 = pneg %p161
        $region22: #{tpu_custom_call.1} parent=11 // pred_check_branch
          %603 = sbr.rel (%p601) target = $region24
        $region23: #{tpu_custom_call.1} parent=11 // pred_region
          %s605 = ssub.s32 2048, 2048
          %606 = vsyncadd [#allocation11], %s605
          %s607 = sshll.u32 [#allocation10], 4
          %s608 = int_to_ptr.vmem [resolvable:$true] %s607
          %613 = dma.hbm_to_vmem [thread:$0]  %s4, 2048, %s608, [#allocation11], 128, 128, 8
        $region24: #{tpu_custom_call.1} parent=11 // pred_fallthru
          _
        // Predicated region
        $region25: #{tpu_custom_call.1} parent=11 // pred_check
          %p614 = pneg %p182
        $region26: #{tpu_custom_call.1} parent=11 // pred_check_branch
          %616 = sbr.rel (%p614) target = $region28
        $region27: #{tpu_custom_call.1} parent=11 // pred_region
          _
        $region28: #{tpu_custom_call.1} parent=11 // pred_fallthru
          _
        // Predicated region
        $region29: #{tpu_custom_call.1} parent=11 // pred_check
          %p617 = pneg %p203
        $region30: #{tpu_custom_call.1} parent=11 // pred_check_branch
          %619 = sbr.rel (%p617) target = $region32
        $region31: #{tpu_custom_call.1} parent=11 // pred_region
          %s621 = ssub.s32 1024, 1024
          %622 = vsyncadd [#allocation11], %s621
          %s623 = sshll.u32 [#allocation12], 4
          %s624 = int_to_ptr.vmem [resolvable:$true] %s623
          %629 = dma.hbm_to_vmem [thread:$0]  %s6, 1024, %s624, [#allocation11], 64, 64, 4
        $region32: #{tpu_custom_call.1} parent=11 // pred_fallthru
          _
        // Predicated region
        $region33: #{tpu_custom_call.1} parent=11 // pred_check
          %p630 = pneg %p224
        $region34: #{tpu_custom_call.1} parent=11 // pred_check_branch
          %632 = sbr.rel (%p630) target = $region36
        $region35: #{tpu_custom_call.1} parent=11 // pred_region
          _
        $region36: #{tpu_custom_call.1} parent=11 // pred_fallthru
          _
        // Predicated region
        $region37: #{tpu_custom_call.1} parent=11 // pred_check
          %p633 = pneg %p245
        $region38: #{tpu_custom_call.1} parent=11 // pred_check_branch
          %635 = sbr.rel (%p633) target = $region40
        $region39: #{tpu_custom_call.1} parent=11 // pred_region
          %s637 = ssub.s32 1024, 1024
          %638 = vsyncadd [#allocation14], %s637
          %s639 = sshll.u32 [#allocation13], 4
          %s640 = int_to_ptr.vmem [resolvable:$true] %s639
          %645 = dma.hbm_to_vmem [thread:$0]  %s8, 1024, %s640, [#allocation14], 64, 64, 4
        $region40: #{tpu_custom_call.1} parent=11 // pred_fallthru
          _
        // Predicated region
        $region41: #{tpu_custom_call.1} parent=11 // pred_check
          %p646 = pneg %p266
        $region42: #{tpu_custom_call.1} parent=11 // pred_check_branch
          %648 = sbr.rel (%p646) target = $region44
        $region43: #{tpu_custom_call.1} parent=11 // pred_region
          _
        $region44: #{tpu_custom_call.1} parent=11 // pred_fallthru
          _
        // Predicated region
        $region45: #{tpu_custom_call.1} parent=11 // pred_check
          %p649 = pneg %p287
        $region46: #{tpu_custom_call.1} parent=11 // pred_check_branch
          %651 = sbr.rel (%p649) target = $region48
        $region47: #{tpu_custom_call.1} parent=11 // pred_region
          _
        $region48: #{tpu_custom_call.1} parent=11 // pred_fallthru
          _
        // Predicated region
        $region49: #{tpu_custom_call.1} parent=11 // pred_check
          %p652 = pneg %p308
        $region50: #{tpu_custom_call.1} parent=11 // pred_check_branch
          %654 = sbr.rel (%p652) target = $region52
        $region51: #{tpu_custom_call.1} parent=11 // pred_region
          _
        $region52: #{tpu_custom_call.1} parent=11 // pred_fallthru
          _
        // Predicated region
        $region53: #{tpu_custom_call.1} parent=11 // pred_check
          %p655 = pneg %p329
        $region54: #{tpu_custom_call.1} parent=11 // pred_check_branch
          %657 = sbr.rel (%p655) target = $region56
        $region55: #{tpu_custom_call.1} parent=11 // pred_region
          _
        $region56: #{tpu_custom_call.1} parent=11 // pred_fallthru
          _
        // Predicated region
        $region57: #{tpu_custom_call.1} parent=11 // pred_check
          %p658 = pneg %p350
        $region58: #{tpu_custom_call.1} parent=11 // pred_check_branch
          %660 = sbr.rel (%p658) target = $region60
        $region59: #{tpu_custom_call.1} parent=11 // pred_region
          _
        $region60: #{tpu_custom_call.1} parent=11 // pred_fallthru
          _
        // Predicated region
        $region61: #{tpu_custom_call.1} parent=11 // pred_check
          %p661 = pneg %p371
        $region62: #{tpu_custom_call.1} parent=11 // pred_check_branch
          %663 = sbr.rel (%p661) target = $region64
        $region63: #{tpu_custom_call.1} parent=11 // pred_region
          %s665 = ssub.s32 2048, 2048
          %666 = vsyncadd [#allocation14], %s665
          %s667 = sshll.u32 [#allocation15], 4
          %s668 = int_to_ptr.vmem [resolvable:$true] %s667
          %673 = dma.hbm_to_vmem [thread:$0]  %s14, 2048, %s668, [#allocation14], 128, 128, 8
        $region64: #{tpu_custom_call.1} parent=11 // pred_fallthru
          _
        // Predicated region
        $region65: #{tpu_custom_call.1} parent=11 // pred_check
          %p674 = pneg %p392
        $region66: #{tpu_custom_call.1} parent=11 // pred_check_branch
          %676 = sbr.rel (%p674) target = $region68
        $region67: #{tpu_custom_call.1} parent=11 // pred_region
          _
        $region68: #{tpu_custom_call.1} parent=11 // pred_fallthru
          _
        // Predicated region
        $region69: #{tpu_custom_call.1} parent=11 // pred_check
          %p677 = pneg %p413
        $region70: #{tpu_custom_call.1} parent=11 // pred_check_branch
          %679 = sbr.rel (%p677) target = $region72
        $region71: #{tpu_custom_call.1} parent=11 // pred_region
          %s681 = ssub.s32 2048, 2048
          %682 = vsyncadd [#allocation17], %s681
          %s683 = sshll.u32 [#allocation16], 4
          %s684 = int_to_ptr.vmem [resolvable:$true] %s683
          %689 = dma.hbm_to_vmem [thread:$0]  %s16, 2048, %s684, [#allocation17], 64, 64, 4
        $region72: #{tpu_custom_call.1} parent=11 // pred_fallthru
          _
        // Predicated region
        $region73: #{tpu_custom_call.1} parent=11 // pred_check
          %p690 = pneg %p434
        $region74: #{tpu_custom_call.1} parent=11 // pred_check_branch
          %692 = sbr.rel (%p690) target = $region76
        $region75: #{tpu_custom_call.1} parent=11 // pred_region
          _
        $region76: #{tpu_custom_call.1} parent=11 // pred_fallthru
          _
        // Predicated region
        $region77: #{tpu_custom_call.1} parent=11 // pred_check
          %p693 = pneg %p455
        $region78: #{tpu_custom_call.1} parent=11 // pred_check_branch
          %695 = sbr.rel (%p693) target = $region80
        $region79: #{tpu_custom_call.1} parent=11 // pred_region
          %s697 = ssub.s32 2048, 2048
          %698 = vsyncadd [#allocation17], %s697
          %s699 = sshll.u32 [#allocation18], 4
          %s700 = int_to_ptr.vmem [resolvable:$true] %s699
          %705 = dma.hbm_to_vmem [thread:$0]  %s18, 2048, %s700, [#allocation17], 128, 128, 8
        $region80: #{tpu_custom_call.1} parent=11 // pred_fallthru
          _
        // Predicated region
        $region81: #{tpu_custom_call.1} parent=11 // pred_check
          %p706 = pneg %p476
        $region82: #{tpu_custom_call.1} parent=11 // pred_check_branch
          %708 = sbr.rel (%p706) target = $region84
        $region83: #{tpu_custom_call.1} parent=11 // pred_region
          _
        $region84: #{tpu_custom_call.1} parent=11 // pred_fallthru
          _
        // Predicated region
        $region85: #{tpu_custom_call.1} parent=11 // pred_check
          %p709 = pneg %p497
        $region86: #{tpu_custom_call.1} parent=11 // pred_check_branch
          %711 = sbr.rel (%p709) target = $region88
        $region87: #{tpu_custom_call.1} parent=11 // pred_region
          %s713 = ssub.s32 2048, 2048
          %714 = vsyncadd [#allocation20], %s713
          %s715 = sshll.u32 [#allocation19], 4
          %s716 = int_to_ptr.vmem [resolvable:$true] %s715
          %721 = dma.hbm_to_vmem [thread:$0]  %s20, 2048, %s716, [#allocation20], 64, 64, 4
        $region88: #{tpu_custom_call.1} parent=11 // pred_fallthru
          _
        // Predicated region
        $region89: #{tpu_custom_call.1} parent=11 // pred_check
          %p722 = pneg %p518
        $region90: #{tpu_custom_call.1} parent=11 // pred_check_branch
          %724 = sbr.rel (%p722) target = $region92
        $region91: #{tpu_custom_call.1} parent=11 // pred_region
          _
        $region92: #{tpu_custom_call.1} parent=11 // pred_fallthru
          _
      $region12: #{tpu_custom_call.1} parent=5 // pred_fallthru
        _
      %p725 = scmp.lt.s32.totalorder %s46, 2
      // Predicated region
      $region93: #{tpu_custom_call.1} parent=5 // pred_check
        %p726 = pneg %p725
      $region94: #{tpu_custom_call.1} parent=5 // pred_check_branch
        %728 = sbr.rel (%p726) target = $region96
      $region95: #{tpu_custom_call.1} parent=5 // pred_region
        // Predicated region
        $region97: #{tpu_custom_call.1} parent=95 // pred_check
          %p729 = pneg %p66
        $region98: #{tpu_custom_call.1} parent=95 // pred_check_branch
          %731 = sbr.rel (%p729) target = $region100
        $region99: #{tpu_custom_call.1} parent=95 // pred_region
          %s732 = sand.u32 %s56, 1
          %s733 = scalar_lea.sflag [#allocation5], %s732
          %s734 = sand.u32 %s56, 1
          %s735 = smul.addr %s734, 16
          %s736 = scalar_lea.vmem [#allocation4], %s735
          %s738 = ssub.s32 256, 256
          %739 = vsyncadd %s733, %s738
          %s740 = smul.addr %s46, 2
          %s741 = smul.addr %s740, 128
          %s742 = scalar_lea.hbm %s0, %s741
          %s743 = sshll.u32 %s736, 4
          %s744 = int_to_ptr.vmem [resolvable:$true] %s743
          %749 = dma.hbm_to_vmem [thread:$0]  %s742, 256, %s744, %s733, 128, 128, 8
        $region100: #{tpu_custom_call.1} parent=95 // pred_fallthru
          _
        // Predicated region
        $region101: #{tpu_custom_call.1} parent=95 // pred_check
          %p750 = pneg %p92
        $region102: #{tpu_custom_call.1} parent=95 // pred_check_branch
          %752 = sbr.rel (%p750) target = $region104
        $region103: #{tpu_custom_call.1} parent=95 // pred_region
          %s753 = sand.u32 %s46, 1
          %s754 = scalar_lea.sflag [#allocation8], %s753
          %s755 = sand.u32 %s82, 1
          %s756 = smul.addr %s755, 16
          %s757 = scalar_lea.vmem [#allocation7], %s756
          %s759 = ssub.s32 256, 256
          %760 = vsyncadd %s754, %s759
          %s761 = smul.addr %s46, 2
          %s762 = smul.addr %s761, 128
          %s763 = scalar_lea.hbm %s1, %s762
          %s764 = sshll.u32 %s757, 4
          %s765 = int_to_ptr.vmem [resolvable:$true] %s764
          %770 = dma.hbm_to_vmem [thread:$0]  %s763, 256, %s765, %s754, 128, 128, 8
        $region104: #{tpu_custom_call.1} parent=95 // pred_fallthru
          _
      $region96: #{tpu_custom_call.1} parent=5 // pred_fallthru
        _
      %p771 = scmp.le.s32.totalorder 1, %s46
      %p772 = scmp.lt.s32.totalorder %s46, 3
      %p773 = pnand %p771, %p772
      %p774 = pneg %p773
      // Predicated region
      $region105: #{tpu_custom_call.1} parent=5 // pred_check
        _
      $region106: #{tpu_custom_call.1} parent=5 // pred_check_branch
        %776 = sbr.rel (%p773) target = $region108
      $region107: #{tpu_custom_call.1} parent=5 // pred_region
        %s777 = ssub.s32 %s46, 1
        %s778 = sand.u32 %s59, 1
        %s779 = scalar_lea.sflag [#allocation5], %s778
        %s780 = sand.u32 %s59, 1
        %s781 = smul.addr %s780, 16
        %s782 = scalar_lea.vmem [#allocation4], %s781
        // Predicated region
        $region109: #{tpu_custom_call.1} parent=107 // pred_check
          %p783 = pneg %p72
        $region110: #{tpu_custom_call.1} parent=107 // pred_check_branch
          %785 = sbr.rel (%p783) target = $region112
        $region111: #{tpu_custom_call.1} parent=107 // pred_region
          %786 = dma.done %s779, 256
        $region112: #{tpu_custom_call.1} parent=107 // pred_fallthru
          _
        %s787 = sand.u32 %s51, 1
        %s788 = scalar_lea.sflag [#allocation8], %s787
        %s789 = sand.u32 %s85, 1
        %s790 = smul.addr %s789, 16
        %s791 = scalar_lea.vmem [#allocation7], %s790
        // Predicated region
        $region113: #{tpu_custom_call.1} parent=107 // pred_check
          %p792 = pneg %p98
        $region114: #{tpu_custom_call.1} parent=107 // pred_check_branch
          %794 = sbr.rel (%p792) target = $region116
        $region115: #{tpu_custom_call.1} parent=107 // pred_region
          %795 = dma.done %s788, 256
        $region116: #{tpu_custom_call.1} parent=107 // pred_fallthru
          _
        // Predicated region
        $region117: #{tpu_custom_call.1} parent=107 // pred_check
          %p796 = pneg %p119
        $region118: #{tpu_custom_call.1} parent=107 // pred_check_branch
          %798 = sbr.rel (%p796) target = $region120
        $region119: #{tpu_custom_call.1} parent=107 // pred_region
          %799 = dma.done [#allocation8], 2048
        $region120: #{tpu_custom_call.1} parent=107 // pred_fallthru
          _
        // Predicated region
        $region121: #{tpu_custom_call.1} parent=107 // pred_check
          %p800 = pneg %p161
        $region122: #{tpu_custom_call.1} parent=107 // pred_check_branch
          %802 = sbr.rel (%p800) target = $region124
        $region123: #{tpu_custom_call.1} parent=107 // pred_region
          %803 = dma.done [#allocation11], 2048
        $region124: #{tpu_custom_call.1} parent=107 // pred_fallthru
          _
        // Predicated region
        $region125: #{tpu_custom_call.1} parent=107 // pred_check
          %p804 = pneg %p203
        $region126: #{tpu_custom_call.1} parent=107 // pred_check_branch
          %806 = sbr.rel (%p804) target = $region128
        $region127: #{tpu_custom_call.1} parent=107 // pred_region
          %807 = dma.done [#allocation11], 1024
        $region128: #{tpu_custom_call.1} parent=107 // pred_fallthru
          _
        // Predicated region
        $region129: #{tpu_custom_call.1} parent=107 // pred_check
          %p808 = pneg %p245
        $region130: #{tpu_custom_call.1} parent=107 // pred_check_branch
          %810 = sbr.rel (%p808) target = $region132
        $region131: #{tpu_custom_call.1} parent=107 // pred_region
          %811 = dma.done [#allocation14], 1024
        $region132: #{tpu_custom_call.1} parent=107 // pred_fallthru
          _
        // Predicated region
        $region133: #{tpu_custom_call.1} parent=107 // pred_check
          %p812 = pneg %p371
        $region134: #{tpu_custom_call.1} parent=107 // pred_check_branch
          %814 = sbr.rel (%p812) target = $region136
        $region135: #{tpu_custom_call.1} parent=107 // pred_region
          %815 = dma.done [#allocation14], 2048
        $region136: #{tpu_custom_call.1} parent=107 // pred_fallthru
          _
        // Predicated region
        $region137: #{tpu_custom_call.1} parent=107 // pred_check
          %p816 = pneg %p413
        $region138: #{tpu_custom_call.1} parent=107 // pred_check_branch
          %818 = sbr.rel (%p816) target = $region140
        $region139: #{tpu_custom_call.1} parent=107 // pred_region
          %819 = dma.done [#allocation17], 2048
        $region140: #{tpu_custom_call.1} parent=107 // pred_fallthru
          _
        // Predicated region
        $region141: #{tpu_custom_call.1} parent=107 // pred_check
          %p820 = pneg %p455
        $region142: #{tpu_custom_call.1} parent=107 // pred_check_branch
          %822 = sbr.rel (%p820) target = $region144
        $region143: #{tpu_custom_call.1} parent=107 // pred_region
          %823 = dma.done [#allocation17], 2048
        $region144: #{tpu_custom_call.1} parent=107 // pred_fallthru
          _
        // Predicated region
        $region145: #{tpu_custom_call.1} parent=107 // pred_check
          %p824 = pneg %p497
        $region146: #{tpu_custom_call.1} parent=107 // pred_check_branch
          %826 = sbr.rel (%p824) target = $region148
        $region147: #{tpu_custom_call.1} parent=107 // pred_region
          %827 = dma.done [#allocation20], 2048
        $region148: #{tpu_custom_call.1} parent=107 // pred_fallthru
          _
        %s828 = sand.u32 %s59, 1
        %s829 = scalar_lea.sflag [#allocation5], %s828
        %s830 = sand.u32 %s59, 1
        %s831 = smul.addr %s830, 16
        %s832 = scalar_lea.vmem [#allocation4], %s831
        %p833 = pneg %p72
        %p834 = pneg %p69
        %s835 = sand.u32 %s51, 1
        %s836 = scalar_lea.sflag [#allocation8], %s835
        %s837 = sand.u32 %s85, 1
        %s838 = smul.addr %s837, 16
        %s839 = scalar_lea.vmem [#allocation7], %s838
        %p840 = pneg %p98
        %p841 = pneg %p95
        %p842 = pneg %p119
        %p843 = pneg %p116
        %p844 = pneg %p140
        %p845 = pneg %p137
        %p846 = pneg %p161
        %p847 = pneg %p158
        %p848 = pneg %p182
        %p849 = pneg %p179
        %p850 = pneg %p203
        %p851 = pneg %p200
        %p852 = pneg %p224
        %p853 = pneg %p221
        %p854 = pneg %p245
        %p855 = pneg %p242
        %p856 = pneg %p266
        %p857 = pneg %p263
        %p858 = pneg %p287
        %p859 = pneg %p284
        %p860 = pneg %p308
        %p861 = pneg %p305
        %p862 = pneg %p329
        %p863 = pneg %p326
        %p864 = pneg %p350
        %p865 = pneg %p347
        %p866 = pneg %p371
        %p867 = pneg %p368
        %p868 = pneg %p392
        %p869 = pneg %p389
        %p870 = pneg %p413
        %p871 = pneg %p410
        %p872 = pneg %p434
        %p873 = pneg %p431
        %p874 = pneg %p455
        %p875 = pneg %p452
        %p876 = pneg %p476
        %p877 = pneg %p473
        %p878 = pneg %p497
        %p879 = pneg %p494
        %p880 = pneg %p518
        %p881 = pneg %p515
        %p882 = pneg %p544
        %p883 = pneg %p541
        %s884 = sand.u32 %s531, 1
        %s885 = scalar_lea.sflag [#allocation6], %s884
        %s886 = sand.u32 %s531, 1
        %s887 = smul.addr %s886, 16
        %s888 = scalar_lea.vmem [#allocation21], %s887
        %p889 = pneg %p570
        %p890 = pneg %p567
        %s891 = sand.u32 %s557, 1
        %s892 = scalar_lea.sflag [#allocation23], %s891
        %s893 = sand.u32 %s557, 1
        %s894 = smul.addr %s893, 16
        %s895 = scalar_lea.vmem [#allocation22], %s894
        %v897 = vld [vmem:[%s782] sm:$0xff]
        %v898 = vld [vmem:[%s782 + $0x8] sm:$0xff]
        %v899 = vld [vmem:[%s791] sm:$0xff]
        %v900 = vld [vmem:[%s791 + $0x8] sm:$0xff]
        %v901 = vld [vmem:[#allocation9] sm:$0xff]
        %v902 = vld [vmem:[#allocation9 + $0x8] sm:$0xff]
        %v903 = vld [vmem:[#allocation9 + $0x10] sm:$0xff]
        %v904 = vld [vmem:[#allocation9 + $0x18] sm:$0xff]
        %v905 = vld [vmem:[#allocation9 + $0x20] sm:$0xff]
        %v906 = vld [vmem:[#allocation9 + $0x28] sm:$0xff]
        %v907 = vld [vmem:[#allocation9 + $0x30] sm:$0xff]
        %v908 = vld [vmem:[#allocation9 + $0x38] sm:$0xff]
        %v909 = vld [vmem:[#allocation9 + $0x40] sm:$0xff]
        %v910 = vld [vmem:[#allocation9 + $0x48] sm:$0xff]
        %v911 = vld [vmem:[#allocation9 + $0x50] sm:$0xff]
        %v912 = vld [vmem:[#allocation9 + $0x58] sm:$0xff]
        %v913 = vld [vmem:[#allocation9 + $0x60] sm:$0xff]
        %v914 = vld [vmem:[#allocation9 + $0x68] sm:$0xff]
        %v915 = vld [vmem:[#allocation9 + $0x70] sm:$0xff]
        %v916 = vld [vmem:[#allocation9 + $0x78] sm:$0xff]
        %v917 = vpack.c.bf16 %v898, %v897
        %v918 = vld [vmem:[%s3] sm:$0x3]
        %v920 = vlaneseq
        %v921 = vshrl.u32 %v920, 7
        %v922 = vsub.s32 0, %v921
        %v923 = vrot.slane %v918, %v922
        %v924 = vlaneseq
        %v925 = vshrl.u32 %v924, 7
        %v926 = vsub.s32 1, %v925
        %v927 = vrot.slane %v918, %v926
        %v946 = vunpack.c.l.b16 %v901
        %v947 = vunpack.c.h.b16 %v901
        %v948 = vunpack.c.l.b16 %v902
        %v949 = vunpack.c.h.b16 %v902
        %v950 = vunpack.c.l.b16 %v903
        %v951 = vunpack.c.h.b16 %v903
        %v952 = vunpack.c.l.b16 %v904
        %v953 = vunpack.c.h.b16 %v904
        %v954 = vunpack.c.l.b16 %v905
        %v955 = vunpack.c.h.b16 %v905
        %v956 = vunpack.c.l.b16 %v906
        %v957 = vunpack.c.h.b16 %v906
        %v958 = vunpack.c.l.b16 %v907
        %v959 = vunpack.c.h.b16 %v907
        %v960 = vunpack.c.l.b16 %v908
        %v961 = vunpack.c.h.b16 %v908
        %v962 = vunpack.c.l.b16 %v909
        %v963 = vunpack.c.h.b16 %v909
        %v964 = vunpack.c.l.b16 %v910
        %v965 = vunpack.c.h.b16 %v910
        %v966 = vunpack.c.l.b16 %v911
        %v967 = vunpack.c.h.b16 %v911
        %v968 = vunpack.c.l.b16 %v912
        %v969 = vunpack.c.h.b16 %v912
        %v970 = vunpack.c.l.b16 %v913
        %v971 = vunpack.c.h.b16 %v913
        %v972 = vunpack.c.l.b16 %v914
        %v973 = vunpack.c.h.b16 %v914
        %v974 = vunpack.c.l.b16 %v915
        %v975 = vunpack.c.h.b16 %v915
        %v976 = vunpack.c.l.b16 %v916
        %v977 = vunpack.c.h.b16 %v916
        %v978 = vpack.c.b16 %v948, %v946
        %v979 = vpack.c.b16 %v949, %v947
        %v980 = vpack.c.b16 %v952, %v950
        %v981 = vpack.c.b16 %v953, %v951
        %v982 = vpack.c.b16 %v956, %v954
        %v983 = vpack.c.b16 %v957, %v955
        %v984 = vpack.c.b16 %v960, %v958
        %v985 = vpack.c.b16 %v961, %v959
        %v986 = vpack.c.b16 %v964, %v962
        %v987 = vpack.c.b16 %v965, %v963
        %v988 = vpack.c.b16 %v968, %v966
        %v989 = vpack.c.b16 %v969, %v967
        %v990 = vpack.c.b16 %v972, %v970
        %v991 = vpack.c.b16 %v973, %v971
        %v992 = vpack.c.b16 %v976, %v974
        %v993 = vpack.c.b16 %v977, %v975
        %1010 = vmatprep.subr.bf16.mxu0 %v993
        %1011 = vmatpush1.bf16.msra.mxu0 %v992
        %1012 = vmatprep.subr.bf16.mxu0 %v991
        %1013 = vmatpush1.bf16.msra.mxu0 %v990
        %1014 = vmatprep.subr.bf16.mxu0 %v989
        %1015 = vmatpush1.bf16.msra.mxu0 %v988
        %1016 = vmatprep.subr.bf16.mxu0 %v987
        %1017 = vmatpush1.bf16.msra.mxu0 %v986
        %1018 = vmatprep.subr.bf16.mxu0 %v985
        %1019 = vmatpush1.bf16.msra.mxu0 %v984
        %1020 = vmatprep.subr.bf16.mxu0 %v983
        %1021 = vmatpush1.bf16.msra.mxu0 %v982
        %1022 = vmatprep.subr.bf16.mxu0 %v981
        %1023 = vmatpush1.bf16.msra.mxu0 %v980
        %1024 = vmatprep.subr.bf16.mxu0 %v979
        %1025 = vmatpush1.bf16.msra.mxu0 %v978
        %1026 = vmatprep.subr.bf16.mxu0 0
        %1027 = vmatpush2.bf16.msra.mxu0 0
        %1028 = vmatprep.subr.bf16.mxu0 0
        %1029 = vmatpush2.bf16.msra.mxu0 0
        %1030 = vmatprep.subr.bf16.mxu0 0
        %1031 = vmatpush2.bf16.msra.mxu0 0
        %1032 = vmatprep.subr.bf16.mxu0 0
        %1033 = vmatpush2.bf16.msra.mxu0 0
        %1034 = vmatprep.subr.bf16.mxu0 0
        %1035 = vmatpush2.bf16.msra.mxu0 0
        %1036 = vmatprep.subr.bf16.mxu0 0
        %1037 = vmatpush2.bf16.msra.mxu0 0
        %1038 = vmatprep.subr.bf16.mxu0 0
        %1039 = vmatpush2.bf16.msra.mxu0 0
        %1040 = vmatprep.subr.bf16.mxu0 0
        %1041 = vmatpush2.bf16.msra.mxu0 0
        %1042 = vmatprep.mubr.bf16.mxu0 0
        %1043 = vmatmul.mubr.bf16.gmra.mxu0 %v917
        %v1044 = vpop.f32.mrf.mxu0
        %v1045 = vadd.f32 %v923, %v1044
        %v1046 = vpop.f32.mrf.mxu0
        %v1047 = vadd.f32 %v927, %v1046
        %v1048 = vpop.f32.mrf.mxu0
        %v1049 = vadd.f32 %v923, %v1048
        %v1050 = vpop.f32.mrf.mxu0
        %v1051 = vadd.f32 %v927, %v1050
        %1052 = vdwg.mxu0
        %v1053 = vld [vmem:[#allocation10] sm:$0xff]
        %v1054 = vld [vmem:[#allocation10 + $0x8] sm:$0xff]
        %v1055 = vld [vmem:[#allocation10 + $0x10] sm:$0xff]
        %v1056 = vld [vmem:[#allocation10 + $0x18] sm:$0xff]
        %v1057 = vld [vmem:[#allocation10 + $0x20] sm:$0xff]
        %v1058 = vld [vmem:[#allocation10 + $0x28] sm:$0xff]
        %v1059 = vld [vmem:[#allocation10 + $0x30] sm:$0xff]
        %v1060 = vld [vmem:[#allocation10 + $0x38] sm:$0xff]
        %v1061 = vld [vmem:[#allocation10 + $0x40] sm:$0xff]
        %v1062 = vld [vmem:[#allocation10 + $0x48] sm:$0xff]
        %v1063 = vld [vmem:[#allocation10 + $0x50] sm:$0xff]
        %v1064 = vld [vmem:[#allocation10 + $0x58] sm:$0xff]
        %v1065 = vld [vmem:[#allocation10 + $0x60] sm:$0xff]
        %v1066 = vld [vmem:[#allocation10 + $0x68] sm:$0xff]
        %v1067 = vld [vmem:[#allocation10 + $0x70] sm:$0xff]
        %v1068 = vld [vmem:[#allocation10 + $0x78] sm:$0xff]
        %v1069 = vpack.c.bf16 %v900, %v899
        %v1070 = vld [vmem:[%s5] sm:$0x3]
        %v1072 = vlaneseq
        %v1073 = vshrl.u32 %v1072, 7
        %v1074 = vsub.s32 0, %v1073
        %v1075 = vrot.slane %v1070, %v1074
        %v1076 = vlaneseq
        %v1077 = vshrl.u32 %v1076, 7
        %v1078 = vsub.s32 1, %v1077
        %v1079 = vrot.slane %v1070, %v1078
        %v1098 = vunpack.c.l.b16 %v1053
        %v1099 = vunpack.c.h.b16 %v1053
        %v1100 = vunpack.c.l.b16 %v1054
        %v1101 = vunpack.c.h.b16 %v1054
        %v1102 = vunpack.c.l.b16 %v1055
        %v1103 = vunpack.c.h.b16 %v1055
        %v1104 = vunpack.c.l.b16 %v1056
        %v1105 = vunpack.c.h.b16 %v1056
        %v1106 = vunpack.c.l.b16 %v1057
        %v1107 = vunpack.c.h.b16 %v1057
        %v1108 = vunpack.c.l.b16 %v1058
        %v1109 = vunpack.c.h.b16 %v1058
        %v1110 = vunpack.c.l.b16 %v1059
        %v1111 = vunpack.c.h.b16 %v1059
        %v1112 = vunpack.c.l.b16 %v1060
        %v1113 = vunpack.c.h.b16 %v1060
        %v1114 = vunpack.c.l.b16 %v1061
        %v1115 = vunpack.c.h.b16 %v1061
        %v1116 = vunpack.c.l.b16 %v1062
        %v1117 = vunpack.c.h.b16 %v1062
        %v1118 = vunpack.c.l.b16 %v1063
        %v1119 = vunpack.c.h.b16 %v1063
        %v1120 = vunpack.c.l.b16 %v1064
        %v1121 = vunpack.c.h.b16 %v1064
        %v1122 = vunpack.c.l.b16 %v1065
        %v1123 = vunpack.c.h.b16 %v1065
        %v1124 = vunpack.c.l.b16 %v1066
        %v1125 = vunpack.c.h.b16 %v1066
        %v1126 = vunpack.c.l.b16 %v1067
        %v1127 = vunpack.c.h.b16 %v1067
        %v1128 = vunpack.c.l.b16 %v1068
        %v1129 = vunpack.c.h.b16 %v1068
        %v1130 = vpack.c.b16 %v1100, %v1098
        %v1131 = vpack.c.b16 %v1101, %v1099
        %v1132 = vpack.c.b16 %v1104, %v1102
        %v1133 = vpack.c.b16 %v1105, %v1103
        %v1134 = vpack.c.b16 %v1108, %v1106
        %v1135 = vpack.c.b16 %v1109, %v1107
        %v1136 = vpack.c.b16 %v1112, %v1110
        %v1137 = vpack.c.b16 %v1113, %v1111
        %v1138 = vpack.c.b16 %v1116, %v1114
        %v1139 = vpack.c.b16 %v1117, %v1115
        %v1140 = vpack.c.b16 %v1120, %v1118
        %v1141 = vpack.c.b16 %v1121, %v1119
        %v1142 = vpack.c.b16 %v1124, %v1122
        %v1143 = vpack.c.b16 %v1125, %v1123
        %v1144 = vpack.c.b16 %v1128, %v1126
        %v1145 = vpack.c.b16 %v1129, %v1127
        %1162 = vmatprep.subr.bf16.mxu0 %v1145
        %1163 = vmatpush1.bf16.msra.mxu0 %v1144
        %1164 = vmatprep.subr.bf16.mxu0 %v1143
        %1165 = vmatpush1.bf16.msra.mxu0 %v1142
        %1166 = vmatprep.subr.bf16.mxu0 %v1141
        %1167 = vmatpush1.bf16.msra.mxu0 %v1140
        %1168 = vmatprep.subr.bf16.mxu0 %v1139
        %1169 = vmatpush1.bf16.msra.mxu0 %v1138
        %1170 = vmatprep.subr.bf16.mxu0 %v1137
        %1171 = vmatpush1.bf16.msra.mxu0 %v1136
        %1172 = vmatprep.subr.bf16.mxu0 %v1135
        %1173 = vmatpush1.bf16.msra.mxu0 %v1134
        %1174 = vmatprep.subr.bf16.mxu0 %v1133
        %1175 = vmatpush1.bf16.msra.mxu0 %v1132
        %1176 = vmatprep.subr.bf16.mxu0 %v1131
        %1177 = vmatpush1.bf16.msra.mxu0 %v1130
        %1178 = vmatprep.subr.bf16.mxu0 0
        %1179 = vmatpush2.bf16.msra.mxu0 0
        %1180 = vmatprep.subr.bf16.mxu0 0
        %1181 = vmatpush2.bf16.msra.mxu0 0
        %1182 = vmatprep.subr.bf16.mxu0 0
        %1183 = vmatpush2.bf16.msra.mxu0 0
        %1184 = vmatprep.subr.bf16.mxu0 0
        %1185 = vmatpush2.bf16.msra.mxu0 0
        %1186 = vmatprep.subr.bf16.mxu0 0
        %1187 = vmatpush2.bf16.msra.mxu0 0
        %1188 = vmatprep.subr.bf16.mxu0 0
        %1189 = vmatpush2.bf16.msra.mxu0 0
        %1190 = vmatprep.subr.bf16.mxu0 0
        %1191 = vmatpush2.bf16.msra.mxu0 0
        %1192 = vmatprep.subr.bf16.mxu0 0
        %1193 = vmatpush2.bf16.msra.mxu0 0
        %1194 = vmatprep.mubr.bf16.mxu0 0
        %1195 = vmatmul.mubr.bf16.gmra.mxu0 %v1069
        %v1196 = vpop.f32.mrf.mxu0
        %v1197 = vadd.f32 %v1075, %v1196
        %v1198 = vpop.f32.mrf.mxu0
        %v1199 = vadd.f32 %v1079, %v1198
        %v1200 = vpop.f32.mrf.mxu0
        %v1201 = vadd.f32 %v1075, %v1200
        %v1202 = vpop.f32.mrf.mxu0
        %v1203 = vadd.f32 %v1079, %v1202
        %1204 = vdwg.mxu0
        %v1205 = vpack.c.bf16 %v1049, %v1045
        %v1206 = vpack.c.bf16 %v1051, %v1047
        %v1207 = vpack.c.bf16 %v1201, %v1197
        %v1208 = vpack.c.bf16 %v1203, %v1199
        %vm1209 = vcmask 261120
        %v1211 = vsel %vm1209, %v1205, 0
        %v1214 = vsel %vm1209, %v1207, 0
        %1216 = vmatprep.subr.bf16.mxu0 0
        %1217 = vmatpush1.bf16.xpose.msra.mxu0 0
        %1218 = vmatprep.subr.bf16.mxu0 0
        %1219 = vmatpush1.bf16.xpose.msra.mxu0 0
        %1220 = vmatprep.subr.bf16.mxu0 0
        %1221 = vmatpush1.bf16.xpose.msra.mxu0 0
        %1222 = vmatprep.subr.bf16.mxu0 0
        %1223 = vmatpush1.bf16.xpose.msra.mxu0 0
        %1224 = vmatprep.subr.bf16.mxu0 0
        %1225 = vmatpush1.bf16.xpose.msra.mxu0 0
        %1226 = vmatprep.subr.bf16.mxu0 0
        %1227 = vmatpush1.bf16.xpose.msra.mxu0 0
        %1228 = vmatprep.subr.bf16.mxu0 0
        %1229 = vmatpush1.bf16.xpose.msra.mxu0 0
        %1230 = vmatprep.subr.bf16.mxu0 0
        %1231 = vmatpush1.bf16.xpose.msra.mxu0 %v1214
        %1232 = vmatprep.subr.bf16.mxu0 0
        %1233 = vmatpush2.bf16.xpose.msra.mxu0 0
        %1234 = vmatprep.subr.bf16.mxu0 0
        %1235 = vmatpush2.bf16.xpose.msra.mxu0 0
        %1236 = vmatprep.subr.bf16.mxu0 0
        %1237 = vmatpush2.bf16.xpose.msra.mxu0 0
        %1238 = vmatprep.subr.bf16.mxu0 0
        %1239 = vmatpush2.bf16.xpose.msra.mxu0 0
        %1240 = vmatprep.subr.bf16.mxu0 0
        %1241 = vmatpush2.bf16.xpose.msra.mxu0 0
        %1242 = vmatprep.subr.bf16.mxu0 0
        %1243 = vmatpush2.bf16.xpose.msra.mxu0 0
        %1244 = vmatprep.subr.bf16.mxu0 0
        %1245 = vmatpush2.bf16.xpose.msra.mxu0 0
        %1246 = vmatprep.subr.bf16.mxu0 0
        %1247 = vmatpush2.bf16.xpose.msra.mxu0 0
        %1248 = vmatprep.mubr.bf16.mxu0 0
        %1249 = vmatmul.mubr.bf16.gmra.mxu0 %v1211
        %v1250 = vpop.f32.mrf.mxu0
        %v1251 = vadd.f32 0.0, %v1250
        %v1252 = vpop.f32.mrf.mxu0
        %v1253 = vpop.f32.mrf.mxu0
        %v1254 = vadd.f32 0.0, %v1253
        %v1255 = vpop.f32.mrf.mxu0
        %1256 = vdwg.mxu0
        %vm1257 = vcmask 130048
        %v1258 = vsel %vm1257, %v1251, -inf
        %1259 = vmax.xlane.f32.xlu0 %v1258
        %v1260 = vpop.xlane.xlu0 %1259
        %v1261 = vsel %vm1257, %v1254, -inf
        %1262 = vmax.xlane.f32.xlu0 %v1261
        %v1263 = vpop.xlane.xlu0 %1262
        %v1264 = vsub.f32 %v1251, %v1260
        %v1265 = vsub.f32 %v1254, %v1263
        %v1266 = vpack.c.bf16 %v1265, %v1264
        %v1268 = vmul.bf16 %v1266, 1069105081
        %v1269 = vpow.bf16.pop %v1268
        %v1270 = vunpack.c.l.bf16 %v1269
        %v1271 = vunpack.c.h.bf16 %v1269
        %v1272 = vsel %vm1257, %v1270, 0.0
        %1273 = vadd.xlane.f32.xlu0 %v1272
        %v1274 = vpop.xlane.xlu0 %1273
        %v1275 = vsel %vm1257, %v1271, 0.0
        %1276 = vadd.xlane.f32.xlu0 %v1275
        %v1277 = vpop.xlane.xlu0 %1276
        %v1279 = vsel %vm1257, %v1269, 0
        %1281 = vmatprep.subr.bf16.mxu0 0
        %1282 = vmatpush1.bf16.msra.mxu0 0
        %1283 = vmatprep.subr.bf16.mxu0 0
        %1284 = vmatpush1.bf16.msra.mxu0 0
        %1285 = vmatprep.subr.bf16.mxu0 0
        %1286 = vmatpush1.bf16.msra.mxu0 0
        %1287 = vmatprep.subr.bf16.mxu0 0
        %1288 = vmatpush1.bf16.msra.mxu0 0
        %1289 = vmatprep.subr.bf16.mxu0 0
        %1290 = vmatpush1.bf16.msra.mxu0 0
        %1291 = vmatprep.subr.bf16.mxu0 0
        %1292 = vmatpush1.bf16.msra.mxu0 0
        %1293 = vmatprep.subr.bf16.mxu0 0
        %1294 = vmatpush1.bf16.msra.mxu0 0
        %1295 = vmatprep.subr.bf16.mxu0 0
        %1296 = vmatpush1.bf16.msra.mxu0 %v1208
        %1297 = vmatprep.subr.bf16.mxu0 0
        %1298 = vmatpush2.bf16.msra.mxu0 0
        %1299 = vmatprep.subr.bf16.mxu0 0
        %1300 = vmatpush2.bf16.msra.mxu0 0
        %1301 = vmatprep.subr.bf16.mxu0 0
        %1302 = vmatpush2.bf16.msra.mxu0 0
        %1303 = vmatprep.subr.bf16.mxu0 0
        %1304 = vmatpush2.bf16.msra.mxu0 0
        %1305 = vmatprep.subr.bf16.mxu0 0
        %1306 = vmatpush2.bf16.msra.mxu0 0
        %1307 = vmatprep.subr.bf16.mxu0 0
        %1308 = vmatpush2.bf16.msra.mxu0 0
        %1309 = vmatprep.subr.bf16.mxu0 0
        %1310 = vmatpush2.bf16.msra.mxu0 0
        %1311 = vmatprep.subr.bf16.mxu0 0
        %1312 = vmatpush2.bf16.msra.mxu0 0
        %1313 = vmatprep.mubr.bf16.mxu0 0
        %1314 = vmatmul.mubr.bf16.gmra.mxu0 %v1279
        %v1315 = vpop.f32.mrf.mxu0
        %v1316 = vadd.f32 0.0, %v1315
        %v1317 = vpop.f32.mrf.mxu0
        %v1318 = vpop.f32.mrf.mxu0
        %v1319 = vadd.f32 0.0, %v1318
        %v1320 = vpop.f32.mrf.mxu0
        %1321 = vdwg.mxu0
        %v1322 = vrcp.pop %v1274
        %v1323 = vrcp.pop %v1277
        %v1324 = vmul.f32 %v1316, %v1322
        %v1325 = vmul.f32 %v1319, %v1323
        %v1326 = vpack.c.bf16 %v1325, %v1324
        %v1328 = vunpack.c.l.b16 %v1326
        %v1329 = vunpack.c.h.b16 %v1326
        %v1330 = vpack.c.b16 %v1328, %v1328
        %v1331 = vpack.c.b16 %v1329, %v1329
        %vm1334 = vcmask 257024
        %1335 = vst.msk [vmem:[#allocation3] sm:$0xf] %vm1334, %v1330
        %1336 = vst.msk [vmem:[#allocation3 + $0x4] sm:$0xf] %vm1334, %v1331
        %1337 = vxpose.xlu0.b32.start [1/16] %v1251, 128
        %1338 = vxpose.xlu0.b32.cont [2/16] %v1254, 128
        %1339 = vxpose.xlu0.b32.cont [3/16] 0.0, 128
        %1340 = vxpose.xlu0.b32.cont [4/16] 0.0, 128
        %1341 = vxpose.xlu0.b32.cont [5/16] 0.0, 128
        %1342 = vxpose.xlu0.b32.cont [6/16] 0.0, 128
        %1343 = vxpose.xlu0.b32.cont [7/16] 0.0, 128
        %1344 = vxpose.xlu0.b32.cont [8/16] 0.0, 128
        %1345 = vxpose.xlu0.b32.cont [9/16] 0.0, 128
        %1346 = vxpose.xlu0.b32.cont [10/16] 0.0, 128
        %1347 = vxpose.xlu0.b32.cont [11/16] 0.0, 128
        %1348 = vxpose.xlu0.b32.cont [12/16] 0.0, 128
        %1349 = vxpose.xlu0.b32.cont [13/16] 0.0, 128
        %1350 = vxpose.xlu0.b32.cont [14/16] 0.0, 128
        %1351 = vxpose.xlu0.b32.cont [15/16] 0.0, 128
        %1352 = vxpose.xlu0.b32.end [16/16] 0.0, 128
        %v1353 = vpop.trf.xlu0
        %v1354 = vpop.trf.xlu0
        %v1355 = vpop.trf.xlu0
        %v1356 = vpop.trf.xlu0
        %v1357 = vpop.trf.xlu0
        %v1358 = vpop.trf.xlu0
        %v1359 = vpop.trf.xlu0
        %v1360 = vpop.trf.xlu0
        %v1361 = vpop.trf.xlu0
        %v1362 = vpop.trf.xlu0
        %v1363 = vpop.trf.xlu0
        %v1364 = vpop.trf.xlu0
        %v1365 = vpop.trf.xlu0
        %v1366 = vpop.trf.xlu0
        %v1367 = vpop.trf.xlu0
        %v1368 = vpop.trf.xlu0
        %v1369 = vsel %vm1257, %v1353, -inf
        %1370 = vmax.xlane.f32.xlu0 %v1369
        %v1371 = vpop.xlane.xlu0 %1370
        %v1372 = vsel %vm1257, %v1354, -inf
        %1373 = vmax.xlane.f32.xlu0 %v1372
        %v1374 = vpop.xlane.xlu0 %1373
        %v1375 = vsub.f32 %v1353, %v1371
        %v1376 = vsub.f32 %v1354, %v1374
        %v1377 = vpack.c.bf16 %v1376, %v1375
        %v1379 = vmul.bf16 %v1377, 1069105081
        %v1380 = vpow.bf16.pop %v1379
        %v1381 = vunpack.c.l.bf16 %v1380
        %v1382 = vunpack.c.h.bf16 %v1380
        %v1383 = vsel %vm1257, %v1381, 0.0
        %1384 = vadd.xlane.f32.xlu0 %v1383
        %v1385 = vpop.xlane.xlu0 %1384
        %v1386 = vsel %vm1257, %v1382, 0.0
        %1387 = vadd.xlane.f32.xlu0 %v1386
        %v1388 = vpop.xlane.xlu0 %1387
        %v1390 = vsel %vm1257, %v1380, 0
        %1392 = vmatprep.subr.bf16.mxu0 0
        %1393 = vmatpush1.bf16.msra.mxu0 0
        %1394 = vmatprep.subr.bf16.mxu0 0
        %1395 = vmatpush1.bf16.msra.mxu0 0
        %1396 = vmatprep.subr.bf16.mxu0 0
        %1397 = vmatpush1.bf16.msra.mxu0 0
        %1398 = vmatprep.subr.bf16.mxu0 0
        %1399 = vmatpush1.bf16.msra.mxu0 0
        %1400 = vmatprep.subr.bf16.mxu0 0
        %1401 = vmatpush1.bf16.msra.mxu0 0
        %1402 = vmatprep.subr.bf16.mxu0 0
        %1403 = vmatpush1.bf16.msra.mxu0 0
        %1404 = vmatprep.subr.bf16.mxu0 0
        %1405 = vmatpush1.bf16.msra.mxu0 0
        %1406 = vmatprep.subr.bf16.mxu0 0
        %1407 = vmatpush1.bf16.msra.mxu0 %v1206
        %1408 = vmatprep.subr.bf16.mxu0 0
        %1409 = vmatpush2.bf16.msra.mxu0 0
        %1410 = vmatprep.subr.bf16.mxu0 0
        %1411 = vmatpush2.bf16.msra.mxu0 0
        %1412 = vmatprep.subr.bf16.mxu0 0
        %1413 = vmatpush2.bf16.msra.mxu0 0
        %1414 = vmatprep.subr.bf16.mxu0 0
        %1415 = vmatpush2.bf16.msra.mxu0 0
        %1416 = vmatprep.subr.bf16.mxu0 0
        %1417 = vmatpush2.bf16.msra.mxu0 0
        %1418 = vmatprep.subr.bf16.mxu0 0
        %1419 = vmatpush2.bf16.msra.mxu0 0
        %1420 = vmatprep.subr.bf16.mxu0 0
        %1421 = vmatpush2.bf16.msra.mxu0 0
        %1422 = vmatprep.subr.bf16.mxu0 0
        %1423 = vmatpush2.bf16.msra.mxu0 0
        %1424 = vmatprep.mubr.bf16.mxu0 0
        %1425 = vmatmul.mubr.bf16.gmra.mxu0 %v1390
        %v1426 = vpop.f32.mrf.mxu0
        %v1427 = vadd.f32 0.0, %v1426
        %v1428 = vpop.f32.mrf.mxu0
        %v1429 = vpop.f32.mrf.mxu0
        %v1430 = vadd.f32 0.0, %v1429
        %v1431 = vpop.f32.mrf.mxu0
        %1432 = vdwg.mxu0
        %v1433 = vrcp.pop %v1385
        %v1434 = vrcp.pop %v1388
        %v1435 = vmul.f32 %v1427, %v1433
        %v1436 = vmul.f32 %v1430, %v1434
        %v1437 = vpack.c.bf16 %v1436, %v1435
        %v1439 = vunpack.c.l.b16 %v1437
        %v1440 = vunpack.c.h.b16 %v1437
        %v1441 = vpack.c.b16 %v1439, %v1439
        %v1442 = vpack.c.b16 %v1440, %v1440
        %1445 = vst.msk [vmem:[#allocation2] sm:$0xf] %vm1334, %v1441
        %1446 = vst.msk [vmem:[#allocation2 + $0x4] sm:$0xf] %vm1334, %v1442
        %1448 = vrot.lane.b32.xlu0 %v1205, 96
        %v1449 = vpop.permute.xlu0 %1448
        %1451 = vrot.lane.b32.xlu0 %v1207, 96
        %v1452 = vpop.permute.xlu0 %1451
        %v1454 = vsel %vm1209, %v1449, 0
        %v1457 = vsel %vm1209, %v1452, 0
        %1459 = vmatprep.subr.bf16.mxu0 0
        %1460 = vmatpush1.bf16.xpose.msra.mxu0 0
        %1461 = vmatprep.subr.bf16.mxu0 0
        %1462 = vmatpush1.bf16.xpose.msra.mxu0 0
        %1463 = vmatprep.subr.bf16.mxu0 0
        %1464 = vmatpush1.bf16.xpose.msra.mxu0 0
        %1465 = vmatprep.subr.bf16.mxu0 0
        %1466 = vmatpush1.bf16.xpose.msra.mxu0 0
        %1467 = vmatprep.subr.bf16.mxu0 0
        %1468 = vmatpush1.bf16.xpose.msra.mxu0 0
        %1469 = vmatprep.subr.bf16.mxu0 0
        %1470 = vmatpush1.bf16.xpose.msra.mxu0 0
        %1471 = vmatprep.subr.bf16.mxu0 0
        %1472 = vmatpush1.bf16.xpose.msra.mxu0 0
        %1473 = vmatprep.subr.bf16.mxu0 0
        %1474 = vmatpush1.bf16.xpose.msra.mxu0 %v1457
        %1475 = vmatprep.subr.bf16.mxu0 0
        %1476 = vmatpush2.bf16.xpose.msra.mxu0 0
        %1477 = vmatprep.subr.bf16.mxu0 0
        %1478 = vmatpush2.bf16.xpose.msra.mxu0 0
        %1479 = vmatprep.subr.bf16.mxu0 0
        %1480 = vmatpush2.bf16.xpose.msra.mxu0 0
        %1481 = vmatprep.subr.bf16.mxu0 0
        %1482 = vmatpush2.bf16.xpose.msra.mxu0 0
        %1483 = vmatprep.subr.bf16.mxu0 0
        %1484 = vmatpush2.bf16.xpose.msra.mxu0 0
        %1485 = vmatprep.subr.bf16.mxu0 0
        %1486 = vmatpush2.bf16.xpose.msra.mxu0 0
        %1487 = vmatprep.subr.bf16.mxu0 0
        %1488 = vmatpush2.bf16.xpose.msra.mxu0 0
        %1489 = vmatprep.subr.bf16.mxu0 0
        %1490 = vmatpush2.bf16.xpose.msra.mxu0 0
        %1491 = vmatprep.mubr.bf16.mxu0 0
        %1492 = vmatmul.mubr.bf16.gmra.mxu0 %v1454
        %v1493 = vpop.f32.mrf.mxu0
        %v1494 = vadd.f32 0.0, %v1493
        %v1495 = vpop.f32.mrf.mxu0
        %v1496 = vpop.f32.mrf.mxu0
        %v1497 = vadd.f32 0.0, %v1496
        %v1498 = vpop.f32.mrf.mxu0
        %1499 = vdwg.mxu0
        %v1500 = vsel %vm1257, %v1494, -inf
        %1501 = vmax.xlane.f32.xlu0 %v1500
        %v1502 = vpop.xlane.xlu0 %1501
        %v1503 = vsel %vm1257, %v1497, -inf
        %1504 = vmax.xlane.f32.xlu0 %v1503
        %v1505 = vpop.xlane.xlu0 %1504
        %v1506 = vsub.f32 %v1494, %v1502
        %v1507 = vsub.f32 %v1497, %v1505
        %v1508 = vpack.c.bf16 %v1507, %v1506
        %v1510 = vmul.bf16 %v1508, 1069105081
        %v1511 = vpow.bf16.pop %v1510
        %v1512 = vunpack.c.l.bf16 %v1511
        %v1513 = vunpack.c.h.bf16 %v1511
        %v1514 = vsel %vm1257, %v1512, 0.0
        %1515 = vadd.xlane.f32.xlu0 %v1514
        %v1516 = vpop.xlane.xlu0 %1515
        %v1517 = vsel %vm1257, %v1513, 0.0
        %1518 = vadd.xlane.f32.xlu0 %v1517
        %v1519 = vpop.xlane.xlu0 %1518
        %1521 = vrot.lane.b32.xlu0 %v1208, 96
        %v1522 = vpop.permute.xlu0 %1521
        %v1525 = vsel %vm1257, %v1511, 0
        %1527 = vmatprep.subr.bf16.mxu0 0
        %1528 = vmatpush1.bf16.msra.mxu0 0
        %1529 = vmatprep.subr.bf16.mxu0 0
        %1530 = vmatpush1.bf16.msra.mxu0 0
        %1531 = vmatprep.subr.bf16.mxu0 0
        %1532 = vmatpush1.bf16.msra.mxu0 0
        %1533 = vmatprep.subr.bf16.mxu0 0
        %1534 = vmatpush1.bf16.msra.mxu0 0
        %1535 = vmatprep.subr.bf16.mxu0 0
        %1536 = vmatpush1.bf16.msra.mxu0 0
        %1537 = vmatprep.subr.bf16.mxu0 0
        %1538 = vmatpush1.bf16.msra.mxu0 0
        %1539 = vmatprep.subr.bf16.mxu0 0
        %1540 = vmatpush1.bf16.msra.mxu0 0
        %1541 = vmatprep.subr.bf16.mxu0 0
        %1542 = vmatpush1.bf16.msra.mxu0 %v1522
        %1543 = vmatprep.subr.bf16.mxu0 0
        %1544 = vmatpush2.bf16.msra.mxu0 0
        %1545 = vmatprep.subr.bf16.mxu0 0
        %1546 = vmatpush2.bf16.msra.mxu0 0
        %1547 = vmatprep.subr.bf16.mxu0 0
        %1548 = vmatpush2.bf16.msra.mxu0 0
        %1549 = vmatprep.subr.bf16.mxu0 0
        %1550 = vmatpush2.bf16.msra.mxu0 0
        %1551 = vmatprep.subr.bf16.mxu0 0
        %1552 = vmatpush2.bf16.msra.mxu0 0
        %1553 = vmatprep.subr.bf16.mxu0 0
        %1554 = vmatpush2.bf16.msra.mxu0 0
        %1555 = vmatprep.subr.bf16.mxu0 0
        %1556 = vmatpush2.bf16.msra.mxu0 0
        %1557 = vmatprep.subr.bf16.mxu0 0
        %1558 = vmatpush2.bf16.msra.mxu0 0
        %1559 = vmatprep.mubr.bf16.mxu0 0
        %1560 = vmatmul.mubr.bf16.gmra.mxu0 %v1525
        %v1561 = vpop.f32.mrf.mxu0
        %v1562 = vadd.f32 0.0, %v1561
        %v1563 = vpop.f32.mrf.mxu0
        %v1564 = vpop.f32.mrf.mxu0
        %v1565 = vadd.f32 0.0, %v1564
        %v1566 = vpop.f32.mrf.mxu0
        %1567 = vdwg.mxu0
        %v1568 = vrcp.pop %v1516
        %v1569 = vrcp.pop %v1519
        %v1570 = vmul.f32 %v1562, %v1568
        %v1571 = vmul.f32 %v1565, %v1569
        %v1572 = vpack.c.bf16 %v1571, %v1570
        %v1574 = vunpack.c.l.b16 %v1572
        %v1575 = vunpack.c.h.b16 %v1572
        %v1576 = vpack.c.b16 %v1574, %v1574
        %v1577 = vpack.c.b16 %v1575, %v1575
        %1578 = vrot.lane.b32.xlu0 %v1576, 32
        %v1579 = vpop.permute.xlu0 %1578
        %1580 = vrot.lane.b32.xlu0 %v1577, 32
        %v1581 = vpop.permute.xlu0 %1580
        %vm1584 = vcmask 519424
        %1585 = vst.msk [vmem:[#allocation3] sm:$0xf] %vm1584, %v1579
        %1586 = vst.msk [vmem:[#allocation3 + $0x4] sm:$0xf] %vm1584, %v1581
        %1587 = vxpose.xlu0.b32.start [1/16] %v1494, 128
        %1588 = vxpose.xlu0.b32.cont [2/16] %v1497, 128
        %1589 = vxpose.xlu0.b32.cont [3/16] 0.0, 128
        %1590 = vxpose.xlu0.b32.cont [4/16] 0.0, 128
        %1591 = vxpose.xlu0.b32.cont [5/16] 0.0, 128
        %1592 = vxpose.xlu0.b32.cont [6/16] 0.0, 128
        %1593 = vxpose.xlu0.b32.cont [7/16] 0.0, 128
        %1594 = vxpose.xlu0.b32.cont [8/16] 0.0, 128
        %1595 = vxpose.xlu0.b32.cont [9/16] 0.0, 128
        %1596 = vxpose.xlu0.b32.cont [10/16] 0.0, 128
        %1597 = vxpose.xlu0.b32.cont [11/16] 0.0, 128
        %1598 = vxpose.xlu0.b32.cont [12/16] 0.0, 128
        %1599 = vxpose.xlu0.b32.cont [13/16] 0.0, 128
        %1600 = vxpose.xlu0.b32.cont [14/16] 0.0, 128
        %1601 = vxpose.xlu0.b32.cont [15/16] 0.0, 128
        %1602 = vxpose.xlu0.b32.end [16/16] 0.0, 128
        %v1603 = vpop.trf.xlu0
        %v1604 = vpop.trf.xlu0
        %v1605 = vpop.trf.xlu0
        %v1606 = vpop.trf.xlu0
        %v1607 = vpop.trf.xlu0
        %v1608 = vpop.trf.xlu0
        %v1609 = vpop.trf.xlu0
        %v1610 = vpop.trf.xlu0
        %v1611 = vpop.trf.xlu0
        %v1612 = vpop.trf.xlu0
        %v1613 = vpop.trf.xlu0
        %v1614 = vpop.trf.xlu0
        %v1615 = vpop.trf.xlu0
        %v1616 = vpop.trf.xlu0
        %v1617 = vpop.trf.xlu0
        %v1618 = vpop.trf.xlu0
        %v1619 = vsel %vm1257, %v1603, -inf
        %1620 = vmax.xlane.f32.xlu0 %v1619
        %v1621 = vpop.xlane.xlu0 %1620
        %v1622 = vsel %vm1257, %v1604, -inf
        %1623 = vmax.xlane.f32.xlu0 %v1622
        %v1624 = vpop.xlane.xlu0 %1623
        %v1625 = vsub.f32 %v1603, %v1621
        %v1626 = vsub.f32 %v1604, %v1624
        %v1627 = vpack.c.bf16 %v1626, %v1625
        %v1629 = vmul.bf16 %v1627, 1069105081
        %v1630 = vpow.bf16.pop %v1629
        %v1631 = vunpack.c.l.bf16 %v1630
        %v1632 = vunpack.c.h.bf16 %v1630
        %v1633 = vsel %vm1257, %v1631, 0.0
        %1634 = vadd.xlane.f32.xlu0 %v1633
        %v1635 = vpop.xlane.xlu0 %1634
        %v1636 = vsel %vm1257, %v1632, 0.0
        %1637 = vadd.xlane.f32.xlu0 %v1636
        %v1638 = vpop.xlane.xlu0 %1637
        %1640 = vrot.lane.b32.xlu0 %v1206, 96
        %v1641 = vpop.permute.xlu0 %1640
        %v1644 = vsel %vm1257, %v1630, 0
        %1646 = vmatprep.subr.bf16.mxu0 0
        %1647 = vmatpush1.bf16.msra.mxu0 0
        %1648 = vmatprep.subr.bf16.mxu0 0
        %1649 = vmatpush1.bf16.msra.mxu0 0
        %1650 = vmatprep.subr.bf16.mxu0 0
        %1651 = vmatpush1.bf16.msra.mxu0 0
        %1652 = vmatprep.subr.bf16.mxu0 0
        %1653 = vmatpush1.bf16.msra.mxu0 0
        %1654 = vmatprep.subr.bf16.mxu0 0
        %1655 = vmatpush1.bf16.msra.mxu0 0
        %1656 = vmatprep.subr.bf16.mxu0 0
        %1657 = vmatpush1.bf16.msra.mxu0 0
        %1658 = vmatprep.subr.bf16.mxu0 0
        %1659 = vmatpush1.bf16.msra.mxu0 0
        %1660 = vmatprep.subr.bf16.mxu0 0
        %1661 = vmatpush1.bf16.msra.mxu0 %v1641
        %1662 = vmatprep.subr.bf16.mxu0 0
        %1663 = vmatpush2.bf16.msra.mxu0 0
        %1664 = vmatprep.subr.bf16.mxu0 0
        %1665 = vmatpush2.bf16.msra.mxu0 0
        %1666 = vmatprep.subr.bf16.mxu0 0
        %1667 = vmatpush2.bf16.msra.mxu0 0
        %1668 = vmatprep.subr.bf16.mxu0 0
        %1669 = vmatpush2.bf16.msra.mxu0 0
        %1670 = vmatprep.subr.bf16.mxu0 0
        %1671 = vmatpush2.bf16.msra.mxu0 0
        %1672 = vmatprep.subr.bf16.mxu0 0
        %1673 = vmatpush2.bf16.msra.mxu0 0
        %1674 = vmatprep.subr.bf16.mxu0 0
        %1675 = vmatpush2.bf16.msra.mxu0 0
        %1676 = vmatprep.subr.bf16.mxu0 0
        %1677 = vmatpush2.bf16.msra.mxu0 0
        %1678 = vmatprep.mubr.bf16.mxu0 0
        %1679 = vmatmul.mubr.bf16.gmra.mxu0 %v1644
        %v1680 = vpop.f32.mrf.mxu0
        %v1681 = vadd.f32 0.0, %v1680
        %v1682 = vpop.f32.mrf.mxu0
        %v1683 = vpop.f32.mrf.mxu0
        %v1684 = vadd.f32 0.0, %v1683
        %v1685 = vpop.f32.mrf.mxu0
        %1686 = vdwg.mxu0
        %v1687 = vrcp.pop %v1635
        %v1688 = vrcp.pop %v1638
        %v1689 = vmul.f32 %v1681, %v1687
        %v1690 = vmul.f32 %v1684, %v1688
        %v1691 = vpack.c.bf16 %v1690, %v1689
        %v1693 = vunpack.c.l.b16 %v1691
        %v1694 = vunpack.c.h.b16 %v1691
        %v1695 = vpack.c.b16 %v1693, %v1693
        %v1696 = vpack.c.b16 %v1694, %v1694
        %1697 = vrot.lane.b32.xlu0 %v1695, 32
        %v1698 = vpop.permute.xlu0 %1697
        %1699 = vrot.lane.b32.xlu0 %v1696, 32
        %v1700 = vpop.permute.xlu0 %1699
        %1703 = vst.msk [vmem:[#allocation2] sm:$0xf] %vm1584, %v1698
        %1704 = vst.msk [vmem:[#allocation2 + $0x4] sm:$0xf] %vm1584, %v1700
        %1705 = vrot.lane.b32.xlu0 %v1205, 64
        %v1706 = vpop.permute.xlu0 %1705
        %1707 = vrot.lane.b32.xlu0 %v1207, 64
        %v1708 = vpop.permute.xlu0 %1707
        %v1710 = vsel %vm1209, %v1706, 0
        %v1713 = vsel %vm1209, %v1708, 0
        %1715 = vmatprep.subr.bf16.mxu0 0
        %1716 = vmatpush1.bf16.xpose.msra.mxu0 0
        %1717 = vmatprep.subr.bf16.mxu0 0
        %1718 = vmatpush1.bf16.xpose.msra.mxu0 0
        %1719 = vmatprep.subr.bf16.mxu0 0
        %1720 = vmatpush1.bf16.xpose.msra.mxu0 0
        %1721 = vmatprep.subr.bf16.mxu0 0
        %1722 = vmatpush1.bf16.xpose.msra.mxu0 0
        %1723 = vmatprep.subr.bf16.mxu0 0
        %1724 = vmatpush1.bf16.xpose.msra.mxu0 0
        %1725 = vmatprep.subr.bf16.mxu0 0
        %1726 = vmatpush1.bf16.xpose.msra.mxu0 0
        %1727 = vmatprep.subr.bf16.mxu0 0
        %1728 = vmatpush1.bf16.xpose.msra.mxu0 0
        %1729 = vmatprep.subr.bf16.mxu0 0
        %1730 = vmatpush1.bf16.xpose.msra.mxu0 %v1713
        %1731 = vmatprep.subr.bf16.mxu0 0
        %1732 = vmatpush2.bf16.xpose.msra.mxu0 0
        %1733 = vmatprep.subr.bf16.mxu0 0
        %1734 = vmatpush2.bf16.xpose.msra.mxu0 0
        %1735 = vmatprep.subr.bf16.mxu0 0
        %1736 = vmatpush2.bf16.xpose.msra.mxu0 0
        %1737 = vmatprep.subr.bf16.mxu0 0
        %1738 = vmatpush2.bf16.xpose.msra.mxu0 0
        %1739 = vmatprep.subr.bf16.mxu0 0
        %1740 = vmatpush2.bf16.xpose.msra.mxu0 0
        %1741 = vmatprep.subr.bf16.mxu0 0
        %1742 = vmatpush2.bf16.xpose.msra.mxu0 0
        %1743 = vmatprep.subr.bf16.mxu0 0
        %1744 = vmatpush2.bf16.xpose.msra.mxu0 0
        %1745 = vmatprep.subr.bf16.mxu0 0
        %1746 = vmatpush2.bf16.xpose.msra.mxu0 0
        %1747 = vmatprep.mubr.bf16.mxu0 0
        %1748 = vmatmul.mubr.bf16.gmra.mxu0 %v1710
        %v1749 = vpop.f32.mrf.mxu0
        %v1750 = vadd.f32 0.0, %v1749
        %v1751 = vpop.f32.mrf.mxu0
        %v1752 = vpop.f32.mrf.mxu0
        %v1753 = vadd.f32 0.0, %v1752
        %v1754 = vpop.f32.mrf.mxu0
        %1755 = vdwg.mxu0
        %v1756 = vsel %vm1257, %v1750, -inf
        %1757 = vmax.xlane.f32.xlu0 %v1756
        %v1758 = vpop.xlane.xlu0 %1757
        %v1759 = vsel %vm1257, %v1753, -inf
        %1760 = vmax.xlane.f32.xlu0 %v1759
        %v1761 = vpop.xlane.xlu0 %1760
        %v1762 = vsub.f32 %v1750, %v1758
        %v1763 = vsub.f32 %v1753, %v1761
        %v1764 = vpack.c.bf16 %v1763, %v1762
        %v1766 = vmul.bf16 %v1764, 1069105081
        %v1767 = vpow.bf16.pop %v1766
        %v1768 = vunpack.c.l.bf16 %v1767
        %v1769 = vunpack.c.h.bf16 %v1767
        %v1770 = vsel %vm1257, %v1768, 0.0
        %1771 = vadd.xlane.f32.xlu0 %v1770
        %v1772 = vpop.xlane.xlu0 %1771
        %v1773 = vsel %vm1257, %v1769, 0.0
        %1774 = vadd.xlane.f32.xlu0 %v1773
        %v1775 = vpop.xlane.xlu0 %1774
        %1776 = vrot.lane.b32.xlu0 %v1208, 64
        %v1777 = vpop.permute.xlu0 %1776
        %v1780 = vsel %vm1257, %v1767, 0
        %1782 = vmatprep.subr.bf16.mxu0 0
        %1783 = vmatpush1.bf16.msra.mxu0 0
        %1784 = vmatprep.subr.bf16.mxu0 0
        %1785 = vmatpush1.bf16.msra.mxu0 0
        %1786 = vmatprep.subr.bf16.mxu0 0
        %1787 = vmatpush1.bf16.msra.mxu0 0
        %1788 = vmatprep.subr.bf16.mxu0 0
        %1789 = vmatpush1.bf16.msra.mxu0 0
        %1790 = vmatprep.subr.bf16.mxu0 0
        %1791 = vmatpush1.bf16.msra.mxu0 0
        %1792 = vmatprep.subr.bf16.mxu0 0
        %1793 = vmatpush1.bf16.msra.mxu0 0
        %1794 = vmatprep.subr.bf16.mxu0 0
        %1795 = vmatpush1.bf16.msra.mxu0 0
        %1796 = vmatprep.subr.bf16.mxu0 0
        %1797 = vmatpush1.bf16.msra.mxu0 %v1777
        %1798 = vmatprep.subr.bf16.mxu0 0
        %1799 = vmatpush2.bf16.msra.mxu0 0
        %1800 = vmatprep.subr.bf16.mxu0 0
        %1801 = vmatpush2.bf16.msra.mxu0 0
        %1802 = vmatprep.subr.bf16.mxu0 0
        %1803 = vmatpush2.bf16.msra.mxu0 0
        %1804 = vmatprep.subr.bf16.mxu0 0
        %1805 = vmatpush2.bf16.msra.mxu0 0
        %1806 = vmatprep.subr.bf16.mxu0 0
        %1807 = vmatpush2.bf16.msra.mxu0 0
        %1808 = vmatprep.subr.bf16.mxu0 0
        %1809 = vmatpush2.bf16.msra.mxu0 0
        %1810 = vmatprep.subr.bf16.mxu0 0
        %1811 = vmatpush2.bf16.msra.mxu0 0
        %1812 = vmatprep.subr.bf16.mxu0 0
        %1813 = vmatpush2.bf16.msra.mxu0 0
        %1814 = vmatprep.mubr.bf16.mxu0 0
        %1815 = vmatmul.mubr.bf16.gmra.mxu0 %v1780
        %v1816 = vpop.f32.mrf.mxu0
        %v1817 = vadd.f32 0.0, %v1816
        %v1818 = vpop.f32.mrf.mxu0
        %v1819 = vpop.f32.mrf.mxu0
        %v1820 = vadd.f32 0.0, %v1819
        %v1821 = vpop.f32.mrf.mxu0
        %1822 = vdwg.mxu0
        %v1823 = vrcp.pop %v1772
        %v1824 = vrcp.pop %v1775
        %v1825 = vmul.f32 %v1817, %v1823
        %v1826 = vmul.f32 %v1820, %v1824
        %v1827 = vpack.c.bf16 %v1826, %v1825
        %v1829 = vunpack.c.l.b16 %v1827
        %v1830 = vunpack.c.h.b16 %v1827
        %v1831 = vpack.c.b16 %v1829, %v1829
        %v1832 = vpack.c.b16 %v1830, %v1830
        %1833 = vrot.lane.b32.xlu0 %v1831, 64
        %v1834 = vpop.permute.xlu0 %1833
        %1835 = vrot.lane.b32.xlu0 %v1832, 64
        %v1836 = vpop.permute.xlu0 %1835
        %vm1839 = vcmask 781824
        %1840 = vst.msk [vmem:[#allocation3] sm:$0xf] %vm1839, %v1834
        %1841 = vst.msk [vmem:[#allocation3 + $0x4] sm:$0xf] %vm1839, %v1836
        %1842 = vxpose.xlu0.b32.start [1/16] %v1750, 128
        %1843 = vxpose.xlu0.b32.cont [2/16] %v1753, 128
        %1844 = vxpose.xlu0.b32.cont [3/16] 0.0, 128
        %1845 = vxpose.xlu0.b32.cont [4/16] 0.0, 128
        %1846 = vxpose.xlu0.b32.cont [5/16] 0.0, 128
        %1847 = vxpose.xlu0.b32.cont [6/16] 0.0, 128
        %1848 = vxpose.xlu0.b32.cont [7/16] 0.0, 128
        %1849 = vxpose.xlu0.b32.cont [8/16] 0.0, 128
        %1850 = vxpose.xlu0.b32.cont [9/16] 0.0, 128
        %1851 = vxpose.xlu0.b32.cont [10/16] 0.0, 128
        %1852 = vxpose.xlu0.b32.cont [11/16] 0.0, 128
        %1853 = vxpose.xlu0.b32.cont [12/16] 0.0, 128
        %1854 = vxpose.xlu0.b32.cont [13/16] 0.0, 128
        %1855 = vxpose.xlu0.b32.cont [14/16] 0.0, 128
        %1856 = vxpose.xlu0.b32.cont [15/16] 0.0, 128
        %1857 = vxpose.xlu0.b32.end [16/16] 0.0, 128
        %v1858 = vpop.trf.xlu0
        %v1859 = vpop.trf.xlu0
        %v1860 = vpop.trf.xlu0
        %v1861 = vpop.trf.xlu0
        %v1862 = vpop.trf.xlu0
        %v1863 = vpop.trf.xlu0
        %v1864 = vpop.trf.xlu0
        %v1865 = vpop.trf.xlu0
        %v1866 = vpop.trf.xlu0
        %v1867 = vpop.trf.xlu0
        %v1868 = vpop.trf.xlu0
        %v1869 = vpop.trf.xlu0
        %v1870 = vpop.trf.xlu0
        %v1871 = vpop.trf.xlu0
        %v1872 = vpop.trf.xlu0
        %v1873 = vpop.trf.xlu0
        %v1874 = vsel %vm1257, %v1858, -inf
        %1875 = vmax.xlane.f32.xlu0 %v1874
        %v1876 = vpop.xlane.xlu0 %1875
        %v1877 = vsel %vm1257, %v1859, -inf
        %1878 = vmax.xlane.f32.xlu0 %v1877
        %v1879 = vpop.xlane.xlu0 %1878
        %v1880 = vsub.f32 %v1858, %v1876
        %v1881 = vsub.f32 %v1859, %v1879
        %v1882 = vpack.c.bf16 %v1881, %v1880
        %v1884 = vmul.bf16 %v1882, 1069105081
        %v1885 = vpow.bf16.pop %v1884
        %v1886 = vunpack.c.l.bf16 %v1885
        %v1887 = vunpack.c.h.bf16 %v1885
        %v1888 = vsel %vm1257, %v1886, 0.0
        %1889 = vadd.xlane.f32.xlu0 %v1888
        %v1890 = vpop.xlane.xlu0 %1889
        %v1891 = vsel %vm1257, %v1887, 0.0
        %1892 = vadd.xlane.f32.xlu0 %v1891
        %v1893 = vpop.xlane.xlu0 %1892
        %1894 = vrot.lane.b32.xlu0 %v1206, 64
        %v1895 = vpop.permute.xlu0 %1894
        %v1898 = vsel %vm1257, %v1885, 0
        %1900 = vmatprep.subr.bf16.mxu0 0
        %1901 = vmatpush1.bf16.msra.mxu0 0
        %1902 = vmatprep.subr.bf16.mxu0 0
        %1903 = vmatpush1.bf16.msra.mxu0 0
        %1904 = vmatprep.subr.bf16.mxu0 0
        %1905 = vmatpush1.bf16.msra.mxu0 0
        %1906 = vmatprep.subr.bf16.mxu0 0
        %1907 = vmatpush1.bf16.msra.mxu0 0
        %1908 = vmatprep.subr.bf16.mxu0 0
        %1909 = vmatpush1.bf16.msra.mxu0 0
        %1910 = vmatprep.subr.bf16.mxu0 0
        %1911 = vmatpush1.bf16.msra.mxu0 0
        %1912 = vmatprep.subr.bf16.mxu0 0
        %1913 = vmatpush1.bf16.msra.mxu0 0
        %1914 = vmatprep.subr.bf16.mxu0 0
        %1915 = vmatpush1.bf16.msra.mxu0 %v1895
        %1916 = vmatprep.subr.bf16.mxu0 0
        %1917 = vmatpush2.bf16.msra.mxu0 0
        %1918 = vmatprep.subr.bf16.mxu0 0
        %1919 = vmatpush2.bf16.msra.mxu0 0
        %1920 = vmatprep.subr.bf16.mxu0 0
        %1921 = vmatpush2.bf16.msra.mxu0 0
        %1922 = vmatprep.subr.bf16.mxu0 0
        %1923 = vmatpush2.bf16.msra.mxu0 0
        %1924 = vmatprep.subr.bf16.mxu0 0
        %1925 = vmatpush2.bf16.msra.mxu0 0
        %1926 = vmatprep.subr.bf16.mxu0 0
        %1927 = vmatpush2.bf16.msra.mxu0 0
        %1928 = vmatprep.subr.bf16.mxu0 0
        %1929 = vmatpush2.bf16.msra.mxu0 0
        %1930 = vmatprep.subr.bf16.mxu0 0
        %1931 = vmatpush2.bf16.msra.mxu0 0
        %1932 = vmatprep.mubr.bf16.mxu0 0
        %1933 = vmatmul.mubr.bf16.gmra.mxu0 %v1898
        %v1934 = vpop.f32.mrf.mxu0
        %v1935 = vadd.f32 0.0, %v1934
        %v1936 = vpop.f32.mrf.mxu0
        %v1937 = vpop.f32.mrf.mxu0
        %v1938 = vadd.f32 0.0, %v1937
        %v1939 = vpop.f32.mrf.mxu0
        %1940 = vdwg.mxu0
        %v1941 = vrcp.pop %v1890
        %v1942 = vrcp.pop %v1893
        %v1943 = vmul.f32 %v1935, %v1941
        %v1944 = vmul.f32 %v1938, %v1942
        %v1945 = vpack.c.bf16 %v1944, %v1943
        %v1947 = vunpack.c.l.b16 %v1945
        %v1948 = vunpack.c.h.b16 %v1945
        %v1949 = vpack.c.b16 %v1947, %v1947
        %v1950 = vpack.c.b16 %v1948, %v1948
        %1951 = vrot.lane.b32.xlu0 %v1949, 64
        %v1952 = vpop.permute.xlu0 %1951
        %1953 = vrot.lane.b32.xlu0 %v1950, 64
        %v1954 = vpop.permute.xlu0 %1953
        %1957 = vst.msk [vmem:[#allocation2] sm:$0xf] %vm1839, %v1952
        %1958 = vst.msk [vmem:[#allocation2 + $0x4] sm:$0xf] %vm1839, %v1954
        %1959 = vrot.lane.b32.xlu0 %v1205, 32
        %v1960 = vpop.permute.xlu0 %1959
        %1961 = vrot.lane.b32.xlu0 %v1207, 32
        %v1962 = vpop.permute.xlu0 %1961
        %v1964 = vsel %vm1209, %v1960, 0
        %v1967 = vsel %vm1209, %v1962, 0
        %1969 = vmatprep.subr.bf16.mxu0 0
        %1970 = vmatpush1.bf16.xpose.msra.mxu0 0
        %1971 = vmatprep.subr.bf16.mxu0 0
        %1972 = vmatpush1.bf16.xpose.msra.mxu0 0
        %1973 = vmatprep.subr.bf16.mxu0 0
        %1974 = vmatpush1.bf16.xpose.msra.mxu0 0
        %1975 = vmatprep.subr.bf16.mxu0 0
        %1976 = vmatpush1.bf16.xpose.msra.mxu0 0
        %1977 = vmatprep.subr.bf16.mxu0 0
        %1978 = vmatpush1.bf16.xpose.msra.mxu0 0
        %1979 = vmatprep.subr.bf16.mxu0 0
        %1980 = vmatpush1.bf16.xpose.msra.mxu0 0
        %1981 = vmatprep.subr.bf16.mxu0 0
        %1982 = vmatpush1.bf16.xpose.msra.mxu0 0
        %1983 = vmatprep.subr.bf16.mxu0 0
        %1984 = vmatpush1.bf16.xpose.msra.mxu0 %v1967
        %1985 = vmatprep.subr.bf16.mxu0 0
        %1986 = vmatpush2.bf16.xpose.msra.mxu0 0
        %1987 = vmatprep.subr.bf16.mxu0 0
        %1988 = vmatpush2.bf16.xpose.msra.mxu0 0
        %1989 = vmatprep.subr.bf16.mxu0 0
        %1990 = vmatpush2.bf16.xpose.msra.mxu0 0
        %1991 = vmatprep.subr.bf16.mxu0 0
        %1992 = vmatpush2.bf16.xpose.msra.mxu0 0
        %1993 = vmatprep.subr.bf16.mxu0 0
        %1994 = vmatpush2.bf16.xpose.msra.mxu0 0
        %1995 = vmatprep.subr.bf16.mxu0 0
        %1996 = vmatpush2.bf16.xpose.msra.mxu0 0
        %1997 = vmatprep.subr.bf16.mxu0 0
        %1998 = vmatpush2.bf16.xpose.msra.mxu0 0
        %1999 = vmatprep.subr.bf16.mxu0 0
        %2000 = vmatpush2.bf16.xpose.msra.mxu0 0
        %2001 = vmatprep.mubr.bf16.mxu0 0
        %2002 = vmatmul.mubr.bf16.gmra.mxu0 %v1964
        %v2003 = vpop.f32.mrf.mxu0
        %v2004 = vadd.f32 0.0, %v2003
        %v2005 = vpop.f32.mrf.mxu0
        %v2006 = vpop.f32.mrf.mxu0
        %v2007 = vadd.f32 0.0, %v2006
        %v2008 = vpop.f32.mrf.mxu0
        %2009 = vdwg.mxu0
        %v2010 = vsel %vm1257, %v2004, -inf
        %2011 = vmax.xlane.f32.xlu0 %v2010
        %v2012 = vpop.xlane.xlu0 %2011
        %v2013 = vsel %vm1257, %v2007, -inf
        %2014 = vmax.xlane.f32.xlu0 %v2013
        %v2015 = vpop.xlane.xlu0 %2014
        %v2016 = vsub.f32 %v2004, %v2012
        %v2017 = vsub.f32 %v2007, %v2015
        %v2018 = vpack.c.bf16 %v2017, %v2016
        %v2020 = vmul.bf16 %v2018, 1069105081
        %v2021 = vpow.bf16.pop %v2020
        %v2022 = vunpack.c.l.bf16 %v2021
        %v2023 = vunpack.c.h.bf16 %v2021
        %v2024 = vsel %vm1257, %v2022, 0.0
        %2025 = vadd.xlane.f32.xlu0 %v2024
        %v2026 = vpop.xlane.xlu0 %2025
        %v2027 = vsel %vm1257, %v2023, 0.0
        %2028 = vadd.xlane.f32.xlu0 %v2027
        %v2029 = vpop.xlane.xlu0 %2028
        %2030 = vrot.lane.b32.xlu0 %v1208, 32
        %v2031 = vpop.permute.xlu0 %2030
        %v2034 = vsel %vm1257, %v2021, 0
        %2036 = vmatprep.subr.bf16.mxu0 0
        %2037 = vmatpush1.bf16.msra.mxu0 0
        %2038 = vmatprep.subr.bf16.mxu0 0
        %2039 = vmatpush1.bf16.msra.mxu0 0
        %2040 = vmatprep.subr.bf16.mxu0 0
        %2041 = vmatpush1.bf16.msra.mxu0 0
        %2042 = vmatprep.subr.bf16.mxu0 0
        %2043 = vmatpush1.bf16.msra.mxu0 0
        %2044 = vmatprep.subr.bf16.mxu0 0
        %2045 = vmatpush1.bf16.msra.mxu0 0
        %2046 = vmatprep.subr.bf16.mxu0 0
        %2047 = vmatpush1.bf16.msra.mxu0 0
        %2048 = vmatprep.subr.bf16.mxu0 0
        %2049 = vmatpush1.bf16.msra.mxu0 0
        %2050 = vmatprep.subr.bf16.mxu0 0
        %2051 = vmatpush1.bf16.msra.mxu0 %v2031
        %2052 = vmatprep.subr.bf16.mxu0 0
        %2053 = vmatpush2.bf16.msra.mxu0 0
        %2054 = vmatprep.subr.bf16.mxu0 0
        %2055 = vmatpush2.bf16.msra.mxu0 0
        %2056 = vmatprep.subr.bf16.mxu0 0
        %2057 = vmatpush2.bf16.msra.mxu0 0
        %2058 = vmatprep.subr.bf16.mxu0 0
        %2059 = vmatpush2.bf16.msra.mxu0 0
        %2060 = vmatprep.subr.bf16.mxu0 0
        %2061 = vmatpush2.bf16.msra.mxu0 0
        %2062 = vmatprep.subr.bf16.mxu0 0
        %2063 = vmatpush2.bf16.msra.mxu0 0
        %2064 = vmatprep.subr.bf16.mxu0 0
        %2065 = vmatpush2.bf16.msra.mxu0 0
        %2066 = vmatprep.subr.bf16.mxu0 0
        %2067 = vmatpush2.bf16.msra.mxu0 0
        %2068 = vmatprep.mubr.bf16.mxu0 0
        %2069 = vmatmul.mubr.bf16.gmra.mxu0 %v2034
        %v2070 = vpop.f32.mrf.mxu0
        %v2071 = vadd.f32 0.0, %v2070
        %v2072 = vpop.f32.mrf.mxu0
        %v2073 = vpop.f32.mrf.mxu0
        %v2074 = vadd.f32 0.0, %v2073
        %v2075 = vpop.f32.mrf.mxu0
        %2076 = vdwg.mxu0
        %v2077 = vrcp.pop %v2026
        %v2078 = vrcp.pop %v2029
        %v2079 = vmul.f32 %v2071, %v2077
        %v2080 = vmul.f32 %v2074, %v2078
        %v2081 = vpack.c.bf16 %v2080, %v2079
        %v2083 = vunpack.c.l.b16 %v2081
        %v2084 = vunpack.c.h.b16 %v2081
        %v2085 = vpack.c.b16 %v2083, %v2083
        %v2086 = vpack.c.b16 %v2084, %v2084
        %2087 = vrot.lane.b32.xlu0 %v2085, 96
        %v2088 = vpop.permute.xlu0 %2087
        %2089 = vrot.lane.b32.xlu0 %v2086, 96
        %v2090 = vpop.permute.xlu0 %2089
        %vm2093 = vcmask 1044224
        %2094 = vst.msk [vmem:[#allocation3] sm:$0xf] %vm2093, %v2088
        %2095 = vst.msk [vmem:[#allocation3 + $0x4] sm:$0xf] %vm2093, %v2090
        %2096 = vxpose.xlu0.b32.start [1/16] %v2004, 128
        %2097 = vxpose.xlu0.b32.cont [2/16] %v2007, 128
        %2098 = vxpose.xlu0.b32.cont [3/16] 0.0, 128
        %2099 = vxpose.xlu0.b32.cont [4/16] 0.0, 128
        %2100 = vxpose.xlu0.b32.cont [5/16] 0.0, 128
        %2101 = vxpose.xlu0.b32.cont [6/16] 0.0, 128
        %2102 = vxpose.xlu0.b32.cont [7/16] 0.0, 128
        %2103 = vxpose.xlu0.b32.cont [8/16] 0.0, 128
        %2104 = vxpose.xlu0.b32.cont [9/16] 0.0, 128
        %2105 = vxpose.xlu0.b32.cont [10/16] 0.0, 128
        %2106 = vxpose.xlu0.b32.cont [11/16] 0.0, 128
        %2107 = vxpose.xlu0.b32.cont [12/16] 0.0, 128
        %2108 = vxpose.xlu0.b32.cont [13/16] 0.0, 128
        %2109 = vxpose.xlu0.b32.cont [14/16] 0.0, 128
        %2110 = vxpose.xlu0.b32.cont [15/16] 0.0, 128
        %2111 = vxpose.xlu0.b32.end [16/16] 0.0, 128
        %v2112 = vpop.trf.xlu0
        %v2113 = vpop.trf.xlu0
        %v2114 = vpop.trf.xlu0
        %v2115 = vpop.trf.xlu0
        %v2116 = vpop.trf.xlu0
        %v2117 = vpop.trf.xlu0
        %v2118 = vpop.trf.xlu0
        %v2119 = vpop.trf.xlu0
        %v2120 = vpop.trf.xlu0
        %v2121 = vpop.trf.xlu0
        %v2122 = vpop.trf.xlu0
        %v2123 = vpop.trf.xlu0
        %v2124 = vpop.trf.xlu0
        %v2125 = vpop.trf.xlu0
        %v2126 = vpop.trf.xlu0
        %v2127 = vpop.trf.xlu0
        %v2128 = vsel %vm1257, %v2112, -inf
        %2129 = vmax.xlane.f32.xlu0 %v2128
        %v2130 = vpop.xlane.xlu0 %2129
        %v2131 = vsel %vm1257, %v2113, -inf
        %2132 = vmax.xlane.f32.xlu0 %v2131
        %v2133 = vpop.xlane.xlu0 %2132
        %v2134 = vsub.f32 %v2112, %v2130
        %v2135 = vsub.f32 %v2113, %v2133
        %v2136 = vpack.c.bf16 %v2135, %v2134
        %v2138 = vmul.bf16 %v2136, 1069105081
        %v2139 = vpow.bf16.pop %v2138
        %v2140 = vunpack.c.l.bf16 %v2139
        %v2141 = vunpack.c.h.bf16 %v2139
        %v2142 = vsel %vm1257, %v2140, 0.0
        %2143 = vadd.xlane.f32.xlu0 %v2142
        %v2144 = vpop.xlane.xlu0 %2143
        %v2145 = vsel %vm1257, %v2141, 0.0
        %2146 = vadd.xlane.f32.xlu0 %v2145
        %v2147 = vpop.xlane.xlu0 %2146
        %2148 = vrot.lane.b32.xlu0 %v1206, 32
        %v2149 = vpop.permute.xlu0 %2148
        %v2152 = vsel %vm1257, %v2139, 0
        %2154 = vmatprep.subr.bf16.mxu0 0
        %2155 = vmatpush1.bf16.msra.mxu0 0
        %2156 = vmatprep.subr.bf16.mxu0 0
        %2157 = vmatpush1.bf16.msra.mxu0 0
        %2158 = vmatprep.subr.bf16.mxu0 0
        %2159 = vmatpush1.bf16.msra.mxu0 0
        %2160 = vmatprep.subr.bf16.mxu0 0
        %2161 = vmatpush1.bf16.msra.mxu0 0
        %2162 = vmatprep.subr.bf16.mxu0 0
        %2163 = vmatpush1.bf16.msra.mxu0 0
        %2164 = vmatprep.subr.bf16.mxu0 0
        %2165 = vmatpush1.bf16.msra.mxu0 0
        %2166 = vmatprep.subr.bf16.mxu0 0
        %2167 = vmatpush1.bf16.msra.mxu0 0
        %2168 = vmatprep.subr.bf16.mxu0 0
        %2169 = vmatpush1.bf16.msra.mxu0 %v2149
        %2170 = vmatprep.subr.bf16.mxu0 0
        %2171 = vmatpush2.bf16.msra.mxu0 0
        %2172 = vmatprep.subr.bf16.mxu0 0
        %2173 = vmatpush2.bf16.msra.mxu0 0
        %2174 = vmatprep.subr.bf16.mxu0 0
        %2175 = vmatpush2.bf16.msra.mxu0 0
        %2176 = vmatprep.subr.bf16.mxu0 0
        %2177 = vmatpush2.bf16.msra.mxu0 0
        %2178 = vmatprep.subr.bf16.mxu0 0
        %2179 = vmatpush2.bf16.msra.mxu0 0
        %2180 = vmatprep.subr.bf16.mxu0 0
        %2181 = vmatpush2.bf16.msra.mxu0 0
        %2182 = vmatprep.subr.bf16.mxu0 0
        %2183 = vmatpush2.bf16.msra.mxu0 0
        %2184 = vmatprep.subr.bf16.mxu0 0
        %2185 = vmatpush2.bf16.msra.mxu0 0
        %2186 = vmatprep.mubr.bf16.mxu0 0
        %2187 = vmatmul.mubr.bf16.gmra.mxu0 %v2152
        %v2188 = vpop.f32.mrf.mxu0
        %v2189 = vadd.f32 0.0, %v2188
        %v2190 = vpop.f32.mrf.mxu0
        %v2191 = vpop.f32.mrf.mxu0
        %v2192 = vadd.f32 0.0, %v2191
        %v2193 = vpop.f32.mrf.mxu0
        %2194 = vdwg.mxu0
        %v2195 = vrcp.pop %v2144
        %v2196 = vrcp.pop %v2147
        %v2197 = vmul.f32 %v2189, %v2195
        %v2198 = vmul.f32 %v2192, %v2196
        %v2199 = vpack.c.bf16 %v2198, %v2197
        %v2201 = vunpack.c.l.b16 %v2199
        %v2202 = vunpack.c.h.b16 %v2199
        %v2203 = vpack.c.b16 %v2201, %v2201
        %v2204 = vpack.c.b16 %v2202, %v2202
        %2205 = vrot.lane.b32.xlu0 %v2203, 96
        %v2206 = vpop.permute.xlu0 %2205
        %2207 = vrot.lane.b32.xlu0 %v2204, 96
        %v2208 = vpop.permute.xlu0 %2207
        %2211 = vst.msk [vmem:[#allocation2] sm:$0xf] %vm2093, %v2206
        %2212 = vst.msk [vmem:[#allocation2 + $0x4] sm:$0xf] %vm2093, %v2208
        %v2213 = vld [vmem:[#allocation2] sm:$0xf]
        %v2214 = vld [vmem:[#allocation2 + $0x4] sm:$0xf]
        %v2215 = vld [vmem:[#allocation12] sm:$0xf]
        %v2216 = vld [vmem:[#allocation12 + $0x4] sm:$0xf]
        %v2217 = vld [vmem:[#allocation12 + $0x8] sm:$0xf]
        %v2218 = vld [vmem:[#allocation12 + $0xc] sm:$0xf]
        %v2219 = vld [vmem:[#allocation12 + $0x10] sm:$0xf]
        %v2220 = vld [vmem:[#allocation12 + $0x14] sm:$0xf]
        %v2221 = vld [vmem:[#allocation12 + $0x18] sm:$0xf]
        %v2222 = vld [vmem:[#allocation12 + $0x1c] sm:$0xf]
        %v2223 = vld [vmem:[#allocation12 + $0x20] sm:$0xf]
        %v2224 = vld [vmem:[#allocation12 + $0x24] sm:$0xf]
        %v2225 = vld [vmem:[#allocation12 + $0x28] sm:$0xf]
        %v2226 = vld [vmem:[#allocation12 + $0x2c] sm:$0xf]
        %v2227 = vld [vmem:[#allocation12 + $0x30] sm:$0xf]
        %v2228 = vld [vmem:[#allocation12 + $0x34] sm:$0xf]
        %v2229 = vld [vmem:[#allocation12 + $0x38] sm:$0xf]
        %v2230 = vld [vmem:[#allocation12 + $0x3c] sm:$0xf]
        %v2231 = vld [vmem:[%s7] sm:$0x1]
        %v2233 = vlaneseq
        %v2234 = vshrl.u32 %v2233, 7
        %v2235 = vsub.s32 0, %v2234
        %v2236 = vrot.slane %v2231, %v2235
        %v2240 = vunpack.c.l.b16 %v2213
        %v2241 = vunpack.c.l.b16 %v2214
        %v2242 = vpack.c.b16 %v2241, %v2240
        %v2260 = vunpack.c.l.b16 %v2215
        %v2261 = vunpack.c.l.b16 %v2216
        %v2262 = vunpack.c.l.b16 %v2217
        %v2263 = vunpack.c.l.b16 %v2218
        %v2264 = vunpack.c.l.b16 %v2219
        %v2265 = vunpack.c.l.b16 %v2220
        %v2266 = vunpack.c.l.b16 %v2221
        %v2267 = vunpack.c.l.b16 %v2222
        %v2268 = vunpack.c.l.b16 %v2223
        %v2269 = vunpack.c.l.b16 %v2224
        %v2270 = vunpack.c.l.b16 %v2225
        %v2271 = vunpack.c.l.b16 %v2226
        %v2272 = vunpack.c.l.b16 %v2227
        %v2273 = vunpack.c.l.b16 %v2228
        %v2274 = vunpack.c.l.b16 %v2229
        %v2275 = vunpack.c.l.b16 %v2230
        %v2276 = vpack.c.b16 %v2261, %v2260
        %v2277 = vpack.c.b16 %v2263, %v2262
        %v2278 = vpack.c.b16 %v2265, %v2264
        %v2279 = vpack.c.b16 %v2267, %v2266
        %v2280 = vpack.c.b16 %v2269, %v2268
        %v2281 = vpack.c.b16 %v2271, %v2270
        %v2282 = vpack.c.b16 %v2273, %v2272
        %v2283 = vpack.c.b16 %v2275, %v2274
        %2292 = vmatprep.subr.bf16.mxu0 0
        %2293 = vmatpush1.bf16.msra.mxu0 %v2283
        %2294 = vmatprep.subr.bf16.mxu0 0
        %2295 = vmatpush1.bf16.msra.mxu0 %v2282
        %2296 = vmatprep.subr.bf16.mxu0 0
        %2297 = vmatpush1.bf16.msra.mxu0 %v2281
        %2298 = vmatprep.subr.bf16.mxu0 0
        %2299 = vmatpush1.bf16.msra.mxu0 %v2280
        %2300 = vmatprep.subr.bf16.mxu0 0
        %2301 = vmatpush1.bf16.msra.mxu0 %v2279
        %2302 = vmatprep.subr.bf16.mxu0 0
        %2303 = vmatpush1.bf16.msra.mxu0 %v2278
        %2304 = vmatprep.subr.bf16.mxu0 0
        %2305 = vmatpush1.bf16.msra.mxu0 %v2277
        %2306 = vmatprep.subr.bf16.mxu0 0
        %2307 = vmatpush1.bf16.msra.mxu0 %v2276
        %2308 = vmatprep.subr.bf16.mxu0 0
        %2309 = vmatpush2.bf16.msra.mxu0 0
        %2310 = vmatprep.subr.bf16.mxu0 0
        %2311 = vmatpush2.bf16.msra.mxu0 0
        %2312 = vmatprep.subr.bf16.mxu0 0
        %2313 = vmatpush2.bf16.msra.mxu0 0
        %2314 = vmatprep.subr.bf16.mxu0 0
        %2315 = vmatpush2.bf16.msra.mxu0 0
        %2316 = vmatprep.subr.bf16.mxu0 0
        %2317 = vmatpush2.bf16.msra.mxu0 0
        %2318 = vmatprep.subr.bf16.mxu0 0
        %2319 = vmatpush2.bf16.msra.mxu0 0
        %2320 = vmatprep.subr.bf16.mxu0 0
        %2321 = vmatpush2.bf16.msra.mxu0 0
        %2322 = vmatprep.subr.bf16.mxu0 0
        %2323 = vmatpush2.bf16.msra.mxu0 0
        %2324 = vmatprep.mubr.bf16.mxu0 0
        %2325 = vmatmul.mubr.bf16.gmra.mxu0 %v2242
        %v2326 = vpop.f32.mrf.mxu0
        %v2327 = vadd.f32 %v2236, %v2326
        %v2328 = vpop.f32.mrf.mxu0
        %v2329 = vpop.f32.mrf.mxu0
        %v2330 = vadd.f32 %v2236, %v2329
        %v2331 = vpop.f32.mrf.mxu0
        %2332 = vdwg.mxu0
        %v2333 = vadd.f32 %v2327, %v897
        %v2334 = vadd.f32 %v2330, %v898
        %v2335 = vld [vmem:[#allocation3] sm:$0xf]
        %v2336 = vld [vmem:[#allocation3 + $0x4] sm:$0xf]
        %v2337 = vld [vmem:[#allocation13] sm:$0xf]
        %v2338 = vld [vmem:[#allocation13 + $0x4] sm:$0xf]
        %v2339 = vld [vmem:[#allocation13 + $0x8] sm:$0xf]
        %v2340 = vld [vmem:[#allocation13 + $0xc] sm:$0xf]
        %v2341 = vld [vmem:[#allocation13 + $0x10] sm:$0xf]
        %v2342 = vld [vmem:[#allocation13 + $0x14] sm:$0xf]
        %v2343 = vld [vmem:[#allocation13 + $0x18] sm:$0xf]
        %v2344 = vld [vmem:[#allocation13 + $0x1c] sm:$0xf]
        %v2345 = vld [vmem:[#allocation13 + $0x20] sm:$0xf]
        %v2346 = vld [vmem:[#allocation13 + $0x24] sm:$0xf]
        %v2347 = vld [vmem:[#allocation13 + $0x28] sm:$0xf]
        %v2348 = vld [vmem:[#allocation13 + $0x2c] sm:$0xf]
        %v2349 = vld [vmem:[#allocation13 + $0x30] sm:$0xf]
        %v2350 = vld [vmem:[#allocation13 + $0x34] sm:$0xf]
        %v2351 = vld [vmem:[#allocation13 + $0x38] sm:$0xf]
        %v2352 = vld [vmem:[#allocation13 + $0x3c] sm:$0xf]
        %v2353 = vld [vmem:[%s9] sm:$0x1]
        %v2355 = vlaneseq
        %v2356 = vshrl.u32 %v2355, 7
        %v2357 = vsub.s32 0, %v2356
        %v2358 = vrot.slane %v2353, %v2357
        %v2362 = vunpack.c.l.b16 %v2335
        %v2363 = vunpack.c.l.b16 %v2336
        %v2364 = vpack.c.b16 %v2363, %v2362
        %v2382 = vunpack.c.l.b16 %v2337
        %v2383 = vunpack.c.l.b16 %v2338
        %v2384 = vunpack.c.l.b16 %v2339
        %v2385 = vunpack.c.l.b16 %v2340
        %v2386 = vunpack.c.l.b16 %v2341
        %v2387 = vunpack.c.l.b16 %v2342
        %v2388 = vunpack.c.l.b16 %v2343
        %v2389 = vunpack.c.l.b16 %v2344
        %v2390 = vunpack.c.l.b16 %v2345
        %v2391 = vunpack.c.l.b16 %v2346
        %v2392 = vunpack.c.l.b16 %v2347
        %v2393 = vunpack.c.l.b16 %v2348
        %v2394 = vunpack.c.l.b16 %v2349
        %v2395 = vunpack.c.l.b16 %v2350
        %v2396 = vunpack.c.l.b16 %v2351
        %v2397 = vunpack.c.l.b16 %v2352
        %v2398 = vpack.c.b16 %v2383, %v2382
        %v2399 = vpack.c.b16 %v2385, %v2384
        %v2400 = vpack.c.b16 %v2387, %v2386
        %v2401 = vpack.c.b16 %v2389, %v2388
        %v2402 = vpack.c.b16 %v2391, %v2390
        %v2403 = vpack.c.b16 %v2393, %v2392
        %v2404 = vpack.c.b16 %v2395, %v2394
        %v2405 = vpack.c.b16 %v2397, %v2396
        %2414 = vmatprep.subr.bf16.mxu0 0
        %2415 = vmatpush1.bf16.msra.mxu0 %v2405
        %2416 = vmatprep.subr.bf16.mxu0 0
        %2417 = vmatpush1.bf16.msra.mxu0 %v2404
        %2418 = vmatprep.subr.bf16.mxu0 0
        %2419 = vmatpush1.bf16.msra.mxu0 %v2403
        %2420 = vmatprep.subr.bf16.mxu0 0
        %2421 = vmatpush1.bf16.msra.mxu0 %v2402
        %2422 = vmatprep.subr.bf16.mxu0 0
        %2423 = vmatpush1.bf16.msra.mxu0 %v2401
        %2424 = vmatprep.subr.bf16.mxu0 0
        %2425 = vmatpush1.bf16.msra.mxu0 %v2400
        %2426 = vmatprep.subr.bf16.mxu0 0
        %2427 = vmatpush1.bf16.msra.mxu0 %v2399
        %2428 = vmatprep.subr.bf16.mxu0 0
        %2429 = vmatpush1.bf16.msra.mxu0 %v2398
        %2430 = vmatprep.subr.bf16.mxu0 0
        %2431 = vmatpush2.bf16.msra.mxu0 0
        %2432 = vmatprep.subr.bf16.mxu0 0
        %2433 = vmatpush2.bf16.msra.mxu0 0
        %2434 = vmatprep.subr.bf16.mxu0 0
        %2435 = vmatpush2.bf16.msra.mxu0 0
        %2436 = vmatprep.subr.bf16.mxu0 0
        %2437 = vmatpush2.bf16.msra.mxu0 0
        %2438 = vmatprep.subr.bf16.mxu0 0
        %2439 = vmatpush2.bf16.msra.mxu0 0
        %2440 = vmatprep.subr.bf16.mxu0 0
        %2441 = vmatpush2.bf16.msra.mxu0 0
        %2442 = vmatprep.subr.bf16.mxu0 0
        %2443 = vmatpush2.bf16.msra.mxu0 0
        %2444 = vmatprep.subr.bf16.mxu0 0
        %2445 = vmatpush2.bf16.msra.mxu0 0
        %2446 = vmatprep.mubr.bf16.mxu0 0
        %2447 = vmatmul.mubr.bf16.gmra.mxu0 %v2364
        %v2448 = vpop.f32.mrf.mxu0
        %v2449 = vadd.f32 %v2358, %v2448
        %v2450 = vpop.f32.mrf.mxu0
        %v2451 = vpop.f32.mrf.mxu0
        %v2452 = vadd.f32 %v2358, %v2451
        %v2453 = vpop.f32.mrf.mxu0
        %2454 = vdwg.mxu0
        %v2455 = vadd.f32 %v2449, %v899
        %v2456 = vadd.f32 %v2452, %v900
        %v2457 = vld [vmem:[%s10] sm:$0x1]
        %v2458 = vld [vmem:[%s11] sm:$0x1]
        %2459 = vadd.xlane.f32.xlu0 %v2333
        %v2460 = vpop.xlane.xlu0 %2459
        %2461 = vadd.xlane.f32.xlu0 %v2334
        %v2462 = vpop.xlane.xlu0 %2461
        %v2463 = vrcp.pop 128.0
        %v2464 = vmul.f32 %v2460, %v2463
        %v2465 = vmul.f32 %v2462, %v2463
        %v2466 = vsub.f32 %v2333, %v2464
        %v2467 = vsub.f32 %v2334, %v2465
        %v2468 = vmul.f32 %v2466, %v2466
        %v2469 = vmul.f32 %v2467, %v2467
        %2470 = vadd.xlane.f32.xlu0 %v2468
        %v2471 = vpop.xlane.xlu0 %2470
        %2472 = vadd.xlane.f32.xlu0 %v2469
        %v2473 = vpop.xlane.xlu0 %2472
        %v2474 = vmul.f32 %v2471, %v2463
        %v2475 = vmul.f32 %v2473, %v2463
        %v2476 = vadd.f32 %v2474, 1e-05
        %v2477 = vadd.f32 %v2475, 1e-05
        %v2478 = vrsqrt.pop %v2476
        %v2479 = vrsqrt.pop %v2477
        %v2480 = vmul.f32 %v2466, %v2478
        %v2481 = vmul.f32 %v2467, %v2479
        %v2483 = vlaneseq
        %v2484 = vshrl.u32 %v2483, 7
        %v2485 = vsub.s32 0, %v2484
        %v2486 = vrot.slane %v2457, %v2485
        %v2488 = vmul.f32 %v2480, %v2486
        %v2489 = vmul.f32 %v2481, %v2486
        %v2491 = vlaneseq
        %v2492 = vshrl.u32 %v2491, 7
        %v2493 = vsub.s32 0, %v2492
        %v2494 = vrot.slane %v2458, %v2493
        %v2496 = vadd.f32 %v2488, %v2494
        %v2497 = vadd.f32 %v2489, %v2494
        %v2498 = vld [vmem:[#allocation15] sm:$0xff]
        %v2499 = vld [vmem:[#allocation15 + $0x8] sm:$0xff]
        %v2500 = vld [vmem:[#allocation15 + $0x10] sm:$0xff]
        %v2501 = vld [vmem:[#allocation15 + $0x18] sm:$0xff]
        %v2502 = vld [vmem:[#allocation15 + $0x20] sm:$0xff]
        %v2503 = vld [vmem:[#allocation15 + $0x28] sm:$0xff]
        %v2504 = vld [vmem:[#allocation15 + $0x30] sm:$0xff]
        %v2505 = vld [vmem:[#allocation15 + $0x38] sm:$0xff]
        %v2506 = vld [vmem:[#allocation15 + $0x40] sm:$0xff]
        %v2507 = vld [vmem:[#allocation15 + $0x48] sm:$0xff]
        %v2508 = vld [vmem:[#allocation15 + $0x50] sm:$0xff]
        %v2509 = vld [vmem:[#allocation15 + $0x58] sm:$0xff]
        %v2510 = vld [vmem:[#allocation15 + $0x60] sm:$0xff]
        %v2511 = vld [vmem:[#allocation15 + $0x68] sm:$0xff]
        %v2512 = vld [vmem:[#allocation15 + $0x70] sm:$0xff]
        %v2513 = vld [vmem:[#allocation15 + $0x78] sm:$0xff]
        %v2514 = vpack.c.bf16 %v2497, %v2496
        %v2515 = vld [vmem:[%s15] sm:$0x3]
        %v2517 = vlaneseq
        %v2518 = vshrl.u32 %v2517, 7
        %v2519 = vsub.s32 0, %v2518
        %v2520 = vrot.slane %v2515, %v2519
        %v2521 = vlaneseq
        %v2522 = vshrl.u32 %v2521, 7
        %v2523 = vsub.s32 1, %v2522
        %v2524 = vrot.slane %v2515, %v2523
        %v2543 = vunpack.c.l.b16 %v2498
        %v2544 = vunpack.c.h.b16 %v2498
        %v2545 = vunpack.c.l.b16 %v2499
        %v2546 = vunpack.c.h.b16 %v2499
        %v2547 = vunpack.c.l.b16 %v2500
        %v2548 = vunpack.c.h.b16 %v2500
        %v2549 = vunpack.c.l.b16 %v2501
        %v2550 = vunpack.c.h.b16 %v2501
        %v2551 = vunpack.c.l.b16 %v2502
        %v2552 = vunpack.c.h.b16 %v2502
        %v2553 = vunpack.c.l.b16 %v2503
        %v2554 = vunpack.c.h.b16 %v2503
        %v2555 = vunpack.c.l.b16 %v2504
        %v2556 = vunpack.c.h.b16 %v2504
        %v2557 = vunpack.c.l.b16 %v2505
        %v2558 = vunpack.c.h.b16 %v2505
        %v2559 = vunpack.c.l.b16 %v2506
        %v2560 = vunpack.c.h.b16 %v2506
        %v2561 = vunpack.c.l.b16 %v2507
        %v2562 = vunpack.c.h.b16 %v2507
        %v2563 = vunpack.c.l.b16 %v2508
        %v2564 = vunpack.c.h.b16 %v2508
        %v2565 = vunpack.c.l.b16 %v2509
        %v2566 = vunpack.c.h.b16 %v2509
        %v2567 = vunpack.c.l.b16 %v2510
        %v2568 = vunpack.c.h.b16 %v2510
        %v2569 = vunpack.c.l.b16 %v2511
        %v2570 = vunpack.c.h.b16 %v2511
        %v2571 = vunpack.c.l.b16 %v2512
        %v2572 = vunpack.c.h.b16 %v2512
        %v2573 = vunpack.c.l.b16 %v2513
        %v2574 = vunpack.c.h.b16 %v2513
        %v2575 = vpack.c.b16 %v2545, %v2543
        %v2576 = vpack.c.b16 %v2546, %v2544
        %v2577 = vpack.c.b16 %v2549, %v2547
        %v2578 = vpack.c.b16 %v2550, %v2548
        %v2579 = vpack.c.b16 %v2553, %v2551
        %v2580 = vpack.c.b16 %v2554, %v2552
        %v2581 = vpack.c.b16 %v2557, %v2555
        %v2582 = vpack.c.b16 %v2558, %v2556
        %v2583 = vpack.c.b16 %v2561, %v2559
        %v2584 = vpack.c.b16 %v2562, %v2560
        %v2585 = vpack.c.b16 %v2565, %v2563
        %v2586 = vpack.c.b16 %v2566, %v2564
        %v2587 = vpack.c.b16 %v2569, %v2567
        %v2588 = vpack.c.b16 %v2570, %v2568
        %v2589 = vpack.c.b16 %v2573, %v2571
        %v2590 = vpack.c.b16 %v2574, %v2572
        %2607 = vmatprep.subr.bf16.mxu0 %v2590
        %2608 = vmatpush1.bf16.msra.mxu0 %v2589
        %2609 = vmatprep.subr.bf16.mxu0 %v2588
        %2610 = vmatpush1.bf16.msra.mxu0 %v2587
        %2611 = vmatprep.subr.bf16.mxu0 %v2586
        %2612 = vmatpush1.bf16.msra.mxu0 %v2585
        %2613 = vmatprep.subr.bf16.mxu0 %v2584
        %2614 = vmatpush1.bf16.msra.mxu0 %v2583
        %2615 = vmatprep.subr.bf16.mxu0 %v2582
        %2616 = vmatpush1.bf16.msra.mxu0 %v2581
        %2617 = vmatprep.subr.bf16.mxu0 %v2580
        %2618 = vmatpush1.bf16.msra.mxu0 %v2579
        %2619 = vmatprep.subr.bf16.mxu0 %v2578
        %2620 = vmatpush1.bf16.msra.mxu0 %v2577
        %2621 = vmatprep.subr.bf16.mxu0 %v2576
        %2622 = vmatpush1.bf16.msra.mxu0 %v2575
        %2623 = vmatprep.subr.bf16.mxu0 0
        %2624 = vmatpush2.bf16.msra.mxu0 0
        %2625 = vmatprep.subr.bf16.mxu0 0
        %2626 = vmatpush2.bf16.msra.mxu0 0
        %2627 = vmatprep.subr.bf16.mxu0 0
        %2628 = vmatpush2.bf16.msra.mxu0 0
        %2629 = vmatprep.subr.bf16.mxu0 0
        %2630 = vmatpush2.bf16.msra.mxu0 0
        %2631 = vmatprep.subr.bf16.mxu0 0
        %2632 = vmatpush2.bf16.msra.mxu0 0
        %2633 = vmatprep.subr.bf16.mxu0 0
        %2634 = vmatpush2.bf16.msra.mxu0 0
        %2635 = vmatprep.subr.bf16.mxu0 0
        %2636 = vmatpush2.bf16.msra.mxu0 0
        %2637 = vmatprep.subr.bf16.mxu0 0
        %2638 = vmatpush2.bf16.msra.mxu0 0
        %2639 = vmatprep.mubr.bf16.mxu0 0
        %2640 = vmatmul.mubr.bf16.gmra.mxu0 %v2514
        %v2641 = vpop.f32.mrf.mxu0
        %v2642 = vadd.f32 %v2520, %v2641
        %v2643 = vpop.f32.mrf.mxu0
        %v2644 = vadd.f32 %v2524, %v2643
        %v2645 = vpop.f32.mrf.mxu0
        %v2646 = vadd.f32 %v2520, %v2645
        %v2647 = vpop.f32.mrf.mxu0
        %v2648 = vadd.f32 %v2524, %v2647
        %2649 = vdwg.mxu0
        %v2650 = vmax.f32 %v2642, 0.0
        %v2651 = vmax.f32 %v2644, 0.0
        %v2652 = vmax.f32 %v2646, 0.0
        %v2653 = vmax.f32 %v2648, 0.0
        %v2654 = vld [vmem:[#allocation16] sm:$0xf]
        %v2655 = vld [vmem:[#allocation16 + $0x4] sm:$0xf]
        %v2656 = vld [vmem:[#allocation16 + $0x8] sm:$0xf]
        %v2657 = vld [vmem:[#allocation16 + $0xc] sm:$0xf]
        %v2658 = vld [vmem:[#allocation16 + $0x10] sm:$0xf]
        %v2659 = vld [vmem:[#allocation16 + $0x14] sm:$0xf]
        %v2660 = vld [vmem:[#allocation16 + $0x18] sm:$0xf]
        %v2661 = vld [vmem:[#allocation16 + $0x1c] sm:$0xf]
        %v2662 = vld [vmem:[#allocation16 + $0x20] sm:$0xf]
        %v2663 = vld [vmem:[#allocation16 + $0x24] sm:$0xf]
        %v2664 = vld [vmem:[#allocation16 + $0x28] sm:$0xf]
        %v2665 = vld [vmem:[#allocation16 + $0x2c] sm:$0xf]
        %v2666 = vld [vmem:[#allocation16 + $0x30] sm:$0xf]
        %v2667 = vld [vmem:[#allocation16 + $0x34] sm:$0xf]
        %v2668 = vld [vmem:[#allocation16 + $0x38] sm:$0xf]
        %v2669 = vld [vmem:[#allocation16 + $0x3c] sm:$0xf]
        %v2670 = vld [vmem:[#allocation16 + $0x40] sm:$0xf]
        %v2671 = vld [vmem:[#allocation16 + $0x44] sm:$0xf]
        %v2672 = vld [vmem:[#allocation16 + $0x48] sm:$0xf]
        %v2673 = vld [vmem:[#allocation16 + $0x4c] sm:$0xf]
        %v2674 = vld [vmem:[#allocation16 + $0x50] sm:$0xf]
        %v2675 = vld [vmem:[#allocation16 + $0x54] sm:$0xf]
        %v2676 = vld [vmem:[#allocation16 + $0x58] sm:$0xf]
        %v2677 = vld [vmem:[#allocation16 + $0x5c] sm:$0xf]
        %v2678 = vld [vmem:[#allocation16 + $0x60] sm:$0xf]
        %v2679 = vld [vmem:[#allocation16 + $0x64] sm:$0xf]
        %v2680 = vld [vmem:[#allocation16 + $0x68] sm:$0xf]
        %v2681 = vld [vmem:[#allocation16 + $0x6c] sm:$0xf]
        %v2682 = vld [vmem:[#allocation16 + $0x70] sm:$0xf]
        %v2683 = vld [vmem:[#allocation16 + $0x74] sm:$0xf]
        %v2684 = vld [vmem:[#allocation16 + $0x78] sm:$0xf]
        %v2685 = vld [vmem:[#allocation16 + $0x7c] sm:$0xf]
        %v2686 = vpack.c.bf16 %v2652, %v2650
        %v2687 = vpack.c.bf16 %v2653, %v2651
        %v2688 = vld [vmem:[%s17] sm:$0x1]
        %v2690 = vlaneseq
        %v2691 = vshrl.u32 %v2690, 7
        %v2692 = vsub.s32 0, %v2691
        %v2693 = vrot.slane %v2688, %v2692
        %v2727 = vunpack.c.l.b16 %v2654
        %v2728 = vunpack.c.l.b16 %v2655
        %v2729 = vunpack.c.l.b16 %v2656
        %v2730 = vunpack.c.l.b16 %v2657
        %v2731 = vunpack.c.l.b16 %v2658
        %v2732 = vunpack.c.l.b16 %v2659
        %v2733 = vunpack.c.l.b16 %v2660
        %v2734 = vunpack.c.l.b16 %v2661
        %v2735 = vunpack.c.l.b16 %v2662
        %v2736 = vunpack.c.l.b16 %v2663
        %v2737 = vunpack.c.l.b16 %v2664
        %v2738 = vunpack.c.l.b16 %v2665
        %v2739 = vunpack.c.l.b16 %v2666
        %v2740 = vunpack.c.l.b16 %v2667
        %v2741 = vunpack.c.l.b16 %v2668
        %v2742 = vunpack.c.l.b16 %v2669
        %v2743 = vunpack.c.l.b16 %v2670
        %v2744 = vunpack.c.l.b16 %v2671
        %v2745 = vunpack.c.l.b16 %v2672
        %v2746 = vunpack.c.l.b16 %v2673
        %v2747 = vunpack.c.l.b16 %v2674
        %v2748 = vunpack.c.l.b16 %v2675
        %v2749 = vunpack.c.l.b16 %v2676
        %v2750 = vunpack.c.l.b16 %v2677
        %v2751 = vunpack.c.l.b16 %v2678
        %v2752 = vunpack.c.l.b16 %v2679
        %v2753 = vunpack.c.l.b16 %v2680
        %v2754 = vunpack.c.l.b16 %v2681
        %v2755 = vunpack.c.l.b16 %v2682
        %v2756 = vunpack.c.l.b16 %v2683
        %v2757 = vunpack.c.l.b16 %v2684
        %v2758 = vunpack.c.l.b16 %v2685
        %v2759 = vpack.c.b16 %v2728, %v2727
        %v2760 = vpack.c.b16 %v2730, %v2729
        %v2761 = vpack.c.b16 %v2732, %v2731
        %v2762 = vpack.c.b16 %v2734, %v2733
        %v2763 = vpack.c.b16 %v2736, %v2735
        %v2764 = vpack.c.b16 %v2738, %v2737
        %v2765 = vpack.c.b16 %v2740, %v2739
        %v2766 = vpack.c.b16 %v2742, %v2741
        %v2767 = vpack.c.b16 %v2744, %v2743
        %v2768 = vpack.c.b16 %v2746, %v2745
        %v2769 = vpack.c.b16 %v2748, %v2747
        %v2770 = vpack.c.b16 %v2750, %v2749
        %v2771 = vpack.c.b16 %v2752, %v2751
        %v2772 = vpack.c.b16 %v2754, %v2753
        %v2773 = vpack.c.b16 %v2756, %v2755
        %v2774 = vpack.c.b16 %v2758, %v2757
        %2791 = vmatprep.subr.bf16.mxu0 0
        %2792 = vmatpush1.bf16.msra.mxu0 %v2766
        %2793 = vmatprep.subr.bf16.mxu0 0
        %2794 = vmatpush1.bf16.msra.mxu0 %v2765
        %2795 = vmatprep.subr.bf16.mxu0 0
        %2796 = vmatpush1.bf16.msra.mxu0 %v2764
        %2797 = vmatprep.subr.bf16.mxu0 0
        %2798 = vmatpush1.bf16.msra.mxu0 %v2763
        %2799 = vmatprep.subr.bf16.mxu0 0
        %2800 = vmatpush1.bf16.msra.mxu0 %v2762
        %2801 = vmatprep.subr.bf16.mxu0 0
        %2802 = vmatpush1.bf16.msra.mxu0 %v2761
        %2803 = vmatprep.subr.bf16.mxu0 0
        %2804 = vmatpush1.bf16.msra.mxu0 %v2760
        %2805 = vmatprep.subr.bf16.mxu0 0
        %2806 = vmatpush1.bf16.msra.mxu0 %v2759
        %2807 = vmatprep.subr.bf16.mxu0 0
        %2808 = vmatpush2.bf16.msra.mxu0 %v2774
        %2809 = vmatprep.subr.bf16.mxu0 0
        %2810 = vmatpush2.bf16.msra.mxu0 %v2773
        %2811 = vmatprep.subr.bf16.mxu0 0
        %2812 = vmatpush2.bf16.msra.mxu0 %v2772
        %2813 = vmatprep.subr.bf16.mxu0 0
        %2814 = vmatpush2.bf16.msra.mxu0 %v2771
        %2815 = vmatprep.subr.bf16.mxu0 0
        %2816 = vmatpush2.bf16.msra.mxu0 %v2770
        %2817 = vmatprep.subr.bf16.mxu0 0
        %2818 = vmatpush2.bf16.msra.mxu0 %v2769
        %2819 = vmatprep.subr.bf16.mxu0 0
        %2820 = vmatpush2.bf16.msra.mxu0 %v2768
        %2821 = vmatprep.subr.bf16.mxu0 0
        %2822 = vmatpush2.bf16.msra.mxu0 %v2767
        %2823 = vmatprep.mubr.bf16.mxu0 %v2687
        %2824 = vmatmul.mubr.bf16.gmra.mxu0 %v2686
        %v2825 = vpop.f32.mrf.mxu0
        %v2826 = vadd.f32 %v2693, %v2825
        %v2827 = vpop.f32.mrf.mxu0
        %v2828 = vpop.f32.mrf.mxu0
        %v2829 = vadd.f32 %v2693, %v2828
        %v2830 = vpop.f32.mrf.mxu0
        %2831 = vdwg.mxu0
        %v2832 = vadd.f32 %v2826, %v2333
        %v2833 = vadd.f32 %v2829, %v2334
        %2834 = vst [vmem:[%s888] sm:$0xff] %v2832
        %2835 = vst [vmem:[%s888 + $0x8] sm:$0xff] %v2833
        %v2836 = vld [vmem:[%s12] sm:$0x1]
        %v2837 = vld [vmem:[%s13] sm:$0x1]
        %2838 = vadd.xlane.f32.xlu0 %v2455
        %v2839 = vpop.xlane.xlu0 %2838
        %2840 = vadd.xlane.f32.xlu0 %v2456
        %v2841 = vpop.xlane.xlu0 %2840
        %v2842 = vmul.f32 %v2839, %v2463
        %v2843 = vmul.f32 %v2841, %v2463
        %v2844 = vsub.f32 %v2455, %v2842
        %v2845 = vsub.f32 %v2456, %v2843
        %v2846 = vmul.f32 %v2844, %v2844
        %v2847 = vmul.f32 %v2845, %v2845
        %2848 = vadd.xlane.f32.xlu0 %v2846
        %v2849 = vpop.xlane.xlu0 %2848
        %2850 = vadd.xlane.f32.xlu0 %v2847
        %v2851 = vpop.xlane.xlu0 %2850
        %v2852 = vmul.f32 %v2849, %v2463
        %v2853 = vmul.f32 %v2851, %v2463
        %v2854 = vadd.f32 %v2852, 1e-05
        %v2855 = vadd.f32 %v2853, 1e-05
        %v2856 = vrsqrt.pop %v2854
        %v2857 = vrsqrt.pop %v2855
        %v2858 = vmul.f32 %v2844, %v2856
        %v2859 = vmul.f32 %v2845, %v2857
        %v2861 = vlaneseq
        %v2862 = vshrl.u32 %v2861, 7
        %v2863 = vsub.s32 0, %v2862
        %v2864 = vrot.slane %v2836, %v2863
        %v2866 = vmul.f32 %v2858, %v2864
        %v2867 = vmul.f32 %v2859, %v2864
        %v2869 = vlaneseq
        %v2870 = vshrl.u32 %v2869, 7
        %v2871 = vsub.s32 0, %v2870
        %v2872 = vrot.slane %v2837, %v2871
        %v2874 = vadd.f32 %v2866, %v2872
        %v2875 = vadd.f32 %v2867, %v2872
        %v2876 = vld [vmem:[#allocation18] sm:$0xff]
        %v2877 = vld [vmem:[#allocation18 + $0x8] sm:$0xff]
        %v2878 = vld [vmem:[#allocation18 + $0x10] sm:$0xff]
        %v2879 = vld [vmem:[#allocation18 + $0x18] sm:$0xff]
        %v2880 = vld [vmem:[#allocation18 + $0x20] sm:$0xff]
        %v2881 = vld [vmem:[#allocation18 + $0x28] sm:$0xff]
        %v2882 = vld [vmem:[#allocation18 + $0x30] sm:$0xff]
        %v2883 = vld [vmem:[#allocation18 + $0x38] sm:$0xff]
        %v2884 = vld [vmem:[#allocation18 + $0x40] sm:$0xff]
        %v2885 = vld [vmem:[#allocation18 + $0x48] sm:$0xff]
        %v2886 = vld [vmem:[#allocation18 + $0x50] sm:$0xff]
        %v2887 = vld [vmem:[#allocation18 + $0x58] sm:$0xff]
        %v2888 = vld [vmem:[#allocation18 + $0x60] sm:$0xff]
        %v2889 = vld [vmem:[#allocation18 + $0x68] sm:$0xff]
        %v2890 = vld [vmem:[#allocation18 + $0x70] sm:$0xff]
        %v2891 = vld [vmem:[#allocation18 + $0x78] sm:$0xff]
        %v2892 = vpack.c.bf16 %v2875, %v2874
        %v2893 = vld [vmem:[%s19] sm:$0x3]
        %v2895 = vlaneseq
        %v2896 = vshrl.u32 %v2895, 7
        %v2897 = vsub.s32 0, %v2896
        %v2898 = vrot.slane %v2893, %v2897
        %v2899 = vlaneseq
        %v2900 = vshrl.u32 %v2899, 7
        %v2901 = vsub.s32 1, %v2900
        %v2902 = vrot.slane %v2893, %v2901
        %v2921 = vunpack.c.l.b16 %v2876
        %v2922 = vunpack.c.h.b16 %v2876
        %v2923 = vunpack.c.l.b16 %v2877
        %v2924 = vunpack.c.h.b16 %v2877
        %v2925 = vunpack.c.l.b16 %v2878
        %v2926 = vunpack.c.h.b16 %v2878
        %v2927 = vunpack.c.l.b16 %v2879
        %v2928 = vunpack.c.h.b16 %v2879
        %v2929 = vunpack.c.l.b16 %v2880
        %v2930 = vunpack.c.h.b16 %v2880
        %v2931 = vunpack.c.l.b16 %v2881
        %v2932 = vunpack.c.h.b16 %v2881
        %v2933 = vunpack.c.l.b16 %v2882
        %v2934 = vunpack.c.h.b16 %v2882
        %v2935 = vunpack.c.l.b16 %v2883
        %v2936 = vunpack.c.h.b16 %v2883
        %v2937 = vunpack.c.l.b16 %v2884
        %v2938 = vunpack.c.h.b16 %v2884
        %v2939 = vunpack.c.l.b16 %v2885
        %v2940 = vunpack.c.h.b16 %v2885
        %v2941 = vunpack.c.l.b16 %v2886
        %v2942 = vunpack.c.h.b16 %v2886
        %v2943 = vunpack.c.l.b16 %v2887
        %v2944 = vunpack.c.h.b16 %v2887
        %v2945 = vunpack.c.l.b16 %v2888
        %v2946 = vunpack.c.h.b16 %v2888
        %v2947 = vunpack.c.l.b16 %v2889
        %v2948 = vunpack.c.h.b16 %v2889
        %v2949 = vunpack.c.l.b16 %v2890
        %v2950 = vunpack.c.h.b16 %v2890
        %v2951 = vunpack.c.l.b16 %v2891
        %v2952 = vunpack.c.h.b16 %v2891
        %v2953 = vpack.c.b16 %v2923, %v2921
        %v2954 = vpack.c.b16 %v2924, %v2922
        %v2955 = vpack.c.b16 %v2927, %v2925
        %v2956 = vpack.c.b16 %v2928, %v2926
        %v2957 = vpack.c.b16 %v2931, %v2929
        %v2958 = vpack.c.b16 %v2932, %v2930
        %v2959 = vpack.c.b16 %v2935, %v2933
        %v2960 = vpack.c.b16 %v2936, %v2934
        %v2961 = vpack.c.b16 %v2939, %v2937
        %v2962 = vpack.c.b16 %v2940, %v2938
        %v2963 = vpack.c.b16 %v2943, %v2941
        %v2964 = vpack.c.b16 %v2944, %v2942
        %v2965 = vpack.c.b16 %v2947, %v2945
        %v2966 = vpack.c.b16 %v2948, %v2946
        %v2967 = vpack.c.b16 %v2951, %v2949
        %v2968 = vpack.c.b16 %v2952, %v2950
        %2985 = vmatprep.subr.bf16.mxu0 %v2968
        %2986 = vmatpush1.bf16.msra.mxu0 %v2967
        %2987 = vmatprep.subr.bf16.mxu0 %v2966
        %2988 = vmatpush1.bf16.msra.mxu0 %v2965
        %2989 = vmatprep.subr.bf16.mxu0 %v2964
        %2990 = vmatpush1.bf16.msra.mxu0 %v2963
        %2991 = vmatprep.subr.bf16.mxu0 %v2962
        %2992 = vmatpush1.bf16.msra.mxu0 %v2961
        %2993 = vmatprep.subr.bf16.mxu0 %v2960
        %2994 = vmatpush1.bf16.msra.mxu0 %v2959
        %2995 = vmatprep.subr.bf16.mxu0 %v2958
        %2996 = vmatpush1.bf16.msra.mxu0 %v2957
        %2997 = vmatprep.subr.bf16.mxu0 %v2956
        %2998 = vmatpush1.bf16.msra.mxu0 %v2955
        %2999 = vmatprep.subr.bf16.mxu0 %v2954
        %3000 = vmatpush1.bf16.msra.mxu0 %v2953
        %3001 = vmatprep.subr.bf16.mxu0 0
        %3002 = vmatpush2.bf16.msra.mxu0 0
        %3003 = vmatprep.subr.bf16.mxu0 0
        %3004 = vmatpush2.bf16.msra.mxu0 0
        %3005 = vmatprep.subr.bf16.mxu0 0
        %3006 = vmatpush2.bf16.msra.mxu0 0
        %3007 = vmatprep.subr.bf16.mxu0 0
        %3008 = vmatpush2.bf16.msra.mxu0 0
        %3009 = vmatprep.subr.bf16.mxu0 0
        %3010 = vmatpush2.bf16.msra.mxu0 0
        %3011 = vmatprep.subr.bf16.mxu0 0
        %3012 = vmatpush2.bf16.msra.mxu0 0
        %3013 = vmatprep.subr.bf16.mxu0 0
        %3014 = vmatpush2.bf16.msra.mxu0 0
        %3015 = vmatprep.subr.bf16.mxu0 0
        %3016 = vmatpush2.bf16.msra.mxu0 0
        %3017 = vmatprep.mubr.bf16.mxu0 0
        %3018 = vmatmul.mubr.bf16.gmra.mxu0 %v2892
        %v3019 = vpop.f32.mrf.mxu0
        %v3020 = vadd.f32 %v2898, %v3019
        %v3021 = vpop.f32.mrf.mxu0
        %v3022 = vadd.f32 %v2902, %v3021
        %v3023 = vpop.f32.mrf.mxu0
        %v3024 = vadd.f32 %v2898, %v3023
        %v3025 = vpop.f32.mrf.mxu0
        %v3026 = vadd.f32 %v2902, %v3025
        %3027 = vdwg.mxu0
        %v3028 = vmax.f32 %v3020, 0.0
        %v3029 = vmax.f32 %v3022, 0.0
        %v3030 = vmax.f32 %v3024, 0.0
        %v3031 = vmax.f32 %v3026, 0.0
        %v3032 = vld [vmem:[#allocation19] sm:$0xf]
        %v3033 = vld [vmem:[#allocation19 + $0x4] sm:$0xf]
        %v3034 = vld [vmem:[#allocation19 + $0x8] sm:$0xf]
        %v3035 = vld [vmem:[#allocation19 + $0xc] sm:$0xf]
        %v3036 = vld [vmem:[#allocation19 + $0x10] sm:$0xf]
        %v3037 = vld [vmem:[#allocation19 + $0x14] sm:$0xf]
        %v3038 = vld [vmem:[#allocation19 + $0x18] sm:$0xf]
        %v3039 = vld [vmem:[#allocation19 + $0x1c] sm:$0xf]
        %v3040 = vld [vmem:[#allocation19 + $0x20] sm:$0xf]
        %v3041 = vld [vmem:[#allocation19 + $0x24] sm:$0xf]
        %v3042 = vld [vmem:[#allocation19 + $0x28] sm:$0xf]
        %v3043 = vld [vmem:[#allocation19 + $0x2c] sm:$0xf]
        %v3044 = vld [vmem:[#allocation19 + $0x30] sm:$0xf]
        %v3045 = vld [vmem:[#allocation19 + $0x34] sm:$0xf]
        %v3046 = vld [vmem:[#allocation19 + $0x38] sm:$0xf]
        %v3047 = vld [vmem:[#allocation19 + $0x3c] sm:$0xf]
        %v3048 = vld [vmem:[#allocation19 + $0x40] sm:$0xf]
        %v3049 = vld [vmem:[#allocation19 + $0x44] sm:$0xf]
        %v3050 = vld [vmem:[#allocation19 + $0x48] sm:$0xf]
        %v3051 = vld [vmem:[#allocation19 + $0x4c] sm:$0xf]
        %v3052 = vld [vmem:[#allocation19 + $0x50] sm:$0xf]
        %v3053 = vld [vmem:[#allocation19 + $0x54] sm:$0xf]
        %v3054 = vld [vmem:[#allocation19 + $0x58] sm:$0xf]
        %v3055 = vld [vmem:[#allocation19 + $0x5c] sm:$0xf]
        %v3056 = vld [vmem:[#allocation19 + $0x60] sm:$0xf]
        %v3057 = vld [vmem:[#allocation19 + $0x64] sm:$0xf]
        %v3058 = vld [vmem:[#allocation19 + $0x68] sm:$0xf]
        %v3059 = vld [vmem:[#allocation19 + $0x6c] sm:$0xf]
        %v3060 = vld [vmem:[#allocation19 + $0x70] sm:$0xf]
        %v3061 = vld [vmem:[#allocation19 + $0x74] sm:$0xf]
        %v3062 = vld [vmem:[#allocation19 + $0x78] sm:$0xf]
        %v3063 = vld [vmem:[#allocation19 + $0x7c] sm:$0xf]
        %v3064 = vpack.c.bf16 %v3030, %v3028
        %v3065 = vpack.c.bf16 %v3031, %v3029
        %v3066 = vld [vmem:[%s21] sm:$0x1]
        %v3068 = vlaneseq
        %v3069 = vshrl.u32 %v3068, 7
        %v3070 = vsub.s32 0, %v3069
        %v3071 = vrot.slane %v3066, %v3070
        %v3105 = vunpack.c.l.b16 %v3032
        %v3106 = vunpack.c.l.b16 %v3033
        %v3107 = vunpack.c.l.b16 %v3034
        %v3108 = vunpack.c.l.b16 %v3035
        %v3109 = vunpack.c.l.b16 %v3036
        %v3110 = vunpack.c.l.b16 %v3037
        %v3111 = vunpack.c.l.b16 %v3038
        %v3112 = vunpack.c.l.b16 %v3039
        %v3113 = vunpack.c.l.b16 %v3040
        %v3114 = vunpack.c.l.b16 %v3041
        %v3115 = vunpack.c.l.b16 %v3042
        %v3116 = vunpack.c.l.b16 %v3043
        %v3117 = vunpack.c.l.b16 %v3044
        %v3118 = vunpack.c.l.b16 %v3045
        %v3119 = vunpack.c.l.b16 %v3046
        %v3120 = vunpack.c.l.b16 %v3047
        %v3121 = vunpack.c.l.b16 %v3048
        %v3122 = vunpack.c.l.b16 %v3049
        %v3123 = vunpack.c.l.b16 %v3050
        %v3124 = vunpack.c.l.b16 %v3051
        %v3125 = vunpack.c.l.b16 %v3052
        %v3126 = vunpack.c.l.b16 %v3053
        %v3127 = vunpack.c.l.b16 %v3054
        %v3128 = vunpack.c.l.b16 %v3055
        %v3129 = vunpack.c.l.b16 %v3056
        %v3130 = vunpack.c.l.b16 %v3057
        %v3131 = vunpack.c.l.b16 %v3058
        %v3132 = vunpack.c.l.b16 %v3059
        %v3133 = vunpack.c.l.b16 %v3060
        %v3134 = vunpack.c.l.b16 %v3061
        %v3135 = vunpack.c.l.b16 %v3062
        %v3136 = vunpack.c.l.b16 %v3063
        %v3137 = vpack.c.b16 %v3106, %v3105
        %v3138 = vpack.c.b16 %v3108, %v3107
        %v3139 = vpack.c.b16 %v3110, %v3109
        %v3140 = vpack.c.b16 %v3112, %v3111
        %v3141 = vpack.c.b16 %v3114, %v3113
        %v3142 = vpack.c.b16 %v3116, %v3115
        %v3143 = vpack.c.b16 %v3118, %v3117
        %v3144 = vpack.c.b16 %v3120, %v3119
        %v3145 = vpack.c.b16 %v3122, %v3121
        %v3146 = vpack.c.b16 %v3124, %v3123
        %v3147 = vpack.c.b16 %v3126, %v3125
        %v3148 = vpack.c.b16 %v3128, %v3127
        %v3149 = vpack.c.b16 %v3130, %v3129
        %v3150 = vpack.c.b16 %v3132, %v3131
        %v3151 = vpack.c.b16 %v3134, %v3133
        %v3152 = vpack.c.b16 %v3136, %v3135
        %3169 = vmatprep.subr.bf16.mxu0 0
        %3170 = vmatpush1.bf16.msra.mxu0 %v3144
        %3171 = vmatprep.subr.bf16.mxu0 0
        %3172 = vmatpush1.bf16.msra.mxu0 %v3143
        %3173 = vmatprep.subr.bf16.mxu0 0
        %3174 = vmatpush1.bf16.msra.mxu0 %v3142
        %3175 = vmatprep.subr.bf16.mxu0 0
        %3176 = vmatpush1.bf16.msra.mxu0 %v3141
        %3177 = vmatprep.subr.bf16.mxu0 0
        %3178 = vmatpush1.bf16.msra.mxu0 %v3140
        %3179 = vmatprep.subr.bf16.mxu0 0
        %3180 = vmatpush1.bf16.msra.mxu0 %v3139
        %3181 = vmatprep.subr.bf16.mxu0 0
        %3182 = vmatpush1.bf16.msra.mxu0 %v3138
        %3183 = vmatprep.subr.bf16.mxu0 0
        %3184 = vmatpush1.bf16.msra.mxu0 %v3137
        %3185 = vmatprep.subr.bf16.mxu0 0
        %3186 = vmatpush2.bf16.msra.mxu0 %v3152
        %3187 = vmatprep.subr.bf16.mxu0 0
        %3188 = vmatpush2.bf16.msra.mxu0 %v3151
        %3189 = vmatprep.subr.bf16.mxu0 0
        %3190 = vmatpush2.bf16.msra.mxu0 %v3150
        %3191 = vmatprep.subr.bf16.mxu0 0
        %3192 = vmatpush2.bf16.msra.mxu0 %v3149
        %3193 = vmatprep.subr.bf16.mxu0 0
        %3194 = vmatpush2.bf16.msra.mxu0 %v3148
        %3195 = vmatprep.subr.bf16.mxu0 0
        %3196 = vmatpush2.bf16.msra.mxu0 %v3147
        %3197 = vmatprep.subr.bf16.mxu0 0
        %3198 = vmatpush2.bf16.msra.mxu0 %v3146
        %3199 = vmatprep.subr.bf16.mxu0 0
        %3200 = vmatpush2.bf16.msra.mxu0 %v3145
        %3201 = vmatprep.mubr.bf16.mxu0 %v3065
        %3202 = vmatmul.mubr.bf16.gmra.mxu0 %v3064
        %v3203 = vpop.f32.mrf.mxu0
        %v3204 = vadd.f32 %v3071, %v3203
        %v3205 = vpop.f32.mrf.mxu0
        %v3206 = vpop.f32.mrf.mxu0
        %v3207 = vadd.f32 %v3071, %v3206
        %v3208 = vpop.f32.mrf.mxu0
        %3209 = vdwg.mxu0
        %v3210 = vadd.f32 %v3204, %v2455
        %v3211 = vadd.f32 %v3207, %v2456
        %3212 = vst [vmem:[%s895] sm:$0xff] %v3210
        %3213 = vst [vmem:[%s895 + $0x8] sm:$0xff] %v3211
        %s3214 = sand.u32 %s531, 1
        %s3215 = scalar_lea.sflag [#allocation6], %s3214
        %s3216 = sand.u32 %s531, 1
        %s3217 = smul.addr %s3216, 16
        %s3218 = scalar_lea.vmem [#allocation21], %s3217
        %s3219 = sand.u32 %s557, 1
        %s3220 = scalar_lea.sflag [#allocation23], %s3219
        %s3221 = sand.u32 %s557, 1
        %s3222 = smul.addr %s3221, 16
        %s3223 = scalar_lea.vmem [#allocation22], %s3222
        // Predicated region
        $region149: #{tpu_custom_call.1} parent=107 // pred_check
          %p3224 = pneg %p541
        $region150: #{tpu_custom_call.1} parent=107 // pred_check_branch
          %3226 = sbr.rel (%p3224) target = $region152
        $region151: #{tpu_custom_call.1} parent=107 // pred_region
          %s3228 = ssub.s32 256, 256
          %3229 = vsyncadd %s3215, %s3228
          %s3230 = smul.addr %s51, 2
          %s3231 = smul.addr %s3230, 128
          %s3232 = scalar_lea.hbm %s22, %s3231
          %s3233 = sshll.u32 %s3218, 4
          %s3234 = int_to_ptr.vmem [resolvable:$true] %s3233
          %3239 = dma.vmem_to_hbm [thread:$0]  %s3234, 256, %s3232, %s3215, 128, 128, 8
        $region152: #{tpu_custom_call.1} parent=107 // pred_fallthru
          _
        // Predicated region
        $region153: #{tpu_custom_call.1} parent=107 // pred_check
          %p3240 = pneg %p567
        $region154: #{tpu_custom_call.1} parent=107 // pred_check_branch
          %3242 = sbr.rel (%p3240) target = $region156
        $region155: #{tpu_custom_call.1} parent=107 // pred_region
          %s3244 = ssub.s32 256, 256
          %3245 = vsyncadd %s3220, %s3244
          %s3246 = smul.addr %s51, 2
          %s3247 = smul.addr %s3246, 128
          %s3248 = scalar_lea.hbm %s23, %s3247
          %s3249 = sshll.u32 %s3223, 4
          %s3250 = int_to_ptr.vmem [resolvable:$true] %s3249
          %3255 = dma.vmem_to_hbm [thread:$0]  %s3250, 256, %s3248, %s3220, 128, 128, 8
        $region156: #{tpu_custom_call.1} parent=107 // pred_fallthru
          _
      $region108: #{tpu_custom_call.1} parent=5 // pred_fallthru
        _
      %p3256 = scmp.le.s32.totalorder 2, %s46
      // Predicated region
      $region157: #{tpu_custom_call.1} parent=5 // pred_check
        %p3257 = pneg %p3256
      $region158: #{tpu_custom_call.1} parent=5 // pred_check_branch
        %3259 = sbr.rel (%p3257) target = $region160
      $region159: #{tpu_custom_call.1} parent=5 // pred_region
        %s3260 = ssub.s32 %s46, 2
        // Predicated region
        $region161: #{tpu_custom_call.1} parent=159 // pred_check
          %p3261 = pneg %p547
        $region162: #{tpu_custom_call.1} parent=159 // pred_check_branch
          %3263 = sbr.rel (%p3261) target = $region164
        $region163: #{tpu_custom_call.1} parent=159 // pred_region
          %s3264 = sand.u32 %s532, 1
          %s3265 = scalar_lea.sflag [#allocation6], %s3264
          %s3266 = sand.u32 %s532, 1
          %s3267 = smul.addr %s3266, 16
          %s3268 = scalar_lea.vmem [#allocation21], %s3267
          %3269 = dma.done %s3265, 256
        $region164: #{tpu_custom_call.1} parent=159 // pred_fallthru
          _
        // Predicated region
        $region165: #{tpu_custom_call.1} parent=159 // pred_check
          %p3270 = pneg %p573
        $region166: #{tpu_custom_call.1} parent=159 // pred_check_branch
          %3272 = sbr.rel (%p3270) target = $region168
        $region167: #{tpu_custom_call.1} parent=159 // pred_region
          %s3273 = sand.u32 %s558, 1
          %s3274 = scalar_lea.sflag [#allocation23], %s3273
          %s3275 = sand.u32 %s558, 1
          %s3276 = smul.addr %s3275, 16
          %s3277 = scalar_lea.vmem [#allocation22], %s3276
          %3278 = dma.done %s3274, 256
        $region168: #{tpu_custom_call.1} parent=159 // pred_fallthru
          _
      $region160: #{tpu_custom_call.1} parent=5 // pred_fallthru
        _
    $region6: #{tpu_custom_call.1} parent=1 // loop_footer
      %s50 = sadd.s32 1, %s46
    $region7: #{tpu_custom_call.1} parent=1 // loop_footer_branch
      %45 = sbr.rel target = $region3
    $region8: #{tpu_custom_call.1} parent=1 // loop_exit
      _
    %3279 = vsyncpa [#allocation5], 1
    %s3280 = scalar_lea.sflag [#allocation5], 1
    %3281 = vsyncpa %s3280, 1
    %3282 = vsyncpa [#allocation8], 1
    %s3283 = scalar_lea.sflag [#allocation8], 1
    %3284 = vsyncpa %s3283, 1
    %3285 = vsyncpa [#allocation11], 1
    %3286 = vsyncpa [#allocation14], 1
    %3287 = vsyncpa [#allocation17], 1
    %3288 = vsyncpa [#allocation20], 1
    %3289 = vsyncpa [#allocation6], 1
    %s3290 = scalar_lea.sflag [#allocation6], 1
    %3291 = vsyncpa %s3290, 1
    %3292 = vsyncpa [#allocation23], 1
    %s3293 = scalar_lea.sflag [#allocation23], 1
    %3294 = vsyncpa %s3293, 1

</llo_original>
